<compile_context>
chip_gen: v7x
topology: tpu7x:2x2x1
jax: 0.10.0
libtpu: 0.0.40
codegen_flags: <defaults>
</compile_context>

<pallas_src>
import functools

import jax
import jax.numpy as jnp
from jax import lax
from jax.experimental import pallas as pl
from jax.experimental.pallas import tpu as pltpu


# ------------------------------ helpers --------------------------------------
def _round_up(x, m):
    return ((x + m - 1) // m) * m


def _pick_tblk(T, cap=128):
    tblk = min(T, cap)
    while T % tblk != 0:
        tblk -= 1
    return tblk


def _pad_gate_cols(w, H, Hp):
    """(in, 4H) -> (in, 4Hp): zero-pad each of the 4 gate blocks [i,f,g,o] from H to Hp."""
    if Hp == H:
        return w
    n = w.shape[0]
    return jnp.pad(w.reshape(n, 4, H), ((0, 0), (0, 0), (0, Hp - H))).reshape(n, 4 * Hp)


def _pad_rows(w, H, Hp):
    if Hp == H:
        return w
    return jnp.pad(w, ((0, Hp - H), (0, 0)))


# ----------------------------- Pallas kernel ----------------------------------
def sentiment_rnn_kernel(
    # inputs
    x_ref,       # (Tblk, Bp, E)  embedded inputs for this time block (time-major)
    h0_ref,      # (2, Bp, Hp)    initial hidden states (layer 0, layer 1), f32
    c0_ref,      # (2, Bp, Hp)    initial cell states, f32
    wih0_ref,    # (E, 4Hp)       layer-0 input weights   (gate order i,f,g,o)
    b0_ref,      # (1, 4Hp)       layer-0 bias (ih+hh), f32
    whh0_ref,    # (Hp, 4Hp)      layer-0 recurrent weights
    wcat1_ref,   # (2Hp, 4Hp)     layer-1 [W_ih ; W_hh] stacked
    b1_ref,      # (1, 4Hp)       layer-1 bias (ih+hh), f32
    wfc_ref,     # (2Hp, O)       final FC weights
    bfc_ref,     # (1, O)         final FC bias, f32
    # outputs
    sig_ref,     # (Bp, O)        sigmoid output
    hn_ref,      # (2, Bp, Hp)    final hidden states
    cn_ref,      # (2, Bp, Hp)    final cell states
    # scratch (persists across the time grid)
    xw_ref,      # (Tblk, Bp, 4Hp) f32  precomputed layer-0 input projection
    h0s, c0s, h1s, c1s,            # (Bp, Hp) f32  LSTM carries
    pmax, psum,                    # (Bp, Hp) f32  online max / sum pooling accumulators
    *,
    inv_t,       # python float: 1 / T (true sequence length)
):
    tb = pl.program_id(0)
    Tblk, Bp, E = x_ref.shape
    Hp = h0_ref.shape[2]
    f32 = jnp.float32

    # ---- first time-block: initialize persistent state ----------------------
    @pl.when(tb == 0)
    def _init():
        h0s[...] = h0_ref[0]
        c0s[...] = c0_ref[0]
        h1s[...] = h0_ref[1]
        c1s[...] = c0_ref[1]
        pmax[...] = jnp.full((Bp, Hp), -jnp.inf, f32)
        psum[...] = jnp.zeros((Bp, Hp), f32)

    # ---- layer-0 input projection for the whole block: ONE MXU matmul -------
    # bias folded in here so it is off the per-step serial chain.
    x2d = x_ref[...].reshape(Tblk * Bp, E)
    xw = jnp.dot(x2d, wih0_ref[...], preferred_element_type=f32) + b0_ref[...]
    xw_ref[...] = xw.reshape(Tblk, Bp, 4 * Hp)

    whh0 = whh0_ref[...]
    wcat1 = wcat1_ref[...]
    cdt = whh0.dtype                                  # matmul-input dtype (f32 or bf16)
    b1b = jnp.broadcast_to(b1_ref[...], (Bp, 4 * Hp))  # broadcast hoisted out of the loop

    def gates_split(g):
        i = jax.nn.sigmoid(g[:, 0 * Hp:1 * Hp])
        f = jax.nn.sigmoid(g[:, 1 * Hp:2 * Hp])
        gg = jnp.tanh(g[:, 2 * Hp:3 * Hp])
        o = jax.nn.sigmoid(g[:, 3 * Hp:4 * Hp])
        return i, f, gg, o

    # ---- fused layer-0 + layer-1 recurrence with online pooling -------------
    def step(t, carry):
        h0, c0, h1, c1, pm, ps = carry
        # layer 0: only the recurrent matmul is on the serial chain
        g0 = xw_ref[t] + jnp.dot(h0.astype(cdt), whh0, preferred_element_type=f32)
        i0, f0, gg0, o0 = gates_split(g0)
        c0 = f0 * c0 + i0 * gg0
        h0 = o0 * jnp.tanh(c0)
        # layer 1: single concatenated matmul [h0_t || h1_{t-1}] @ [W_ih; W_hh]
        inp1 = jnp.concatenate([h0.astype(cdt), h1.astype(cdt)], axis=1)
        g1 = jnp.dot(inp1, wcat1, preferred_element_type=f32) + b1b
        i1, f1, gg1, o1 = gates_split(g1)
        c1 = f1 * c1 + i1 * gg1
        h1 = o1 * jnp.tanh(c1)
        # online max / mean pooling (inter-layer & output dropout = identity, eval mode)
        pm = jnp.maximum(pm, h1)
        ps = ps + h1
        return h0, c0, h1, c1, pm, ps

    init = (h0s[...], c0s[...], h1s[...], c1s[...], pmax[...], psum[...])
    unroll = True if Tblk <= 16 else 4
    h0f, c0f, h1f, c1f, pmf, psf = lax.fori_loop(0, Tblk, step, init, unroll=unroll)

    # persist carries / accumulators for the next time block
    h0s[...] = h0f
    c0s[...] = c0f
    h1s[...] = h1f
    c1s[...] = c1f
    pmax[...] = pmf
    psum[...] = psf

    # ---- last time-block: final states, pooling finalize, FC + sigmoid ------
    @pl.when(tb == pl.num_programs(0) - 1)
    def _finalize():
        hn_ref[0] = h0f
        hn_ref[1] = h1f
        cn_ref[0] = c0f
        cn_ref[1] = c1f
        feat = jnp.concatenate([pmf, psf * inv_t], axis=1)          # (Bp, 2Hp)
        logits = jnp.dot(feat.astype(wfc_ref.dtype), wfc_ref[...],
                         preferred_element_type=f32) + bfc_ref[...]
        sig_ref[...] = jax.nn.sigmoid(logits)


# ------------------------------- Wrapper --------------------------------------
@functools.partial(jax.jit, static_argnames=("use_bf16",))
def sentiment_rnn_forward(tokens, h0, c0, params, use_bf16=False):
    """tokens: int32 (B, T); h0, c0: (2, B, H). Returns (sig_out, (h_n, c_n))."""
    B, T = tokens.shape
    E = params["embedding"].shape[1]
    H = h0.shape[2]
    O = params["w_fc"].shape[1]

    Bp = _round_up(B, 8)        # f32 sublane tile
    Hp = _round_up(H, 128)      # lane tile -> gate slices become aligned views
    Tblk = _pick_tblk(T)
    n_blk = T // Tblk

    f32 = jnp.float32
    mdt = jnp.bfloat16 if use_bf16 else f32   # matmul-input dtype

    # embedding lookup + time-major layout + batch padding (glue, outside kernel)
    emb = jnp.take(params["embedding"], tokens, axis=0)            # (B, T, E)
    x = jnp.transpose(emb, (1, 0, 2)).astype(f32)                  # (T, B, E)
    x = jnp.pad(x, ((0, 0), (0, Bp - B), (0, 0))).astype(mdt)      # (T, Bp, E)

    # weights pre-transposed to (in, 4H); zero-pad each gate block to Hp
    wih0 = _pad_gate_cols(params["w_ih_l0"], H, Hp).astype(mdt)                         # (E, 4Hp)
    whh0 = _pad_rows(_pad_gate_cols(params["w_hh_l0"], H, Hp), H, Hp).astype(mdt)       # (Hp, 4Hp)
    b0 = _pad_gate_cols(params["b_l0"], H, Hp).astype(f32)                              # (1, 4Hp)
    wih1 = _pad_rows(_pad_gate_cols(params["w_ih_l1"], H, Hp), H, Hp)
    whh1 = _pad_rows(_pad_gate_cols(params["w_hh_l1"], H, Hp), H, Hp)
    wcat1 = jnp.concatenate([wih1, whh1], axis=0).astype(mdt)                           # (2Hp, 4Hp)
    b1 = _pad_gate_cols(params["b_l1"], H, Hp).astype(f32)                              # (1, 4Hp)
    wfc = jnp.pad(params["w_fc"].reshape(2, H, O),
                  ((0, 0), (0, Hp - H), (0, 0))).reshape(2 * Hp, O).astype(mdt)         # (2Hp, O)
    bfc = params["b_fc"].astype(f32)                                                    # (1, O)

    h0p = jnp.pad(h0, ((0, 0), (0, Bp - B), (0, Hp - H))).astype(f32)
    c0p = jnp.pad(c0, ((0, 0), (0, Bp - B), (0, Hp - H))).astype(f32)

    # explicit VMEM budget: double-buffered inputs/outputs + scratch + margin
    wb = jnp.dtype(mdt).itemsize
    vmem = 0
    vmem += 2 * Tblk * Bp * E * wb                            # streamed x block
    vmem += 2 * (E + Hp + 2 * Hp) * 4 * Hp * wb               # LSTM weights
    vmem += 2 * 2 * Hp * O * wb                               # FC weights
    vmem += 2 * (2 * 4 * Hp + O) * 4                          # biases (f32)
    vmem += 2 * 2 * (2 * Bp * Hp) * 4                         # h0 / c0 inputs
    vmem += 2 * (Bp * O + 2 * 2 * Bp * Hp) * 4                # outputs
    vmem += (Tblk * Bp * 4 * Hp + 6 * Bp * Hp) * 4            # scratch
    vmem_limit = int(vmem) + (8 << 20)

    kernel = functools.partial(sentiment_rnn_kernel, inv_t=1.0 / T)

    sig, hn, cn = pl.pallas_call(
        kernel,
        out_shape=(
            jax.ShapeDtypeStruct((Bp, O), f32),
            jax.ShapeDtypeStruct((2, Bp, Hp), f32),
            jax.ShapeDtypeStruct((2, Bp, Hp), f32),
        ),
        grid=(n_blk,),
        in_specs=[
            pl.BlockSpec((Tblk, Bp, E), lambda t: (t, 0, 0)),     # x: streamed over time
            pl.BlockSpec((2, Bp, Hp), lambda t: (0, 0, 0)),       # h0
            pl.BlockSpec((2, Bp, Hp), lambda t: (0, 0, 0)),       # c0
            pl.BlockSpec((E, 4 * Hp), lambda t: (0, 0)),          # w_ih_l0
            pl.BlockSpec((1, 4 * Hp), lambda t: (0, 0)),          # b_l0
            pl.BlockSpec((Hp, 4 * Hp), lambda t: (0, 0)),         # w_hh_l0
            pl.BlockSpec((2 * Hp, 4 * Hp), lambda t: (0, 0)),     # [w_ih_l1; w_hh_l1]
            pl.BlockSpec((1, 4 * Hp), lambda t: (0, 0)),          # b_l1
            pl.BlockSpec((2 * Hp, O), lambda t: (0, 0)),          # w_fc
            pl.BlockSpec((1, O), lambda t: (0, 0)),               # b_fc
        ],
        out_specs=(
            pl.BlockSpec((Bp, O), lambda t: (0, 0)),
            pl.BlockSpec((2, Bp, Hp), lambda t: (0, 0, 0)),
            pl.BlockSpec((2, Bp, Hp), lambda t: (0, 0, 0)),
        ),
        scratch_shapes=[
            pltpu.VMEM((Tblk, Bp, 4 * Hp), f32),   # layer-0 input projection for the block
            pltpu.VMEM((Bp, Hp), f32),             # h carry (layer 0)
            pltpu.VMEM((Bp, Hp), f32),             # c carry (layer 0)
            pltpu.VMEM((Bp, Hp), f32),             # h carry (layer 1)
            pltpu.VMEM((Bp, Hp), f32),             # c carry (layer 1)
            pltpu.VMEM((Bp, Hp), f32),             # running max (pooling)
            pltpu.VMEM((Bp, Hp), f32),             # running sum (pooling)
        ],
        compiler_params=pltpu.CompilerParams(
            dimension_semantics=("arbitrary",),    # time recurrence is serial
            vmem_limit_bytes=vmem_limit,
        ),
    )(x, h0p, c0p, wih0, b0, whh0, wcat1, b1, wfc, bfc)

    # drop batch / hidden padding
    return sig[:B], (hn[:, :B, :H], cn[:, :B, :H])


# --------------------------- Pure-JAX reference -------------------------------
def _lstm_layer_ref(x_seq, h0, c0, wih, whh, b):
    H = h0.shape[-1]

    def step(carry, x_t):
        h, c = carry
        g = x_t @ wih + h @ whh + b
        i_g = jax.nn.sigmoid(g[:, 0 * H:1 * H])
        f_g = jax.nn.sigmoid(g[:, 1 * H:2 * H])
        g_g = jnp.tanh(g[:, 2 * H:3 * H])
        o_g = jax.nn.sigmoid(g[:, 3 * H:4 * H])
        c = f_g * c + i_g * g_g
        h = o_g * jnp.tanh(c)
        return (h, c), h

    (hT, cT), out = lax.scan(step, (h0, c0), x_seq)
    return out, hT, cT


def sentiment_rnn_reference(tokens, h0, c0, params):
    emb = jnp.take(params["embedding"], tokens, axis=0)
    x_tbe = jnp.transpose(emb, (1, 0, 2)).astype(jnp.float32)
    seq0, h0n, c0n = _lstm_layer_ref(x_tbe, h0[0], c0[0],
                                     params["w_ih_l0"], params["w_hh_l0"], params["b_l0"])
    seq1, h1n, c1n = _lstm_layer_ref(seq0, h0[1], c0[1],
                                     params["w_ih_l1"], params["w_hh_l1"], params["b_l1"])
    feat = jnp.concatenate([jnp.max(seq1, axis=0), jnp.mean(seq1, axis=0)], axis=1)
    logits = feat @ params["w_fc"] + params["b_fc"]
    return jax.nn.sigmoid(logits), (jnp.stack([h0n, h1n]), jnp.stack([c0n, c1n]))


# ------------------------------- Main ----------------------------------------
def init_params(key, vocab_size, embedding_dim, hidden_dim, output_size):
    ks = jax.random.split(key, 12)
    s = 1.0 / jnp.sqrt(hidden_dim)

    def u(k, shape):
        return jax.random.uniform(k, shape, jnp.float32, -s, s)

    H = hidden_dim
    return {
        "embedding": jax.random.normal(ks[0], (vocab_size, embedding_dim), jnp.float32),
        "w_ih_l0": u(ks[1], (embedding_dim, 4 * H)),
        "w_hh_l0": u(ks[2], (H, 4 * H)),
        "b_l0":    u(ks[3], (1, 4 * H)) + u(ks[4], (1, 4 * H)),   # bias_ih + bias_hh
        "w_ih_l1": u(ks[5], (H, 4 * H)),
        "w_hh_l1": u(ks[6], (H, 4 * H)),
        "b_l1":    u(ks[7], (1, 4 * H)) + u(ks[8], (1, 4 * H)),
        "w_fc":    u(ks[9], (2 * H, output_size)),
        "b_fc":    u(ks[10], (1, output_size)),
    }


if __name__ == "__main__":
    # small, module-consistent shapes
    batch = 2
    seq_len = 8
    vocab_size = 100
    embedding_dim = 32
    hidden_dim = 32
    n_layers = 2
    output_size = 1

    key = jax.random.PRNGKey(0)
    k_param, k_tok = jax.random.split(key)
    params = init_params(k_param, vocab_size, embedding_dim, hidden_dim, output_size)

    tokens = jax.random.randint(k_tok, (batch, seq_len), 0, vocab_size, dtype=jnp.int32)
    h0 = jnp.zeros((n_layers, batch, hidden_dim), jnp.float32)   # init_hidden()
    c0 = jnp.zeros((n_layers, batch, hidden_dim), jnp.float32)

    ref_sig, (ref_h, ref_c) = sentiment_rnn_reference(tokens, h0, c0, params)

    # f32 matmul-input path (tight tolerance)
    sig_out, (h_n, c_n) = sentiment_rnn_forward(tokens, h0, c0, params, use_bf16=False)
    jax.block_until_ready((sig_out, h_n, c_n))
    assert sig_out.shape == (batch, output_size)
    assert h_n.shape == (n_layers, batch, hidden_dim)
    assert c_n.shape == (n_layers, batch, hidden_dim)
    assert jnp.allclose(sig_out, ref_sig, atol=1e-4), "sigmoid output mismatch (f32)"
    assert jnp.allclose(h_n, ref_h, atol=1e-4), "h_n mismatch (f32)"
    assert jnp.allclose(c_n, ref_c, atol=1e-4), "c_n mismatch (f32)"

    # bf16 matmul-input path (v6e/v7x MXU dtype; cell state & gate math stay f32)
    sig_bf, (h_bf, c_bf) = sentiment_rnn_forward(tokens, h0, c0, params, use_bf16=True)
    jax.block_until_ready((sig_bf, h_bf, c_bf))
    assert jnp.allclose(sig_bf, ref_sig, atol=2e-2), "sigmoid output mismatch (bf16)"
    assert jnp.allclose(h_bf, ref_h, atol=2e-2), "h_n mismatch (bf16)"
    assert jnp.allclose(c_bf, ref_c, atol=5e-2), "c_n mismatch (bf16)"

    print("KERNEL_OK")
</pallas_src>

<mosaic_0001>
module attributes {stable_mosaic.version = 11 : i64} {
  func.func @sentiment_rnn_kernel(%arg0: i32, %arg1: memref<8x8x32xf32, #tpu.memory_space<vmem>>, %arg2: memref<2x8x128xf32, #tpu.memory_space<vmem>>, %arg3: memref<2x8x128xf32, #tpu.memory_space<vmem>>, %arg4: memref<32x512xf32, #tpu.memory_space<vmem>>, %arg5: memref<1x512xf32, #tpu.memory_space<vmem>>, %arg6: memref<128x512xf32, #tpu.memory_space<vmem>>, %arg7: memref<256x512xf32, #tpu.memory_space<vmem>>, %arg8: memref<1x512xf32, #tpu.memory_space<vmem>>, %arg9: memref<256x1xf32, #tpu.memory_space<vmem>>, %arg10: memref<1x1xf32, #tpu.memory_space<vmem>>, %arg11: memref<8x1xf32, #tpu.memory_space<vmem>>, %arg12: memref<2x8x128xf32, #tpu.memory_space<vmem>>, %arg13: memref<2x8x128xf32, #tpu.memory_space<vmem>>, %arg14: memref<8x8x512xf32, #tpu.memory_space<vmem>>, %arg15: memref<8x128xf32, #tpu.memory_space<vmem>>, %arg16: memref<8x128xf32, #tpu.memory_space<vmem>>, %arg17: memref<8x128xf32, #tpu.memory_space<vmem>>, %arg18: memref<8x128xf32, #tpu.memory_space<vmem>>, %arg19: memref<8x128xf32, #tpu.memory_space<vmem>>, %arg20: memref<8x128xf32, #tpu.memory_space<vmem>>) attributes {dimension_semantics = [#tpu.dimension_semantics<arbitrary>], iteration_bounds = array<i64: 1>, scalar_prefetch = 0 : i64, scratch_operands = 7 : i64, tpu.core_type = #tpu.core_type<tc>, window_params = [{transform_indices = @transform_0, window_bounds = array<i64: 8, 8, 32>}, {pipeline_mode = #tpu.pipeline_mode<synchronous>, transform_indices = @transform_1, window_bounds = array<i64: 2, 8, 128>}, {pipeline_mode = #tpu.pipeline_mode<synchronous>, transform_indices = @transform_2, window_bounds = array<i64: 2, 8, 128>}, {pipeline_mode = #tpu.pipeline_mode<synchronous>, transform_indices = @transform_3, window_bounds = array<i64: 32, 512>}, {pipeline_mode = #tpu.pipeline_mode<synchronous>, transform_indices = @transform_4, window_bounds = array<i64: 1, 512>}, {pipeline_mode = #tpu.pipeline_mode<synchronous>, transform_indices = @transform_5, window_bounds = array<i64: 128, 512>}, {pipeline_mode = #tpu.pipeline_mode<synchronous>, transform_indices = @transform_6, window_bounds = array<i64: 256, 512>}, {pipeline_mode = #tpu.pipeline_mode<synchronous>, transform_indices = @transform_7, window_bounds = array<i64: 1, 512>}, {pipeline_mode = #tpu.pipeline_mode<synchronous>, transform_indices = @transform_8, window_bounds = array<i64: 256, 1>}, {pipeline_mode = #tpu.pipeline_mode<synchronous>, transform_indices = @transform_9, window_bounds = array<i64: 1, 1>}, {pipeline_mode = #tpu.pipeline_mode<synchronous>, transform_indices = @transform_10, window_bounds = array<i64: 8, 1>}, {pipeline_mode = #tpu.pipeline_mode<synchronous>, transform_indices = @transform_11, window_bounds = array<i64: 2, 8, 128>}, {pipeline_mode = #tpu.pipeline_mode<synchronous>, transform_indices = @transform_12, window_bounds = array<i64: 2, 8, 128>}]} {
    %c0_i32 = arith.constant 0 : i32
    %0 = arith.cmpi eq, %arg0, %c0_i32 : i32
    %1 = arith.extui %0 : i1 to i32
    %c0_i32_0 = arith.constant 0 : i32
    %2 = arith.cmpi ne, %1, %c0_i32_0 : i32
    scf.if %2 {
      %c0_123 = arith.constant 0 : index
      %c0_124 = arith.constant 0 : index
      %c0_125 = arith.constant 0 : index
      %512 = vector.load %arg2[%c0_123, %c0_124, %c0_125] : memref<2x8x128xf32, #tpu.memory_space<vmem>>, vector<1x8x128xf32>
      %513 = vector.shape_cast %512 : vector<1x8x128xf32> to vector<8x128xf32>
      %c0_126 = arith.constant 0 : index
      %c0_127 = arith.constant 0 : index
      %514 = vector.load %arg15[%c0_126, %c0_127] : memref<8x128xf32, #tpu.memory_space<vmem>>, vector<8x128xf32>
      tpu.vector_store %arg15[%c0_126, %c0_127], %513 {strides = array<i32>} : memref<8x128xf32, #tpu.memory_space<vmem>>, vector<8x128xf32>,
      %c0_128 = arith.constant 0 : index
      %c0_129 = arith.constant 0 : index
      %c0_130 = arith.constant 0 : index
      %515 = vector.load %arg3[%c0_128, %c0_129, %c0_130] : memref<2x8x128xf32, #tpu.memory_space<vmem>>, vector<1x8x128xf32>
      %516 = vector.shape_cast %515 : vector<1x8x128xf32> to vector<8x128xf32>
      %c0_131 = arith.constant 0 : index
      %c0_132 = arith.constant 0 : index
      %517 = vector.load %arg16[%c0_131, %c0_132] : memref<8x128xf32, #tpu.memory_space<vmem>>, vector<8x128xf32>
      tpu.vector_store %arg16[%c0_131, %c0_132], %516 {strides = array<i32>} : memref<8x128xf32, #tpu.memory_space<vmem>>, vector<8x128xf32>,
      %c1 = arith.constant 1 : index
      %c0_133 = arith.constant 0 : index
      %c0_134 = arith.constant 0 : index
      %518 = vector.load %arg2[%c1, %c0_133, %c0_134] : memref<2x8x128xf32, #tpu.memory_space<vmem>>, vector<1x8x128xf32>
      %519 = vector.shape_cast %518 : vector<1x8x128xf32> to vector<8x128xf32>
      %c0_135 = arith.constant 0 : index
      %c0_136 = arith.constant 0 : index
      %520 = vector.load %arg17[%c0_135, %c0_136] : memref<8x128xf32, #tpu.memory_space<vmem>>, vector<8x128xf32>
      tpu.vector_store %arg17[%c0_135, %c0_136], %519 {strides = array<i32>} : memref<8x128xf32, #tpu.memory_space<vmem>>, vector<8x128xf32>,
      %c1_137 = arith.constant 1 : index
      %c0_138 = arith.constant 0 : index
      %c0_139 = arith.constant 0 : index
      %521 = vector.load %arg3[%c1_137, %c0_138, %c0_139] : memref<2x8x128xf32, #tpu.memory_space<vmem>>, vector<1x8x128xf32>
      %522 = vector.shape_cast %521 : vector<1x8x128xf32> to vector<8x128xf32>
      %c0_140 = arith.constant 0 : index
      %c0_141 = arith.constant 0 : index
      %523 = vector.load %arg18[%c0_140, %c0_141] : memref<8x128xf32, #tpu.memory_space<vmem>>, vector<8x128xf32>
      tpu.vector_store %arg18[%c0_140, %c0_141], %522 {strides = array<i32>} : memref<8x128xf32, #tpu.memory_space<vmem>>, vector<8x128xf32>,
      %cst_142 = arith.constant 0xFF800000 : f32
      %524 = vector.broadcast %cst_142 : f32 to vector<8x128xf32>
      %c0_143 = arith.constant 0 : index
      %c0_144 = arith.constant 0 : index
      %525 = vector.load %arg19[%c0_143, %c0_144] : memref<8x128xf32, #tpu.memory_space<vmem>>, vector<8x128xf32>
      tpu.vector_store %arg19[%c0_143, %c0_144], %524 {strides = array<i32>} : memref<8x128xf32, #tpu.memory_space<vmem>>, vector<8x128xf32>,
      %cst_145 = arith.constant 0.000000e+00 : f32
      %526 = vector.broadcast %cst_145 : f32 to vector<8x128xf32>
      %c0_146 = arith.constant 0 : index
      %c0_147 = arith.constant 0 : index
      %527 = vector.load %arg20[%c0_146, %c0_147] : memref<8x128xf32, #tpu.memory_space<vmem>>, vector<8x128xf32>
      tpu.vector_store %arg20[%c0_146, %c0_147], %526 {strides = array<i32>} : memref<8x128xf32, #tpu.memory_space<vmem>>, vector<8x128xf32>,
    } else {
    }
    %c0 = arith.constant 0 : index
    %c0_1 = arith.constant 0 : index
    %c0_2 = arith.constant 0 : index
    %3 = vector.load %arg1[%c0, %c0_1, %c0_2] : memref<8x8x32xf32, #tpu.memory_space<vmem>>, vector<8x8x32xf32>
    %4 = vector.shape_cast %3 : vector<8x8x32xf32> to vector<64x32xf32>
    %c0_3 = arith.constant 0 : index
    %c0_4 = arith.constant 0 : index
    %5 = vector.load %arg4[%c0_3, %c0_4] : memref<32x512xf32, #tpu.memory_space<vmem>>, vector<32x512xf32>
    %cst = arith.constant dense<0.000000e+00> : vector<64x512xf32>
    %6 = tpu.matmul %4, %5, %cst {dimension_numbers = #tpu.dot_dimension_numbers<[1], [0], [0], [1], [0, 0, 1, 1], [], []>} : vector<64x32xf32>, vector<32x512xf32>, vector<64x512xf32> -> vector<64x512xf32>
    %c0_5 = arith.constant 0 : index
    %c0_6 = arith.constant 0 : index
    %7 = vector.load %arg5[%c0_5, %c0_6] : memref<1x512xf32, #tpu.memory_space<vmem>>, vector<1x512xf32>
    %8 = vector.broadcast %7 : vector<1x512xf32> to vector<64x512xf32>
    %9 = arith.addf %6, %8 : vector<64x512xf32>
    %10 = vector.shape_cast %9 : vector<64x512xf32> to vector<8x8x512xf32>
    %c0_7 = arith.constant 0 : index
    %c0_8 = arith.constant 0 : index
    %c0_9 = arith.constant 0 : index
    %11 = vector.load %arg14[%c0_7, %c0_8, %c0_9] : memref<8x8x512xf32, #tpu.memory_space<vmem>>, vector<8x8x512xf32>
    tpu.vector_store %arg14[%c0_7, %c0_8, %c0_9], %10 {strides = array<i32>} : memref<8x8x512xf32, #tpu.memory_space<vmem>>, vector<8x8x512xf32>,
    %c0_10 = arith.constant 0 : index
    %c0_11 = arith.constant 0 : index
    %12 = vector.load %arg6[%c0_10, %c0_11] : memref<128x512xf32, #tpu.memory_space<vmem>>, vector<128x512xf32>
    %c0_12 = arith.constant 0 : index
    %c0_13 = arith.constant 0 : index
    %13 = vector.load %arg7[%c0_12, %c0_13] : memref<256x512xf32, #tpu.memory_space<vmem>>, vector<256x512xf32>
    %c0_14 = arith.constant 0 : index
    %c0_15 = arith.constant 0 : index
    %14 = vector.load %arg8[%c0_14, %c0_15] : memref<1x512xf32, #tpu.memory_space<vmem>>, vector<1x512xf32>
    %15 = vector.shape_cast %14 : vector<1x512xf32> to vector<1x512xf32>
    %16 = vector.broadcast %15 : vector<1x512xf32> to vector<8x512xf32>
    %c0_16 = arith.constant 0 : index
    %c0_17 = arith.constant 0 : index
    %17 = vector.load %arg15[%c0_16, %c0_17] : memref<8x128xf32, #tpu.memory_space<vmem>>, vector<8x128xf32>
    %c0_18 = arith.constant 0 : index
    %c0_19 = arith.constant 0 : index
    %18 = vector.load %arg16[%c0_18, %c0_19] : memref<8x128xf32, #tpu.memory_space<vmem>>, vector<8x128xf32>
    %c0_20 = arith.constant 0 : index
    %c0_21 = arith.constant 0 : index
    %19 = vector.load %arg17[%c0_20, %c0_21] : memref<8x128xf32, #tpu.memory_space<vmem>>, vector<8x128xf32>
    %c0_22 = arith.constant 0 : index
    %c0_23 = arith.constant 0 : index
    %20 = vector.load %arg18[%c0_22, %c0_23] : memref<8x128xf32, #tpu.memory_space<vmem>>, vector<8x128xf32>
    %c0_24 = arith.constant 0 : index
    %c0_25 = arith.constant 0 : index
    %21 = vector.load %arg19[%c0_24, %c0_25] : memref<8x128xf32, #tpu.memory_space<vmem>>, vector<8x128xf32>
    %c0_26 = arith.constant 0 : index
    %c0_27 = arith.constant 0 : index
    %22 = vector.load %arg20[%c0_26, %c0_27] : memref<8x128xf32, #tpu.memory_space<vmem>>, vector<8x128xf32>
    %c0_i32_28 = arith.constant 0 : i32
    %23 = arith.index_cast %c0_i32_28 : i32 to index
    %c0_29 = arith.constant 0 : index
    %c0_30 = arith.constant 0 : index
    %24 = vector.load %arg14[%23, %c0_29, %c0_30] : memref<8x8x512xf32, #tpu.memory_space<vmem>>, vector<1x8x512xf32>
    %25 = vector.shape_cast %24 : vector<1x8x512xf32> to vector<8x512xf32>
    %cst_31 = arith.constant dense<0.000000e+00> : vector<8x512xf32>
    %26 = tpu.matmul %17, %12, %cst_31 {dimension_numbers = #tpu.dot_dimension_numbers<[1], [0], [0], [1], [0, 0, 1, 1], [], []>} : vector<8x128xf32>, vector<128x512xf32>, vector<8x512xf32> -> vector<8x512xf32>
    %27 = arith.addf %25, %26 : vector<8x512xf32>
    %28 = vector.extract_strided_slice %27 {offsets = [0, 0], sizes = [8, 128], strides = [1, 1]} : vector<8x512xf32> to vector<8x128xf32>
    %29 = arith.negf %28 : vector<8x128xf32>
    %30 = math.exp %29 : vector<8x128xf32>
    %cst_32 = arith.constant 1.000000e+00 : f32
    %31 = vector.broadcast %cst_32 : f32 to vector<8x128xf32>
    %32 = arith.addf %31, %30 : vector<8x128xf32>
    %33 = arith.divf %31, %32 : vector<8x128xf32>
    %34 = vector.extract_strided_slice %27 {offsets = [0, 128], sizes = [8, 128], strides = [1, 1]} : vector<8x512xf32> to vector<8x128xf32>
    %35 = arith.negf %34 : vector<8x128xf32>
    %36 = math.exp %35 : vector<8x128xf32>
    %cst_33 = arith.constant 1.000000e+00 : f32
    %37 = vector.broadcast %cst_33 : f32 to vector<8x128xf32>
    %38 = arith.addf %37, %36 : vector<8x128xf32>
    %39 = arith.divf %37, %38 : vector<8x128xf32>
    %40 = vector.extract_strided_slice %27 {offsets = [0, 256], sizes = [8, 128], strides = [1, 1]} : vector<8x512xf32> to vector<8x128xf32>
    %41 = math.tanh %40 : vector<8x128xf32>
    %42 = vector.extract_strided_slice %27 {offsets = [0, 384], sizes = [8, 128], strides = [1, 1]} : vector<8x512xf32> to vector<8x128xf32>
    %43 = arith.negf %42 : vector<8x128xf32>
    %44 = math.exp %43 : vector<8x128xf32>
    %cst_34 = arith.constant 1.000000e+00 : f32
    %45 = vector.broadcast %cst_34 : f32 to vector<8x128xf32>
    %46 = arith.addf %45, %44 : vector<8x128xf32>
    %47 = arith.divf %45, %46 : vector<8x128xf32>
    %48 = arith.mulf %39, %18 : vector<8x128xf32>
    %49 = arith.mulf %33, %41 : vector<8x128xf32>
    %50 = arith.addf %48, %49 : vector<8x128xf32>
    %51 = math.tanh %50 : vector<8x128xf32>
    %52 = arith.mulf %47, %51 : vector<8x128xf32>
    %53 = tpu.concatenate %52, %19 in 1 : vector<8x128xf32>, vector<8x128xf32> -> vector<8x256xf32>
    %cst_35 = arith.constant dense<0.000000e+00> : vector<8x512xf32>
    %54 = tpu.matmul %53, %13, %cst_35 {dimension_numbers = #tpu.dot_dimension_numbers<[1], [0], [0], [1], [0, 0, 1, 1], [], []>} : vector<8x256xf32>, vector<256x512xf32>, vector<8x512xf32> -> vector<8x512xf32>
    %55 = arith.addf %54, %16 : vector<8x512xf32>
    %56 = vector.extract_strided_slice %55 {offsets = [0, 0], sizes = [8, 128], strides = [1, 1]} : vector<8x512xf32> to vector<8x128xf32>
    %57 = arith.negf %56 : vector<8x128xf32>
    %58 = math.exp %57 : vector<8x128xf32>
    %cst_36 = arith.constant 1.000000e+00 : f32
    %59 = vector.broadcast %cst_36 : f32 to vector<8x128xf32>
    %60 = arith.addf %59, %58 : vector<8x128xf32>
    %61 = arith.divf %59, %60 : vector<8x128xf32>
    %62 = vector.extract_strided_slice %55 {offsets = [0, 128], sizes = [8, 128], strides = [1, 1]} : vector<8x512xf32> to vector<8x128xf32>
    %63 = arith.negf %62 : vector<8x128xf32>
    %64 = math.exp %63 : vector<8x128xf32>
    %cst_37 = arith.constant 1.000000e+00 : f32
    %65 = vector.broadcast %cst_37 : f32 to vector<8x128xf32>
    %66 = arith.addf %65, %64 : vector<8x128xf32>
    %67 = arith.divf %65, %66 : vector<8x128xf32>
    %68 = vector.extract_strided_slice %55 {offsets = [0, 256], sizes = [8, 128], strides = [1, 1]} : vector<8x512xf32> to vector<8x128xf32>
    %69 = math.tanh %68 : vector<8x128xf32>
    %70 = vector.extract_strided_slice %55 {offsets = [0, 384], sizes = [8, 128], strides = [1, 1]} : vector<8x512xf32> to vector<8x128xf32>
    %71 = arith.negf %70 : vector<8x128xf32>
    %72 = math.exp %71 : vector<8x128xf32>
    %cst_38 = arith.constant 1.000000e+00 : f32
    %73 = vector.broadcast %cst_38 : f32 to vector<8x128xf32>
    %74 = arith.addf %73, %72 : vector<8x128xf32>
    %75 = arith.divf %73, %74 : vector<8x128xf32>
    %76 = arith.mulf %67, %20 : vector<8x128xf32>
    %77 = arith.mulf %61, %69 : vector<8x128xf32>
    %78 = arith.addf %76, %77 : vector<8x128xf32>
    %79 = math.tanh %78 : vector<8x128xf32>
    %80 = arith.mulf %75, %79 : vector<8x128xf32>
    %81 = arith.maximumf %21, %80 : vector<8x128xf32>
    %82 = arith.addf %22, %80 : vector<8x128xf32>
    %c1_i32 = arith.constant 1 : i32
    %83 = arith.index_cast %c1_i32 : i32 to index
    %c0_39 = arith.constant 0 : index
    %c0_40 = arith.constant 0 : index
    %84 = vector.load %arg14[%83, %c0_39, %c0_40] : memref<8x8x512xf32, #tpu.memory_space<vmem>>, vector<1x8x512xf32>
    %85 = vector.shape_cast %84 : vector<1x8x512xf32> to vector<8x512xf32>
    %cst_41 = arith.constant dense<0.000000e+00> : vector<8x512xf32>
    %86 = tpu.matmul %52, %12, %cst_41 {dimension_numbers = #tpu.dot_dimension_numbers<[1], [0], [0], [1], [0, 0, 1, 1], [], []>} : vector<8x128xf32>, vector<128x512xf32>, vector<8x512xf32> -> vector<8x512xf32>
    %87 = arith.addf %85, %86 : vector<8x512xf32>
    %88 = vector.extract_strided_slice %87 {offsets = [0, 0], sizes = [8, 128], strides = [1, 1]} : vector<8x512xf32> to vector<8x128xf32>
    %89 = arith.negf %88 : vector<8x128xf32>
    %90 = math.exp %89 : vector<8x128xf32>
    %cst_42 = arith.constant 1.000000e+00 : f32
    %91 = vector.broadcast %cst_42 : f32 to vector<8x128xf32>
    %92 = arith.addf %91, %90 : vector<8x128xf32>
    %93 = arith.divf %91, %92 : vector<8x128xf32>
    %94 = vector.extract_strided_slice %87 {offsets = [0, 128], sizes = [8, 128], strides = [1, 1]} : vector<8x512xf32> to vector<8x128xf32>
    %95 = arith.negf %94 : vector<8x128xf32>
    %96 = math.exp %95 : vector<8x128xf32>
    %cst_43 = arith.constant 1.000000e+00 : f32
    %97 = vector.broadcast %cst_43 : f32 to vector<8x128xf32>
    %98 = arith.addf %97, %96 : vector<8x128xf32>
    %99 = arith.divf %97, %98 : vector<8x128xf32>
    %100 = vector.extract_strided_slice %87 {offsets = [0, 256], sizes = [8, 128], strides = [1, 1]} : vector<8x512xf32> to vector<8x128xf32>
    %101 = math.tanh %100 : vector<8x128xf32>
    %102 = vector.extract_strided_slice %87 {offsets = [0, 384], sizes = [8, 128], strides = [1, 1]} : vector<8x512xf32> to vector<8x128xf32>
    %103 = arith.negf %102 : vector<8x128xf32>
    %104 = math.exp %103 : vector<8x128xf32>
    %cst_44 = arith.constant 1.000000e+00 : f32
    %105 = vector.broadcast %cst_44 : f32 to vector<8x128xf32>
    %106 = arith.addf %105, %104 : vector<8x128xf32>
    %107 = arith.divf %105, %106 : vector<8x128xf32>
    %108 = arith.mulf %99, %50 : vector<8x128xf32>
    %109 = arith.mulf %93, %101 : vector<8x128xf32>
    %110 = arith.addf %108, %109 : vector<8x128xf32>
    %111 = math.tanh %110 : vector<8x128xf32>
    %112 = arith.mulf %107, %111 : vector<8x128xf32>
    %113 = tpu.concatenate %112, %80 in 1 : vector<8x128xf32>, vector<8x128xf32> -> vector<8x256xf32>
    %cst_45 = arith.constant dense<0.000000e+00> : vector<8x512xf32>
    %114 = tpu.matmul %113, %13, %cst_45 {dimension_numbers = #tpu.dot_dimension_numbers<[1], [0], [0], [1], [0, 0, 1, 1], [], []>} : vector<8x256xf32>, vector<256x512xf32>, vector<8x512xf32> -> vector<8x512xf32>
    %115 = arith.addf %114, %16 : vector<8x512xf32>
    %116 = vector.extract_strided_slice %115 {offsets = [0, 0], sizes = [8, 128], strides = [1, 1]} : vector<8x512xf32> to vector<8x128xf32>
    %117 = arith.negf %116 : vector<8x128xf32>
    %118 = math.exp %117 : vector<8x128xf32>
    %cst_46 = arith.constant 1.000000e+00 : f32
    %119 = vector.broadcast %cst_46 : f32 to vector<8x128xf32>
    %120 = arith.addf %119, %118 : vector<8x128xf32>
    %121 = arith.divf %119, %120 : vector<8x128xf32>
    %122 = vector.extract_strided_slice %115 {offsets = [0, 128], sizes = [8, 128], strides = [1, 1]} : vector<8x512xf32> to vector<8x128xf32>
    %123 = arith.negf %122 : vector<8x128xf32>
    %124 = math.exp %123 : vector<8x128xf32>
    %cst_47 = arith.constant 1.000000e+00 : f32
    %125 = vector.broadcast %cst_47 : f32 to vector<8x128xf32>
    %126 = arith.addf %125, %124 : vector<8x128xf32>
    %127 = arith.divf %125, %126 : vector<8x128xf32>
    %128 = vector.extract_strided_slice %115 {offsets = [0, 256], sizes = [8, 128], strides = [1, 1]} : vector<8x512xf32> to vector<8x128xf32>
    %129 = math.tanh %128 : vector<8x128xf32>
    %130 = vector.extract_strided_slice %115 {offsets = [0, 384], sizes = [8, 128], strides = [1, 1]} : vector<8x512xf32> to vector<8x128xf32>
    %131 = arith.negf %130 : vector<8x128xf32>
    %132 = math.exp %131 : vector<8x128xf32>
    %cst_48 = arith.constant 1.000000e+00 : f32
    %133 = vector.broadcast %cst_48 : f32 to vector<8x128xf32>
    %134 = arith.addf %133, %132 : vector<8x128xf32>
    %135 = arith.divf %133, %134 : vector<8x128xf32>
    %136 = arith.mulf %127, %78 : vector<8x128xf32>
    %137 = arith.mulf %121, %129 : vector<8x128xf32>
    %138 = arith.addf %136, %137 : vector<8x128xf32>
    %139 = math.tanh %138 : vector<8x128xf32>
    %140 = arith.mulf %135, %139 : vector<8x128xf32>
    %141 = arith.maximumf %81, %140 : vector<8x128xf32>
    %142 = arith.addf %82, %140 : vector<8x128xf32>
    %c2_i32 = arith.constant 2 : i32
    %143 = arith.index_cast %c2_i32 : i32 to index
    %c0_49 = arith.constant 0 : index
    %c0_50 = arith.constant 0 : index
    %144 = vector.load %arg14[%143, %c0_49, %c0_50] : memref<8x8x512xf32, #tpu.memory_space<vmem>>, vector<1x8x512xf32>
    %145 = vector.shape_cast %144 : vector<1x8x512xf32> to vector<8x512xf32>
    %cst_51 = arith.constant dense<0.000000e+00> : vector<8x512xf32>
    %146 = tpu.matmul %112, %12, %cst_51 {dimension_numbers = #tpu.dot_dimension_numbers<[1], [0], [0], [1], [0, 0, 1, 1], [], []>} : vector<8x128xf32>, vector<128x512xf32>, vector<8x512xf32> -> vector<8x512xf32>
    %147 = arith.addf %145, %146 : vector<8x512xf32>
    %148 = vector.extract_strided_slice %147 {offsets = [0, 0], sizes = [8, 128], strides = [1, 1]} : vector<8x512xf32> to vector<8x128xf32>
    %149 = arith.negf %148 : vector<8x128xf32>
    %150 = math.exp %149 : vector<8x128xf32>
    %cst_52 = arith.constant 1.000000e+00 : f32
    %151 = vector.broadcast %cst_52 : f32 to vector<8x128xf32>
    %152 = arith.addf %151, %150 : vector<8x128xf32>
    %153 = arith.divf %151, %152 : vector<8x128xf32>
    %154 = vector.extract_strided_slice %147 {offsets = [0, 128], sizes = [8, 128], strides = [1, 1]} : vector<8x512xf32> to vector<8x128xf32>
    %155 = arith.negf %154 : vector<8x128xf32>
    %156 = math.exp %155 : vector<8x128xf32>
    %cst_53 = arith.constant 1.000000e+00 : f32
    %157 = vector.broadcast %cst_53 : f32 to vector<8x128xf32>
    %158 = arith.addf %157, %156 : vector<8x128xf32>
    %159 = arith.divf %157, %158 : vector<8x128xf32>
    %160 = vector.extract_strided_slice %147 {offsets = [0, 256], sizes = [8, 128], strides = [1, 1]} : vector<8x512xf32> to vector<8x128xf32>
    %161 = math.tanh %160 : vector<8x128xf32>
    %162 = vector.extract_strided_slice %147 {offsets = [0, 384], sizes = [8, 128], strides = [1, 1]} : vector<8x512xf32> to vector<8x128xf32>
    %163 = arith.negf %162 : vector<8x128xf32>
    %164 = math.exp %163 : vector<8x128xf32>
    %cst_54 = arith.constant 1.000000e+00 : f32
    %165 = vector.broadcast %cst_54 : f32 to vector<8x128xf32>
    %166 = arith.addf %165, %164 : vector<8x128xf32>
    %167 = arith.divf %165, %166 : vector<8x128xf32>
    %168 = arith.mulf %159, %110 : vector<8x128xf32>
    %169 = arith.mulf %153, %161 : vector<8x128xf32>
    %170 = arith.addf %168, %169 : vector<8x128xf32>
    %171 = math.tanh %170 : vector<8x128xf32>
    %172 = arith.mulf %167, %171 : vector<8x128xf32>
    %173 = tpu.concatenate %172, %140 in 1 : vector<8x128xf32>, vector<8x128xf32> -> vector<8x256xf32>
    %cst_55 = arith.constant dense<0.000000e+00> : vector<8x512xf32>
    %174 = tpu.matmul %173, %13, %cst_55 {dimension_numbers = #tpu.dot_dimension_numbers<[1], [0], [0], [1], [0, 0, 1, 1], [], []>} : vector<8x256xf32>, vector<256x512xf32>, vector<8x512xf32> -> vector<8x512xf32>
    %175 = arith.addf %174, %16 : vector<8x512xf32>
    %176 = vector.extract_strided_slice %175 {offsets = [0, 0], sizes = [8, 128], strides = [1, 1]} : vector<8x512xf32> to vector<8x128xf32>
    %177 = arith.negf %176 : vector<8x128xf32>
    %178 = math.exp %177 : vector<8x128xf32>
    %cst_56 = arith.constant 1.000000e+00 : f32
    %179 = vector.broadcast %cst_56 : f32 to vector<8x128xf32>
    %180 = arith.addf %179, %178 : vector<8x128xf32>
    %181 = arith.divf %179, %180 : vector<8x128xf32>
    %182 = vector.extract_strided_slice %175 {offsets = [0, 128], sizes = [8, 128], strides = [1, 1]} : vector<8x512xf32> to vector<8x128xf32>
    %183 = arith.negf %182 : vector<8x128xf32>
    %184 = math.exp %183 : vector<8x128xf32>
    %cst_57 = arith.constant 1.000000e+00 : f32
    %185 = vector.broadcast %cst_57 : f32 to vector<8x128xf32>
    %186 = arith.addf %185, %184 : vector<8x128xf32>
    %187 = arith.divf %185, %186 : vector<8x128xf32>
    %188 = vector.extract_strided_slice %175 {offsets = [0, 256], sizes = [8, 128], strides = [1, 1]} : vector<8x512xf32> to vector<8x128xf32>
    %189 = math.tanh %188 : vector<8x128xf32>
    %190 = vector.extract_strided_slice %175 {offsets = [0, 384], sizes = [8, 128], strides = [1, 1]} : vector<8x512xf32> to vector<8x128xf32>
    %191 = arith.negf %190 : vector<8x128xf32>
    %192 = math.exp %191 : vector<8x128xf32>
    %cst_58 = arith.constant 1.000000e+00 : f32
    %193 = vector.broadcast %cst_58 : f32 to vector<8x128xf32>
    %194 = arith.addf %193, %192 : vector<8x128xf32>
    %195 = arith.divf %193, %194 : vector<8x128xf32>
    %196 = arith.mulf %187, %138 : vector<8x128xf32>
    %197 = arith.mulf %181, %189 : vector<8x128xf32>
    %198 = arith.addf %196, %197 : vector<8x128xf32>
    %199 = math.tanh %198 : vector<8x128xf32>
    %200 = arith.mulf %195, %199 : vector<8x128xf32>
    %201 = arith.maximumf %141, %200 : vector<8x128xf32>
    %202 = arith.addf %142, %200 : vector<8x128xf32>
    %c3_i32 = arith.constant 3 : i32
    %203 = arith.index_cast %c3_i32 : i32 to index
    %c0_59 = arith.constant 0 : index
    %c0_60 = arith.constant 0 : index
    %204 = vector.load %arg14[%203, %c0_59, %c0_60] : memref<8x8x512xf32, #tpu.memory_space<vmem>>, vector<1x8x512xf32>
    %205 = vector.shape_cast %204 : vector<1x8x512xf32> to vector<8x512xf32>
    %cst_61 = arith.constant dense<0.000000e+00> : vector<8x512xf32>
    %206 = tpu.matmul %172, %12, %cst_61 {dimension_numbers = #tpu.dot_dimension_numbers<[1], [0], [0], [1], [0, 0, 1, 1], [], []>} : vector<8x128xf32>, vector<128x512xf32>, vector<8x512xf32> -> vector<8x512xf32>
    %207 = arith.addf %205, %206 : vector<8x512xf32>
    %208 = vector.extract_strided_slice %207 {offsets = [0, 0], sizes = [8, 128], strides = [1, 1]} : vector<8x512xf32> to vector<8x128xf32>
    %209 = arith.negf %208 : vector<8x128xf32>
    %210 = math.exp %209 : vector<8x128xf32>
    %cst_62 = arith.constant 1.000000e+00 : f32
    %211 = vector.broadcast %cst_62 : f32 to vector<8x128xf32>
    %212 = arith.addf %211, %210 : vector<8x128xf32>
    %213 = arith.divf %211, %212 : vector<8x128xf32>
    %214 = vector.extract_strided_slice %207 {offsets = [0, 128], sizes = [8, 128], strides = [1, 1]} : vector<8x512xf32> to vector<8x128xf32>
    %215 = arith.negf %214 : vector<8x128xf32>
    %216 = math.exp %215 : vector<8x128xf32>
    %cst_63 = arith.constant 1.000000e+00 : f32
    %217 = vector.broadcast %cst_63 : f32 to vector<8x128xf32>
    %218 = arith.addf %217, %216 : vector<8x128xf32>
    %219 = arith.divf %217, %218 : vector<8x128xf32>
    %220 = vector.extract_strided_slice %207 {offsets = [0, 256], sizes = [8, 128], strides = [1, 1]} : vector<8x512xf32> to vector<8x128xf32>
    %221 = math.tanh %220 : vector<8x128xf32>
    %222 = vector.extract_strided_slice %207 {offsets = [0, 384], sizes = [8, 128], strides = [1, 1]} : vector<8x512xf32> to vector<8x128xf32>
    %223 = arith.negf %222 : vector<8x128xf32>
    %224 = math.exp %223 : vector<8x128xf32>
    %cst_64 = arith.constant 1.000000e+00 : f32
    %225 = vector.broadcast %cst_64 : f32 to vector<8x128xf32>
    %226 = arith.addf %225, %224 : vector<8x128xf32>
    %227 = arith.divf %225, %226 : vector<8x128xf32>
    %228 = arith.mulf %219, %170 : vector<8x128xf32>
    %229 = arith.mulf %213, %221 : vector<8x128xf32>
    %230 = arith.addf %228, %229 : vector<8x128xf32>
    %231 = math.tanh %230 : vector<8x128xf32>
    %232 = arith.mulf %227, %231 : vector<8x128xf32>
    %233 = tpu.concatenate %232, %200 in 1 : vector<8x128xf32>, vector<8x128xf32> -> vector<8x256xf32>
    %cst_65 = arith.constant dense<0.000000e+00> : vector<8x512xf32>
    %234 = tpu.matmul %233, %13, %cst_65 {dimension_numbers = #tpu.dot_dimension_numbers<[1], [0], [0], [1], [0, 0, 1, 1], [], []>} : vector<8x256xf32>, vector<256x512xf32>, vector<8x512xf32> -> vector<8x512xf32>
    %235 = arith.addf %234, %16 : vector<8x512xf32>
    %236 = vector.extract_strided_slice %235 {offsets = [0, 0], sizes = [8, 128], strides = [1, 1]} : vector<8x512xf32> to vector<8x128xf32>
    %237 = arith.negf %236 : vector<8x128xf32>
    %238 = math.exp %237 : vector<8x128xf32>
    %cst_66 = arith.constant 1.000000e+00 : f32
    %239 = vector.broadcast %cst_66 : f32 to vector<8x128xf32>
    %240 = arith.addf %239, %238 : vector<8x128xf32>
    %241 = arith.divf %239, %240 : vector<8x128xf32>
    %242 = vector.extract_strided_slice %235 {offsets = [0, 128], sizes = [8, 128], strides = [1, 1]} : vector<8x512xf32> to vector<8x128xf32>
    %243 = arith.negf %242 : vector<8x128xf32>
    %244 = math.exp %243 : vector<8x128xf32>
    %cst_67 = arith.constant 1.000000e+00 : f32
    %245 = vector.broadcast %cst_67 : f32 to vector<8x128xf32>
    %246 = arith.addf %245, %244 : vector<8x128xf32>
    %247 = arith.divf %245, %246 : vector<8x128xf32>
    %248 = vector.extract_strided_slice %235 {offsets = [0, 256], sizes = [8, 128], strides = [1, 1]} : vector<8x512xf32> to vector<8x128xf32>
    %249 = math.tanh %248 : vector<8x128xf32>
    %250 = vector.extract_strided_slice %235 {offsets = [0, 384], sizes = [8, 128], strides = [1, 1]} : vector<8x512xf32> to vector<8x128xf32>
    %251 = arith.negf %250 : vector<8x128xf32>
    %252 = math.exp %251 : vector<8x128xf32>
    %cst_68 = arith.constant 1.000000e+00 : f32
    %253 = vector.broadcast %cst_68 : f32 to vector<8x128xf32>
    %254 = arith.addf %253, %252 : vector<8x128xf32>
    %255 = arith.divf %253, %254 : vector<8x128xf32>
    %256 = arith.mulf %247, %198 : vector<8x128xf32>
    %257 = arith.mulf %241, %249 : vector<8x128xf32>
    %258 = arith.addf %256, %257 : vector<8x128xf32>
    %259 = math.tanh %258 : vector<8x128xf32>
    %260 = arith.mulf %255, %259 : vector<8x128xf32>
    %261 = arith.maximumf %201, %260 : vector<8x128xf32>
    %262 = arith.addf %202, %260 : vector<8x128xf32>
    %c4_i32 = arith.constant 4 : i32
    %263 = arith.index_cast %c4_i32 : i32 to index
    %c0_69 = arith.constant 0 : index
    %c0_70 = arith.constant 0 : index
    %264 = vector.load %arg14[%263, %c0_69, %c0_70] : memref<8x8x512xf32, #tpu.memory_space<vmem>>, vector<1x8x512xf32>
    %265 = vector.shape_cast %264 : vector<1x8x512xf32> to vector<8x512xf32>
    %cst_71 = arith.constant dense<0.000000e+00> : vector<8x512xf32>
    %266 = tpu.matmul %232, %12, %cst_71 {dimension_numbers = #tpu.dot_dimension_numbers<[1], [0], [0], [1], [0, 0, 1, 1], [], []>} : vector<8x128xf32>, vector<128x512xf32>, vector<8x512xf32> -> vector<8x512xf32>
    %267 = arith.addf %265, %266 : vector<8x512xf32>
    %268 = vector.extract_strided_slice %267 {offsets = [0, 0], sizes = [8, 128], strides = [1, 1]} : vector<8x512xf32> to vector<8x128xf32>
    %269 = arith.negf %268 : vector<8x128xf32>
    %270 = math.exp %269 : vector<8x128xf32>
    %cst_72 = arith.constant 1.000000e+00 : f32
    %271 = vector.broadcast %cst_72 : f32 to vector<8x128xf32>
    %272 = arith.addf %271, %270 : vector<8x128xf32>
    %273 = arith.divf %271, %272 : vector<8x128xf32>
    %274 = vector.extract_strided_slice %267 {offsets = [0, 128], sizes = [8, 128], strides = [1, 1]} : vector<8x512xf32> to vector<8x128xf32>
    %275 = arith.negf %274 : vector<8x128xf32>
    %276 = math.exp %275 : vector<8x128xf32>
    %cst_73 = arith.constant 1.000000e+00 : f32
    %277 = vector.broadcast %cst_73 : f32 to vector<8x128xf32>
    %278 = arith.addf %277, %276 : vector<8x128xf32>
    %279 = arith.divf %277, %278 : vector<8x128xf32>
    %280 = vector.extract_strided_slice %267 {offsets = [0, 256], sizes = [8, 128], strides = [1, 1]} : vector<8x512xf32> to vector<8x128xf32>
    %281 = math.tanh %280 : vector<8x128xf32>
    %282 = vector.extract_strided_slice %267 {offsets = [0, 384], sizes = [8, 128], strides = [1, 1]} : vector<8x512xf32> to vector<8x128xf32>
    %283 = arith.negf %282 : vector<8x128xf32>
    %284 = math.exp %283 : vector<8x128xf32>
    %cst_74 = arith.constant 1.000000e+00 : f32
    %285 = vector.broadcast %cst_74 : f32 to vector<8x128xf32>
    %286 = arith.addf %285, %284 : vector<8x128xf32>
    %287 = arith.divf %285, %286 : vector<8x128xf32>
    %288 = arith.mulf %279, %230 : vector<8x128xf32>
    %289 = arith.mulf %273, %281 : vector<8x128xf32>
    %290 = arith.addf %288, %289 : vector<8x128xf32>
    %291 = math.tanh %290 : vector<8x128xf32>
    %292 = arith.mulf %287, %291 : vector<8x128xf32>
    %293 = tpu.concatenate %292, %260 in 1 : vector<8x128xf32>, vector<8x128xf32> -> vector<8x256xf32>
    %cst_75 = arith.constant dense<0.000000e+00> : vector<8x512xf32>
    %294 = tpu.matmul %293, %13, %cst_75 {dimension_numbers = #tpu.dot_dimension_numbers<[1], [0], [0], [1], [0, 0, 1, 1], [], []>} : vector<8x256xf32>, vector<256x512xf32>, vector<8x512xf32> -> vector<8x512xf32>
    %295 = arith.addf %294, %16 : vector<8x512xf32>
    %296 = vector.extract_strided_slice %295 {offsets = [0, 0], sizes = [8, 128], strides = [1, 1]} : vector<8x512xf32> to vector<8x128xf32>
    %297 = arith.negf %296 : vector<8x128xf32>
    %298 = math.exp %297 : vector<8x128xf32>
    %cst_76 = arith.constant 1.000000e+00 : f32
    %299 = vector.broadcast %cst_76 : f32 to vector<8x128xf32>
    %300 = arith.addf %299, %298 : vector<8x128xf32>
    %301 = arith.divf %299, %300 : vector<8x128xf32>
    %302 = vector.extract_strided_slice %295 {offsets = [0, 128], sizes = [8, 128], strides = [1, 1]} : vector<8x512xf32> to vector<8x128xf32>
    %303 = arith.negf %302 : vector<8x128xf32>
    %304 = math.exp %303 : vector<8x128xf32>
    %cst_77 = arith.constant 1.000000e+00 : f32
    %305 = vector.broadcast %cst_77 : f32 to vector<8x128xf32>
    %306 = arith.addf %305, %304 : vector<8x128xf32>
    %307 = arith.divf %305, %306 : vector<8x128xf32>
    %308 = vector.extract_strided_slice %295 {offsets = [0, 256], sizes = [8, 128], strides = [1, 1]} : vector<8x512xf32> to vector<8x128xf32>
    %309 = math.tanh %308 : vector<8x128xf32>
    %310 = vector.extract_strided_slice %295 {offsets = [0, 384], sizes = [8, 128], strides = [1, 1]} : vector<8x512xf32> to vector<8x128xf32>
    %311 = arith.negf %310 : vector<8x128xf32>
    %312 = math.exp %311 : vector<8x128xf32>
    %cst_78 = arith.constant 1.000000e+00 : f32
    %313 = vector.broadcast %cst_78 : f32 to vector<8x128xf32>
    %314 = arith.addf %313, %312 : vector<8x128xf32>
    %315 = arith.divf %313, %314 : vector<8x128xf32>
    %316 = arith.mulf %307, %258 : vector<8x128xf32>
    %317 = arith.mulf %301, %309 : vector<8x128xf32>
    %318 = arith.addf %316, %317 : vector<8x128xf32>
    %319 = math.tanh %318 : vector<8x128xf32>
    %320 = arith.mulf %315, %319 : vector<8x128xf32>
    %321 = arith.maximumf %261, %320 : vector<8x128xf32>
    %322 = arith.addf %262, %320 : vector<8x128xf32>
    %c5_i32 = arith.constant 5 : i32
    %323 = arith.index_cast %c5_i32 : i32 to index
    %c0_79 = arith.constant 0 : index
    %c0_80 = arith.constant 0 : index
    %324 = vector.load %arg14[%323, %c0_79, %c0_80] : memref<8x8x512xf32, #tpu.memory_space<vmem>>, vector<1x8x512xf32>
    %325 = vector.shape_cast %324 : vector<1x8x512xf32> to vector<8x512xf32>
    %cst_81 = arith.constant dense<0.000000e+00> : vector<8x512xf32>
    %326 = tpu.matmul %292, %12, %cst_81 {dimension_numbers = #tpu.dot_dimension_numbers<[1], [0], [0], [1], [0, 0, 1, 1], [], []>} : vector<8x128xf32>, vector<128x512xf32>, vector<8x512xf32> -> vector<8x512xf32>
    %327 = arith.addf %325, %326 : vector<8x512xf32>
    %328 = vector.extract_strided_slice %327 {offsets = [0, 0], sizes = [8, 128], strides = [1, 1]} : vector<8x512xf32> to vector<8x128xf32>
    %329 = arith.negf %328 : vector<8x128xf32>
    %330 = math.exp %329 : vector<8x128xf32>
    %cst_82 = arith.constant 1.000000e+00 : f32
    %331 = vector.broadcast %cst_82 : f32 to vector<8x128xf32>
    %332 = arith.addf %331, %330 : vector<8x128xf32>
    %333 = arith.divf %331, %332 : vector<8x128xf32>
    %334 = vector.extract_strided_slice %327 {offsets = [0, 128], sizes = [8, 128], strides = [1, 1]} : vector<8x512xf32> to vector<8x128xf32>
    %335 = arith.negf %334 : vector<8x128xf32>
    %336 = math.exp %335 : vector<8x128xf32>
    %cst_83 = arith.constant 1.000000e+00 : f32
    %337 = vector.broadcast %cst_83 : f32 to vector<8x128xf32>
    %338 = arith.addf %337, %336 : vector<8x128xf32>
    %339 = arith.divf %337, %338 : vector<8x128xf32>
    %340 = vector.extract_strided_slice %327 {offsets = [0, 256], sizes = [8, 128], strides = [1, 1]} : vector<8x512xf32> to vector<8x128xf32>
    %341 = math.tanh %340 : vector<8x128xf32>
    %342 = vector.extract_strided_slice %327 {offsets = [0, 384], sizes = [8, 128], strides = [1, 1]} : vector<8x512xf32> to vector<8x128xf32>
    %343 = arith.negf %342 : vector<8x128xf32>
    %344 = math.exp %343 : vector<8x128xf32>
    %cst_84 = arith.constant 1.000000e+00 : f32
    %345 = vector.broadcast %cst_84 : f32 to vector<8x128xf32>
    %346 = arith.addf %345, %344 : vector<8x128xf32>
    %347 = arith.divf %345, %346 : vector<8x128xf32>
    %348 = arith.mulf %339, %290 : vector<8x128xf32>
    %349 = arith.mulf %333, %341 : vector<8x128xf32>
    %350 = arith.addf %348, %349 : vector<8x128xf32>
    %351 = math.tanh %350 : vector<8x128xf32>
    %352 = arith.mulf %347, %351 : vector<8x128xf32>
    %353 = tpu.concatenate %352, %320 in 1 : vector<8x128xf32>, vector<8x128xf32> -> vector<8x256xf32>
    %cst_85 = arith.constant dense<0.000000e+00> : vector<8x512xf32>
    %354 = tpu.matmul %353, %13, %cst_85 {dimension_numbers = #tpu.dot_dimension_numbers<[1], [0], [0], [1], [0, 0, 1, 1], [], []>} : vector<8x256xf32>, vector<256x512xf32>, vector<8x512xf32> -> vector<8x512xf32>
    %355 = arith.addf %354, %16 : vector<8x512xf32>
    %356 = vector.extract_strided_slice %355 {offsets = [0, 0], sizes = [8, 128], strides = [1, 1]} : vector<8x512xf32> to vector<8x128xf32>
    %357 = arith.negf %356 : vector<8x128xf32>
    %358 = math.exp %357 : vector<8x128xf32>
    %cst_86 = arith.constant 1.000000e+00 : f32
    %359 = vector.broadcast %cst_86 : f32 to vector<8x128xf32>
    %360 = arith.addf %359, %358 : vector<8x128xf32>
    %361 = arith.divf %359, %360 : vector<8x128xf32>
    %362 = vector.extract_strided_slice %355 {offsets = [0, 128], sizes = [8, 128], strides = [1, 1]} : vector<8x512xf32> to vector<8x128xf32>
    %363 = arith.negf %362 : vector<8x128xf32>
    %364 = math.exp %363 : vector<8x128xf32>
    %cst_87 = arith.constant 1.000000e+00 : f32
    %365 = vector.broadcast %cst_87 : f32 to vector<8x128xf32>
    %366 = arith.addf %365, %364 : vector<8x128xf32>
    %367 = arith.divf %365, %366 : vector<8x128xf32>
    %368 = vector.extract_strided_slice %355 {offsets = [0, 256], sizes = [8, 128], strides = [1, 1]} : vector<8x512xf32> to vector<8x128xf32>
    %369 = math.tanh %368 : vector<8x128xf32>
    %370 = vector.extract_strided_slice %355 {offsets = [0, 384], sizes = [8, 128], strides = [1, 1]} : vector<8x512xf32> to vector<8x128xf32>
    %371 = arith.negf %370 : vector<8x128xf32>
    %372 = math.exp %371 : vector<8x128xf32>
    %cst_88 = arith.constant 1.000000e+00 : f32
    %373 = vector.broadcast %cst_88 : f32 to vector<8x128xf32>
    %374 = arith.addf %373, %372 : vector<8x128xf32>
    %375 = arith.divf %373, %374 : vector<8x128xf32>
    %376 = arith.mulf %367, %318 : vector<8x128xf32>
    %377 = arith.mulf %361, %369 : vector<8x128xf32>
    %378 = arith.addf %376, %377 : vector<8x128xf32>
    %379 = math.tanh %378 : vector<8x128xf32>
    %380 = arith.mulf %375, %379 : vector<8x128xf32>
    %381 = arith.maximumf %321, %380 : vector<8x128xf32>
    %382 = arith.addf %322, %380 : vector<8x128xf32>
    %c6_i32 = arith.constant 6 : i32
    %383 = arith.index_cast %c6_i32 : i32 to index
    %c0_89 = arith.constant 0 : index
    %c0_90 = arith.constant 0 : index
    %384 = vector.load %arg14[%383, %c0_89, %c0_90] : memref<8x8x512xf32, #tpu.memory_space<vmem>>, vector<1x8x512xf32>
    %385 = vector.shape_cast %384 : vector<1x8x512xf32> to vector<8x512xf32>
    %cst_91 = arith.constant dense<0.000000e+00> : vector<8x512xf32>
    %386 = tpu.matmul %352, %12, %cst_91 {dimension_numbers = #tpu.dot_dimension_numbers<[1], [0], [0], [1], [0, 0, 1, 1], [], []>} : vector<8x128xf32>, vector<128x512xf32>, vector<8x512xf32> -> vector<8x512xf32>
    %387 = arith.addf %385, %386 : vector<8x512xf32>
    %388 = vector.extract_strided_slice %387 {offsets = [0, 0], sizes = [8, 128], strides = [1, 1]} : vector<8x512xf32> to vector<8x128xf32>
    %389 = arith.negf %388 : vector<8x128xf32>
    %390 = math.exp %389 : vector<8x128xf32>
    %cst_92 = arith.constant 1.000000e+00 : f32
    %391 = vector.broadcast %cst_92 : f32 to vector<8x128xf32>
    %392 = arith.addf %391, %390 : vector<8x128xf32>
    %393 = arith.divf %391, %392 : vector<8x128xf32>
    %394 = vector.extract_strided_slice %387 {offsets = [0, 128], sizes = [8, 128], strides = [1, 1]} : vector<8x512xf32> to vector<8x128xf32>
    %395 = arith.negf %394 : vector<8x128xf32>
    %396 = math.exp %395 : vector<8x128xf32>
    %cst_93 = arith.constant 1.000000e+00 : f32
    %397 = vector.broadcast %cst_93 : f32 to vector<8x128xf32>
    %398 = arith.addf %397, %396 : vector<8x128xf32>
    %399 = arith.divf %397, %398 : vector<8x128xf32>
    %400 = vector.extract_strided_slice %387 {offsets = [0, 256], sizes = [8, 128], strides = [1, 1]} : vector<8x512xf32> to vector<8x128xf32>
    %401 = math.tanh %400 : vector<8x128xf32>
    %402 = vector.extract_strided_slice %387 {offsets = [0, 384], sizes = [8, 128], strides = [1, 1]} : vector<8x512xf32> to vector<8x128xf32>
    %403 = arith.negf %402 : vector<8x128xf32>
    %404 = math.exp %403 : vector<8x128xf32>
    %cst_94 = arith.constant 1.000000e+00 : f32
    %405 = vector.broadcast %cst_94 : f32 to vector<8x128xf32>
    %406 = arith.addf %405, %404 : vector<8x128xf32>
    %407 = arith.divf %405, %406 : vector<8x128xf32>
    %408 = arith.mulf %399, %350 : vector<8x128xf32>
    %409 = arith.mulf %393, %401 : vector<8x128xf32>
    %410 = arith.addf %408, %409 : vector<8x128xf32>
    %411 = math.tanh %410 : vector<8x128xf32>
    %412 = arith.mulf %407, %411 : vector<8x128xf32>
    %413 = tpu.concatenate %412, %380 in 1 : vector<8x128xf32>, vector<8x128xf32> -> vector<8x256xf32>
    %cst_95 = arith.constant dense<0.000000e+00> : vector<8x512xf32>
    %414 = tpu.matmul %413, %13, %cst_95 {dimension_numbers = #tpu.dot_dimension_numbers<[1], [0], [0], [1], [0, 0, 1, 1], [], []>} : vector<8x256xf32>, vector<256x512xf32>, vector<8x512xf32> -> vector<8x512xf32>
    %415 = arith.addf %414, %16 : vector<8x512xf32>
    %416 = vector.extract_strided_slice %415 {offsets = [0, 0], sizes = [8, 128], strides = [1, 1]} : vector<8x512xf32> to vector<8x128xf32>
    %417 = arith.negf %416 : vector<8x128xf32>
    %418 = math.exp %417 : vector<8x128xf32>
    %cst_96 = arith.constant 1.000000e+00 : f32
    %419 = vector.broadcast %cst_96 : f32 to vector<8x128xf32>
    %420 = arith.addf %419, %418 : vector<8x128xf32>
    %421 = arith.divf %419, %420 : vector<8x128xf32>
    %422 = vector.extract_strided_slice %415 {offsets = [0, 128], sizes = [8, 128], strides = [1, 1]} : vector<8x512xf32> to vector<8x128xf32>
    %423 = arith.negf %422 : vector<8x128xf32>
    %424 = math.exp %423 : vector<8x128xf32>
    %cst_97 = arith.constant 1.000000e+00 : f32
    %425 = vector.broadcast %cst_97 : f32 to vector<8x128xf32>
    %426 = arith.addf %425, %424 : vector<8x128xf32>
    %427 = arith.divf %425, %426 : vector<8x128xf32>
    %428 = vector.extract_strided_slice %415 {offsets = [0, 256], sizes = [8, 128], strides = [1, 1]} : vector<8x512xf32> to vector<8x128xf32>
    %429 = math.tanh %428 : vector<8x128xf32>
    %430 = vector.extract_strided_slice %415 {offsets = [0, 384], sizes = [8, 128], strides = [1, 1]} : vector<8x512xf32> to vector<8x128xf32>
    %431 = arith.negf %430 : vector<8x128xf32>
    %432 = math.exp %431 : vector<8x128xf32>
    %cst_98 = arith.constant 1.000000e+00 : f32
    %433 = vector.broadcast %cst_98 : f32 to vector<8x128xf32>
    %434 = arith.addf %433, %432 : vector<8x128xf32>
    %435 = arith.divf %433, %434 : vector<8x128xf32>
    %436 = arith.mulf %427, %378 : vector<8x128xf32>
    %437 = arith.mulf %421, %429 : vector<8x128xf32>
    %438 = arith.addf %436, %437 : vector<8x128xf32>
    %439 = math.tanh %438 : vector<8x128xf32>
    %440 = arith.mulf %435, %439 : vector<8x128xf32>
    %441 = arith.maximumf %381, %440 : vector<8x128xf32>
    %442 = arith.addf %382, %440 : vector<8x128xf32>
    %c7_i32 = arith.constant 7 : i32
    %443 = arith.index_cast %c7_i32 : i32 to index
    %c0_99 = arith.constant 0 : index
    %c0_100 = arith.constant 0 : index
    %444 = vector.load %arg14[%443, %c0_99, %c0_100] : memref<8x8x512xf32, #tpu.memory_space<vmem>>, vector<1x8x512xf32>
    %445 = vector.shape_cast %444 : vector<1x8x512xf32> to vector<8x512xf32>
    %cst_101 = arith.constant dense<0.000000e+00> : vector<8x512xf32>
    %446 = tpu.matmul %412, %12, %cst_101 {dimension_numbers = #tpu.dot_dimension_numbers<[1], [0], [0], [1], [0, 0, 1, 1], [], []>} : vector<8x128xf32>, vector<128x512xf32>, vector<8x512xf32> -> vector<8x512xf32>
    %447 = arith.addf %445, %446 : vector<8x512xf32>
    %448 = vector.extract_strided_slice %447 {offsets = [0, 0], sizes = [8, 128], strides = [1, 1]} : vector<8x512xf32> to vector<8x128xf32>
    %449 = arith.negf %448 : vector<8x128xf32>
    %450 = math.exp %449 : vector<8x128xf32>
    %cst_102 = arith.constant 1.000000e+00 : f32
    %451 = vector.broadcast %cst_102 : f32 to vector<8x128xf32>
    %452 = arith.addf %451, %450 : vector<8x128xf32>
    %453 = arith.divf %451, %452 : vector<8x128xf32>
    %454 = vector.extract_strided_slice %447 {offsets = [0, 128], sizes = [8, 128], strides = [1, 1]} : vector<8x512xf32> to vector<8x128xf32>
    %455 = arith.negf %454 : vector<8x128xf32>
    %456 = math.exp %455 : vector<8x128xf32>
    %cst_103 = arith.constant 1.000000e+00 : f32
    %457 = vector.broadcast %cst_103 : f32 to vector<8x128xf32>
    %458 = arith.addf %457, %456 : vector<8x128xf32>
    %459 = arith.divf %457, %458 : vector<8x128xf32>
    %460 = vector.extract_strided_slice %447 {offsets = [0, 256], sizes = [8, 128], strides = [1, 1]} : vector<8x512xf32> to vector<8x128xf32>
    %461 = math.tanh %460 : vector<8x128xf32>
    %462 = vector.extract_strided_slice %447 {offsets = [0, 384], sizes = [8, 128], strides = [1, 1]} : vector<8x512xf32> to vector<8x128xf32>
    %463 = arith.negf %462 : vector<8x128xf32>
    %464 = math.exp %463 : vector<8x128xf32>
    %cst_104 = arith.constant 1.000000e+00 : f32
    %465 = vector.broadcast %cst_104 : f32 to vector<8x128xf32>
    %466 = arith.addf %465, %464 : vector<8x128xf32>
    %467 = arith.divf %465, %466 : vector<8x128xf32>
    %468 = arith.mulf %459, %410 : vector<8x128xf32>
    %469 = arith.mulf %453, %461 : vector<8x128xf32>
    %470 = arith.addf %468, %469 : vector<8x128xf32>
    %471 = math.tanh %470 : vector<8x128xf32>
    %472 = arith.mulf %467, %471 : vector<8x128xf32>
    %473 = tpu.concatenate %472, %440 in 1 : vector<8x128xf32>, vector<8x128xf32> -> vector<8x256xf32>
    %cst_105 = arith.constant dense<0.000000e+00> : vector<8x512xf32>
    %474 = tpu.matmul %473, %13, %cst_105 {dimension_numbers = #tpu.dot_dimension_numbers<[1], [0], [0], [1], [0, 0, 1, 1], [], []>} : vector<8x256xf32>, vector<256x512xf32>, vector<8x512xf32> -> vector<8x512xf32>
    %475 = arith.addf %474, %16 : vector<8x512xf32>
    %476 = vector.extract_strided_slice %475 {offsets = [0, 0], sizes = [8, 128], strides = [1, 1]} : vector<8x512xf32> to vector<8x128xf32>
    %477 = arith.negf %476 : vector<8x128xf32>
    %478 = math.exp %477 : vector<8x128xf32>
    %cst_106 = arith.constant 1.000000e+00 : f32
    %479 = vector.broadcast %cst_106 : f32 to vector<8x128xf32>
    %480 = arith.addf %479, %478 : vector<8x128xf32>
    %481 = arith.divf %479, %480 : vector<8x128xf32>
    %482 = vector.extract_strided_slice %475 {offsets = [0, 128], sizes = [8, 128], strides = [1, 1]} : vector<8x512xf32> to vector<8x128xf32>
    %483 = arith.negf %482 : vector<8x128xf32>
    %484 = math.exp %483 : vector<8x128xf32>
    %cst_107 = arith.constant 1.000000e+00 : f32
    %485 = vector.broadcast %cst_107 : f32 to vector<8x128xf32>
    %486 = arith.addf %485, %484 : vector<8x128xf32>
    %487 = arith.divf %485, %486 : vector<8x128xf32>
    %488 = vector.extract_strided_slice %475 {offsets = [0, 256], sizes = [8, 128], strides = [1, 1]} : vector<8x512xf32> to vector<8x128xf32>
    %489 = math.tanh %488 : vector<8x128xf32>
    %490 = vector.extract_strided_slice %475 {offsets = [0, 384], sizes = [8, 128], strides = [1, 1]} : vector<8x512xf32> to vector<8x128xf32>
    %491 = arith.negf %490 : vector<8x128xf32>
    %492 = math.exp %491 : vector<8x128xf32>
    %cst_108 = arith.constant 1.000000e+00 : f32
    %493 = vector.broadcast %cst_108 : f32 to vector<8x128xf32>
    %494 = arith.addf %493, %492 : vector<8x128xf32>
    %495 = arith.divf %493, %494 : vector<8x128xf32>
    %496 = arith.mulf %487, %438 : vector<8x128xf32>
    %497 = arith.mulf %481, %489 : vector<8x128xf32>
    %498 = arith.addf %496, %497 : vector<8x128xf32>
    %499 = math.tanh %498 : vector<8x128xf32>
    %500 = arith.mulf %495, %499 : vector<8x128xf32>
    %501 = arith.maximumf %441, %500 : vector<8x128xf32>
    %502 = arith.addf %442, %500 : vector<8x128xf32>
    %c8_i32 = arith.constant 8 : i32
    %c0_109 = arith.constant 0 : index
    %c0_110 = arith.constant 0 : index
    %503 = vector.load %arg15[%c0_109, %c0_110] : memref<8x128xf32, #tpu.memory_space<vmem>>, vector<8x128xf32>
    tpu.vector_store %arg15[%c0_109, %c0_110], %472 {strides = array<i32>} : memref<8x128xf32, #tpu.memory_space<vmem>>, vector<8x128xf32>,
    %c0_111 = arith.constant 0 : index
    %c0_112 = arith.constant 0 : index
    %504 = vector.load %arg16[%c0_111, %c0_112] : memref<8x128xf32, #tpu.memory_space<vmem>>, vector<8x128xf32>
    tpu.vector_store %arg16[%c0_111, %c0_112], %470 {strides = array<i32>} : memref<8x128xf32, #tpu.memory_space<vmem>>, vector<8x128xf32>,
    %c0_113 = arith.constant 0 : index
    %c0_114 = arith.constant 0 : index
    %505 = vector.load %arg17[%c0_113, %c0_114] : memref<8x128xf32, #tpu.memory_space<vmem>>, vector<8x128xf32>
    tpu.vector_store %arg17[%c0_113, %c0_114], %500 {strides = array<i32>} : memref<8x128xf32, #tpu.memory_space<vmem>>, vector<8x128xf32>,
    %c0_115 = arith.constant 0 : index
    %c0_116 = arith.constant 0 : index
    %506 = vector.load %arg18[%c0_115, %c0_116] : memref<8x128xf32, #tpu.memory_space<vmem>>, vector<8x128xf32>
    tpu.vector_store %arg18[%c0_115, %c0_116], %498 {strides = array<i32>} : memref<8x128xf32, #tpu.memory_space<vmem>>, vector<8x128xf32>,
    %c0_117 = arith.constant 0 : index
    %c0_118 = arith.constant 0 : index
    %507 = vector.load %arg19[%c0_117, %c0_118] : memref<8x128xf32, #tpu.memory_space<vmem>>, vector<8x128xf32>
    tpu.vector_store %arg19[%c0_117, %c0_118], %501 {strides = array<i32>} : memref<8x128xf32, #tpu.memory_space<vmem>>, vector<8x128xf32>,
    %c0_119 = arith.constant 0 : index
    %c0_120 = arith.constant 0 : index
    %508 = vector.load %arg20[%c0_119, %c0_120] : memref<8x128xf32, #tpu.memory_space<vmem>>, vector<8x128xf32>
    tpu.vector_store %arg20[%c0_119, %c0_120], %502 {strides = array<i32>} : memref<8x128xf32, #tpu.memory_space<vmem>>, vector<8x128xf32>,
    %c0_i32_121 = arith.constant 0 : i32
    %509 = arith.cmpi eq, %arg0, %c0_i32_121 : i32
    %510 = arith.extui %509 : i1 to i32
    %c0_i32_122 = arith.constant 0 : i32
    %511 = arith.cmpi ne, %510, %c0_i32_122 : i32
    scf.if %511 {
      %c0_123 = arith.constant 0 : index
      %c0_124 = arith.constant 0 : index
      %c0_125 = arith.constant 0 : index
      %512 = vector.load %arg12[%c0_123, %c0_124, %c0_125] : memref<2x8x128xf32, #tpu.memory_space<vmem>>, vector<1x8x128xf32>
      %513 = vector.shape_cast %512 : vector<1x8x128xf32> to vector<8x128xf32>
      %514 = vector.shape_cast %472 : vector<8x128xf32> to vector<1x8x128xf32>
      tpu.vector_store %arg12[%c0_123, %c0_124, %c0_125], %514 {strides = array<i32>} : memref<2x8x128xf32, #tpu.memory_space<vmem>>, vector<1x8x128xf32>,
      %c1 = arith.constant 1 : index
      %c0_126 = arith.constant 0 : index
      %c0_127 = arith.constant 0 : index
      %515 = vector.load %arg12[%c1, %c0_126, %c0_127] : memref<2x8x128xf32, #tpu.memory_space<vmem>>, vector<1x8x128xf32>
      %516 = vector.shape_cast %515 : vector<1x8x128xf32> to vector<8x128xf32>
      %517 = vector.shape_cast %500 : vector<8x128xf32> to vector<1x8x128xf32>
      tpu.vector_store %arg12[%c1, %c0_126, %c0_127], %517 {strides = array<i32>} : memref<2x8x128xf32, #tpu.memory_space<vmem>>, vector<1x8x128xf32>,
      %c0_128 = arith.constant 0 : index
      %c0_129 = arith.constant 0 : index
      %c0_130 = arith.constant 0 : index
      %518 = vector.load %arg13[%c0_128, %c0_129, %c0_130] : memref<2x8x128xf32, #tpu.memory_space<vmem>>, vector<1x8x128xf32>
      %519 = vector.shape_cast %518 : vector<1x8x128xf32> to vector<8x128xf32>
      %520 = vector.shape_cast %470 : vector<8x128xf32> to vector<1x8x128xf32>
      tpu.vector_store %arg13[%c0_128, %c0_129, %c0_130], %520 {strides = array<i32>} : memref<2x8x128xf32, #tpu.memory_space<vmem>>, vector<1x8x128xf32>,
      %c1_131 = arith.constant 1 : index
      %c0_132 = arith.constant 0 : index
      %c0_133 = arith.constant 0 : index
      %521 = vector.load %arg13[%c1_131, %c0_132, %c0_133] : memref<2x8x128xf32, #tpu.memory_space<vmem>>, vector<1x8x128xf32>
      %522 = vector.shape_cast %521 : vector<1x8x128xf32> to vector<8x128xf32>
      %523 = vector.shape_cast %498 : vector<8x128xf32> to vector<1x8x128xf32>
      tpu.vector_store %arg13[%c1_131, %c0_132, %c0_133], %523 {strides = array<i32>} : memref<2x8x128xf32, #tpu.memory_space<vmem>>, vector<1x8x128xf32>,
      %cst_134 = arith.constant 1.250000e-01 : f32
      %524 = vector.broadcast %cst_134 : f32 to vector<8x128xf32>
      %525 = arith.mulf %502, %524 : vector<8x128xf32>
      %526 = tpu.concatenate %501, %525 in 1 : vector<8x128xf32>, vector<8x128xf32> -> vector<8x256xf32>
      %c0_135 = arith.constant 0 : index
      %c0_136 = arith.constant 0 : index
      %527 = vector.load %arg9[%c0_135, %c0_136] : memref<256x1xf32, #tpu.memory_space<vmem>>, vector<256x1xf32>
      %cst_137 = arith.constant dense<0.000000e+00> : vector<8x1xf32>
      %528 = tpu.matmul %526, %527, %cst_137 {dimension_numbers = #tpu.dot_dimension_numbers<[1], [0], [0], [1], [0, 0, 1, 1], [], []>} : vector<8x256xf32>, vector<256x1xf32>, vector<8x1xf32> -> vector<8x1xf32>
      %c0_138 = arith.constant 0 : index
      %c0_139 = arith.constant 0 : index
      %529 = vector.load %arg10[%c0_138, %c0_139] : memref<1x1xf32, #tpu.memory_space<vmem>>, vector<1x1xf32>
      %530 = vector.broadcast %529 : vector<1x1xf32> to vector<8x1xf32>
      %531 = arith.addf %528, %530 : vector<8x1xf32>
      %532 = arith.negf %531 : vector<8x1xf32>
      %533 = math.exp %532 : vector<8x1xf32>
      %cst_140 = arith.constant 1.000000e+00 : f32
      %534 = vector.broadcast %cst_140 : f32 to vector<8x1xf32>
      %535 = arith.addf %534, %533 : vector<8x1xf32>
      %536 = arith.divf %534, %535 : vector<8x1xf32>
      %c0_141 = arith.constant 0 : index
      %c0_142 = arith.constant 0 : index
      %537 = vector.load %arg11[%c0_141, %c0_142] : memref<8x1xf32, #tpu.memory_space<vmem>>, vector<8x1xf32>
      tpu.vector_store %arg11[%c0_141, %c0_142], %536 {strides = array<i32>} : memref<8x1xf32, #tpu.memory_space<vmem>>, vector<8x1xf32>,
    } else {
    }
    return
  }
  func.func @transform_0(%arg0: i32) -> (i32, i32, i32) {
    %c0_i32 = arith.constant 0 : i32
    %c0_i32_0 = arith.constant 0 : i32
    %c0_i32_1 = arith.constant 0 : i32
    return %arg0, %c0_i32, %c0_i32_0 : i32, i32, i32
  }
  func.func @transform_1(%arg0: i32) -> (i32, i32, i32) {
    %c0_i32 = arith.constant 0 : i32
    %c0_i32_0 = arith.constant 0 : i32
    %c0_i32_1 = arith.constant 0 : i32
    %c0_i32_2 = arith.constant 0 : i32
    return %c0_i32, %c0_i32_0, %c0_i32_1 : i32, i32, i32
  }
  func.func @transform_2(%arg0: i32) -> (i32, i32, i32) {
    %c0_i32 = arith.constant 0 : i32
    %c0_i32_0 = arith.constant 0 : i32
    %c0_i32_1 = arith.constant 0 : i32
    %c0_i32_2 = arith.constant 0 : i32
    return %c0_i32, %c0_i32_0, %c0_i32_1 : i32, i32, i32
  }
  func.func @transform_3(%arg0: i32) -> (i32, i32) {
    %c0_i32 = arith.constant 0 : i32
    %c0_i32_0 = arith.constant 0 : i32
    %c0_i32_1 = arith.constant 0 : i32
    return %c0_i32, %c0_i32_0 : i32, i32
  }
  func.func @transform_4(%arg0: i32) -> (i32, i32) {
    %c0_i32 = arith.constant 0 : i32
    %c0_i32_0 = arith.constant 0 : i32
    %c0_i32_1 = arith.constant 0 : i32
    return %c0_i32, %c0_i32_0 : i32, i32
  }
  func.func @transform_5(%arg0: i32) -> (i32, i32) {
    %c0_i32 = arith.constant 0 : i32
    %c0_i32_0 = arith.constant 0 : i32
    %c0_i32_1 = arith.constant 0 : i32
    return %c0_i32, %c0_i32_0 : i32, i32
  }
  func.func @transform_6(%arg0: i32) -> (i32, i32) {
    %c0_i32 = arith.constant 0 : i32
    %c0_i32_0 = arith.constant 0 : i32
    %c0_i32_1 = arith.constant 0 : i32
    return %c0_i32, %c0_i32_0 : i32, i32
  }
  func.func @transform_7(%arg0: i32) -> (i32, i32) {
    %c0_i32 = arith.constant 0 : i32
    %c0_i32_0 = arith.constant 0 : i32
    %c0_i32_1 = arith.constant 0 : i32
    return %c0_i32, %c0_i32_0 : i32, i32
  }
  func.func @transform_8(%arg0: i32) -> (i32, i32) {
    %c0_i32 = arith.constant 0 : i32
    %c0_i32_0 = arith.constant 0 : i32
    %c0_i32_1 = arith.constant 0 : i32
    return %c0_i32, %c0_i32_0 : i32, i32
  }
  func.func @transform_9(%arg0: i32) -> (i32, i32) {
    %c0_i32 = arith.constant 0 : i32
    %c0_i32_0 = arith.constant 0 : i32
    %c0_i32_1 = arith.constant 0 : i32
    return %c0_i32, %c0_i32_0 : i32, i32
  }
  func.func @transform_10(%arg0: i32) -> (i32, i32) {
    %c0_i32 = arith.constant 0 : i32
    %c0_i32_0 = arith.constant 0 : i32
    %c0_i32_1 = arith.constant 0 : i32
    return %c0_i32, %c0_i32_0 : i32, i32
  }
  func.func @transform_11(%arg0: i32) -> (i32, i32, i32) {
    %c0_i32 = arith.constant 0 : i32
    %c0_i32_0 = arith.constant 0 : i32
    %c0_i32_1 = arith.constant 0 : i32
    %c0_i32_2 = arith.constant 0 : i32
    return %c0_i32, %c0_i32_0, %c0_i32_1 : i32, i32, i32
  }
  func.func @transform_12(%arg0: i32) -> (i32, i32, i32) {
    %c0_i32 = arith.constant 0 : i32
    %c0_i32_0 = arith.constant 0 : i32
    %c0_i32_1 = arith.constant 0 : i32
    %c0_i32_2 = arith.constant 0 : i32
    return %c0_i32, %c0_i32_0, %c0_i32_1 : i32, i32, i32
  }
}

</mosaic_0001>

<llo_original>
// kernel: sentiment_rnn_forward.1
$region0: #{sentiment_rnn_forward.1}
  #allocation0 [shape = 'u32[]', space=smem, size = 0x4, offset = 0x4, fixed_abs, tag = 'smem constant byte address 0x4 - core index']
  #allocation1 [shape = 'u32[144,128]{1,0:T(1,128)}', space=vmem, size = 0x12000, scoped, tag = 'internal scratch']
  #allocation2 [shape = 'f32[8,8,512]{2,1,0:T(8,128)}', space=vmem, size = 0x20000, scoped, tag = 'scratch operand']
  #allocation3 [shape = 'f32[8,128]{1,0:T(8,128)}', space=vmem, size = 0x1000, scoped, tag = 'scratch operand']
  #allocation4 [shape = 'f32[8,128]{1,0:T(8,128)}', space=vmem, size = 0x1000, scoped, tag = 'scratch operand']
  #allocation5 [shape = 'f32[8,128]{1,0:T(8,128)}', space=vmem, size = 0x1000, scoped, tag = 'scratch operand']
  #allocation6 [shape = 'f32[8,128]{1,0:T(8,128)}', space=vmem, size = 0x1000, scoped, tag = 'scratch operand']
  #allocation7 [shape = 'f32[8,128]{1,0:T(8,128)}', space=vmem, size = 0x1000, scoped, tag = 'scratch operand']
  #allocation8 [shape = 'f32[8,128]{1,0:T(8,128)}', space=vmem, size = 0x1000, scoped, tag = 'scratch operand']
  #allocation9 [shape = 'f32[1,1]{1,0:T(1,128)S(1)}', space=vmem, size = 0x200, scoped, tag = 'scoped memory for sentiment_rnn_forward.1']
  %s0 = inlined_call_operand.vmem [shape: f32[8,8,32], index: 0, kind: input, shape index: {}]
  %s1 = inlined_call_operand.vmem [shape: f32[2,8,128], index: 1, kind: input, shape index: {}]
  %s2 = inlined_call_operand.vmem [shape: f32[2,8,128], index: 2, kind: input, shape index: {}]
  %s3 = inlined_call_operand.vmem [shape: f32[32,512], index: 3, kind: input, shape index: {}]
  %s4 = inlined_call_operand.vmem [shape: f32[1,512], index: 4, kind: input, shape index: {}]
  %s5 = inlined_call_operand.vmem [shape: f32[128,512], index: 5, kind: input, shape index: {}]
  %s6 = inlined_call_operand.vmem [shape: f32[256,512], index: 6, kind: input, shape index: {}]
  %s7 = inlined_call_operand.vmem [shape: f32[1,512], index: 7, kind: input, shape index: {}]
  %s8 = inlined_call_operand.vmem [shape: f32[256,1], index: 8, kind: input, shape index: {}]
  %s9 = inlined_call_operand.<no memory space> [shape: f32[1,1], index: 9, kind: input, shape index: {}]
  %s10 = inlined_call_operand.vmem [shape: f32[8,1], index: 10, kind: output, shape index: {0}]
  %s11 = inlined_call_operand.vmem [shape: f32[2,8,128], index: 11, kind: output, shape index: {1}]
  %s12 = inlined_call_operand.vmem [shape: f32[2,8,128], index: 12, kind: output, shape index: {2}]
  %13 = xla_tuple %s10, %s11, %s12
  %s14 = sld [smem:[#allocation0]]
  $region74: #{sentiment_rnn_forward.1} parent=0
    _
  %s16 = ssub.s32 1, %s14
  %s17 = scalar_select 0, %s16, %s14
  %v18 = vstv %s9
  %19 = vst [vmem:[#allocation9] sm:$0x1] %v18
  // Predicated region
  $region2: #{sentiment_rnn_forward.1} parent=0 // pred_check
    _
  $region3: #{sentiment_rnn_forward.1} parent=0 // pred_check_branch
    %21 = sbr.rel (0) target = $region5
  $region4: #{sentiment_rnn_forward.1} parent=0 // pred_region
    _
  $region5: #{sentiment_rnn_forward.1} parent=0 // pred_fallthru
    _
  // Predicated region
  $region6: #{sentiment_rnn_forward.1} parent=0 // pred_check
    _
  $region7: #{sentiment_rnn_forward.1} parent=0 // pred_check_branch
    %23 = sbr.rel (0) target = $region9
  $region8: #{sentiment_rnn_forward.1} parent=0 // pred_region
    _
  $region9: #{sentiment_rnn_forward.1} parent=0 // pred_fallthru
    _
  // Predicated region
  $region10: #{sentiment_rnn_forward.1} parent=0 // pred_check
    _
  $region11: #{sentiment_rnn_forward.1} parent=0 // pred_check_branch
    %25 = sbr.rel (0) target = $region13
  $region12: #{sentiment_rnn_forward.1} parent=0 // pred_region
    _
  $region13: #{sentiment_rnn_forward.1} parent=0 // pred_fallthru
    _
  // Predicated region
  $region14: #{sentiment_rnn_forward.1} parent=0 // pred_check
    _
  $region15: #{sentiment_rnn_forward.1} parent=0 // pred_check_branch
    %27 = sbr.rel (0) target = $region17
  $region16: #{sentiment_rnn_forward.1} parent=0 // pred_region
    _
  $region17: #{sentiment_rnn_forward.1} parent=0 // pred_fallthru
    _
  // Predicated region
  $region18: #{sentiment_rnn_forward.1} parent=0 // pred_check
    _
  $region19: #{sentiment_rnn_forward.1} parent=0 // pred_check_branch
    %29 = sbr.rel (0) target = $region21
  $region20: #{sentiment_rnn_forward.1} parent=0 // pred_region
    _
  $region21: #{sentiment_rnn_forward.1} parent=0 // pred_fallthru
    _
  // Predicated region
  $region22: #{sentiment_rnn_forward.1} parent=0 // pred_check
    _
  $region23: #{sentiment_rnn_forward.1} parent=0 // pred_check_branch
    %31 = sbr.rel (0) target = $region25
  $region24: #{sentiment_rnn_forward.1} parent=0 // pred_region
    _
  $region25: #{sentiment_rnn_forward.1} parent=0 // pred_fallthru
    _
  // Predicated region
  $region26: #{sentiment_rnn_forward.1} parent=0 // pred_check
    _
  $region27: #{sentiment_rnn_forward.1} parent=0 // pred_check_branch
    %33 = sbr.rel (0) target = $region29
  $region28: #{sentiment_rnn_forward.1} parent=0 // pred_region
    _
  $region29: #{sentiment_rnn_forward.1} parent=0 // pred_fallthru
    _
  // Predicated region
  $region30: #{sentiment_rnn_forward.1} parent=0 // pred_check
    _
  $region31: #{sentiment_rnn_forward.1} parent=0 // pred_check_branch
    %35 = sbr.rel (0) target = $region33
  $region32: #{sentiment_rnn_forward.1} parent=0 // pred_region
    _
  $region33: #{sentiment_rnn_forward.1} parent=0 // pred_fallthru
    _
  // Predicated region
  $region34: #{sentiment_rnn_forward.1} parent=0 // pred_check
    _
  $region35: #{sentiment_rnn_forward.1} parent=0 // pred_check_branch
    %37 = sbr.rel (0) target = $region37
  $region36: #{sentiment_rnn_forward.1} parent=0 // pred_region
    _
  $region37: #{sentiment_rnn_forward.1} parent=0 // pred_fallthru
    _
  // Predicated region
  $region38: #{sentiment_rnn_forward.1} parent=0 // pred_check
    _
  $region39: #{sentiment_rnn_forward.1} parent=0 // pred_check_branch
    %39 = sbr.rel (0) target = $region41
  $region40: #{sentiment_rnn_forward.1} parent=0 // pred_region
    _
  $region41: #{sentiment_rnn_forward.1} parent=0 // pred_fallthru
    _
  %p40 = scmp.eq.s32.totalorder 0, 0
  // Predicated region
  $region42: #{sentiment_rnn_forward.1} parent=0 // pred_check
    %p41 = pneg %p40
  $region43: #{sentiment_rnn_forward.1} parent=0 // pred_check_branch
    %43 = sbr.rel (%p41) target = $region45
  $region44: #{sentiment_rnn_forward.1} parent=0 // pred_region
    %v44 = vld [vmem:[%s1] sm:$0xff]
    %45 = vst [vmem:[#allocation3] sm:$0xff] %v44
    %v46 = vld [vmem:[%s2] sm:$0xff]
    %47 = vst [vmem:[#allocation4] sm:$0xff] %v46
    %s48 = scalar_lea.vmem %s1, 8
    %v49 = vld [vmem:[%s48] sm:$0xff]
    %50 = vst [vmem:[#allocation5] sm:$0xff] %v49
    %s51 = scalar_lea.vmem %s2, 8
    %v52 = vld [vmem:[%s51] sm:$0xff]
    %53 = vst [vmem:[#allocation6] sm:$0xff] %v52
    %54 = vst [vmem:[#allocation7] sm:$0xff] -inf
    %55 = vst [vmem:[#allocation8] sm:$0xff] 0.0
  $region45: #{sentiment_rnn_forward.1} parent=0 // pred_fallthru
    _
  %v56 = vld [vmem:[%s0] sm:$0xff]
  %v57 = vld [vmem:[%s0 + $0x8] sm:$0xff]
  %v58 = vld [vmem:[%s0 + $0x10] sm:$0xff]
  %v59 = vld [vmem:[%s0 + $0x18] sm:$0xff]
  %v60 = vld [vmem:[%s0 + $0x20] sm:$0xff]
  %v61 = vld [vmem:[%s0 + $0x28] sm:$0xff]
  %v62 = vld [vmem:[%s0 + $0x30] sm:$0xff]
  %v63 = vld [vmem:[%s0 + $0x38] sm:$0xff]
  %v64 = vld [vmem:[%s3] sm:$0xff]
  %v65 = vld [vmem:[%s3 + $0x8] sm:$0xff]
  %v66 = vld [vmem:[%s3 + $0x10] sm:$0xff]
  %v67 = vld [vmem:[%s3 + $0x18] sm:$0xff]
  %v68 = vld [vmem:[%s3 + $0x20] sm:$0xff]
  %v69 = vld [vmem:[%s3 + $0x28] sm:$0xff]
  %v70 = vld [vmem:[%s3 + $0x30] sm:$0xff]
  %v71 = vld [vmem:[%s3 + $0x38] sm:$0xff]
  %v72 = vld [vmem:[%s3 + $0x40] sm:$0xff]
  %v73 = vld [vmem:[%s3 + $0x48] sm:$0xff]
  %v74 = vld [vmem:[%s3 + $0x50] sm:$0xff]
  %v75 = vld [vmem:[%s3 + $0x58] sm:$0xff]
  %v76 = vld [vmem:[%s3 + $0x60] sm:$0xff]
  %v77 = vld [vmem:[%s3 + $0x68] sm:$0xff]
  %v78 = vld [vmem:[%s3 + $0x70] sm:$0xff]
  %v79 = vld [vmem:[%s3 + $0x78] sm:$0xff]
  %v80 = vld [vmem:[%s4] sm:$0xf]
  %v82 = vlaneseq
  %v83 = vshrl.u32 %v82, 7
  %v84 = vsub.s32 0, %v83
  %v85 = vrot.slane %v80, %v84
  %v86 = vlaneseq
  %v87 = vshrl.u32 %v86, 7
  %v88 = vsub.s32 1, %v87
  %v89 = vrot.slane %v80, %v88
  %v90 = vlaneseq
  %v91 = vshrl.u32 %v90, 7
  %v92 = vsub.s32 2, %v91
  %v93 = vrot.slane %v80, %v92
  %v94 = vlaneseq
  %v95 = vshrl.u32 %v94, 7
  %v96 = vsub.s32 3, %v95
  %v97 = vrot.slane %v80, %v96
  %vm102 = vcmask 261120
  %v104 = vsel %vm102, %v56, 0
  %v107 = vsel %vm102, %v57, 0
  %v110 = vsel %vm102, %v58, 0
  %v113 = vsel %vm102, %v59, 0
  %v116 = vsel %vm102, %v60, 0
  %v119 = vsel %vm102, %v61, 0
  %v122 = vsel %vm102, %v62, 0
  %v125 = vsel %vm102, %v63, 0
  %127 = vmatprep.subr.mxu0 %v65
  %128 = vmatpush1.msra.mxu0 %v64
  %129 = vmatprep.subr.mxu0 %v69
  %130 = vmatpush1.msra.mxu0 %v68
  %131 = vmatprep.subr.mxu0 %v73
  %132 = vmatpush1.msra.mxu0 %v72
  %133 = vmatprep.subr.mxu0 %v77
  %134 = vmatpush1.msra.mxu0 %v76
  %135 = vmatprep.subr.mxu0 0.0
  %136 = vmatpush1.msra.mxu0 0.0
  %137 = vmatprep.subr.mxu0 0.0
  %138 = vmatpush1.msra.mxu0 0.0
  %139 = vmatprep.subr.mxu0 0.0
  %140 = vmatpush1.msra.mxu0 0.0
  %141 = vmatprep.subr.mxu0 0.0
  %142 = vmatpush1.msra.mxu0 0.0
  %143 = vmatprep.subr.mxu0 0.0
  %144 = vmatpush1.msra.mxu0 0.0
  %145 = vmatprep.subr.mxu0 0.0
  %146 = vmatpush1.msra.mxu0 0.0
  %147 = vmatprep.subr.mxu0 0.0
  %148 = vmatpush1.msra.mxu0 0.0
  %149 = vmatprep.subr.mxu0 0.0
  %150 = vmatpush1.msra.mxu0 0.0
  %151 = vmatprep.subr.mxu0 0.0
  %152 = vmatpush1.msra.mxu0 0.0
  %153 = vmatprep.subr.mxu0 0.0
  %154 = vmatpush1.msra.mxu0 0.0
  %155 = vmatprep.subr.mxu0 0.0
  %156 = vmatpush1.msra.mxu0 0.0
  %157 = vmatprep.subr.mxu0 0.0
  %158 = vmatpush1.msra.mxu0 0.0
  %159 = vmatprep.subr.mxu0 0.0
  %160 = vmatpush1.msra.mxu0 0.0
  %161 = vmatprep.subr.mxu0 0.0
  %162 = vmatpush1.msra.mxu0 0.0
  %163 = vmatprep.subr.mxu0 0.0
  %164 = vmatpush1.msra.mxu0 0.0
  %165 = vmatprep.subr.mxu0 0.0
  %166 = vmatpush1.msra.mxu0 0.0
  %167 = vmatprep.subr.mxu0 0.0
  %168 = vmatpush1.msra.mxu0 0.0
  %169 = vmatprep.subr.mxu0 0.0
  %170 = vmatpush1.msra.mxu0 0.0
  %171 = vmatprep.subr.mxu0 0.0
  %172 = vmatpush1.msra.mxu0 0.0
  %173 = vmatprep.subr.mxu0 0.0
  %174 = vmatpush1.msra.mxu0 0.0
  %175 = vmatprep.subr.mxu0 0.0
  %176 = vmatpush1.msra.mxu0 0.0
  %177 = vmatprep.subr.mxu0 0.0
  %178 = vmatpush1.msra.mxu0 0.0
  %179 = vmatprep.subr.mxu0 0.0
  %180 = vmatpush1.msra.mxu0 0.0
  %181 = vmatprep.subr.mxu0 0.0
  %182 = vmatpush1.msra.mxu0 0.0
  %183 = vmatprep.subr.mxu0 0.0
  %184 = vmatpush1.msra.mxu0 0.0
  %185 = vmatprep.subr.mxu0 0.0
  %186 = vmatpush1.msra.mxu0 0.0
  %187 = vmatprep.subr.mxu0 0.0
  %188 = vmatpush1.msra.mxu0 0.0
  %189 = vmatprep.subr.mxu0 0.0
  %190 = vmatpush1.msra.mxu0 0.0
  %191 = vmatprep.mubr.f32.mxu0 0.0
  %192 = vmatmul.mubr.f32.gmra.mrb[0].mxu0 %v104
  %v193 = vpop.f32.mrb[0].mxu0
  %v194 = vadd.f32 %v85, %v193
  %v195 = vpop.f32.mrb[0].mxu0
  %v196 = vadd.f32 %v89, %v195
  %197 = vmatprep.mubr.f32.mxu0 0.0
  %198 = vmatmul.mubr.f32.gmra.mrb[0].mxu0 %v107
  %v199 = vpop.f32.mrb[0].mxu0
  %v200 = vadd.f32 %v85, %v199
  %v201 = vpop.f32.mrb[0].mxu0
  %v202 = vadd.f32 %v89, %v201
  %203 = vmatprep.mubr.f32.mxu0 0.0
  %204 = vmatmul.mubr.f32.gmra.mrb[0].mxu0 %v110
  %v205 = vpop.f32.mrb[0].mxu0
  %v206 = vadd.f32 %v85, %v205
  %v207 = vpop.f32.mrb[0].mxu0
  %v208 = vadd.f32 %v89, %v207
  %209 = vmatprep.mubr.f32.mxu0 0.0
  %210 = vmatmul.mubr.f32.gmra.mrb[0].mxu0 %v113
  %v211 = vpop.f32.mrb[0].mxu0
  %v212 = vadd.f32 %v85, %v211
  %v213 = vpop.f32.mrb[0].mxu0
  %v214 = vadd.f32 %v89, %v213
  %215 = vmatprep.mubr.f32.mxu0 0.0
  %216 = vmatmul.mubr.f32.gmra.mrb[0].mxu0 %v116
  %v217 = vpop.f32.mrb[0].mxu0
  %v218 = vadd.f32 %v85, %v217
  %v219 = vpop.f32.mrb[0].mxu0
  %v220 = vadd.f32 %v89, %v219
  %221 = vmatprep.mubr.f32.mxu0 0.0
  %222 = vmatmul.mubr.f32.gmra.mrb[0].mxu0 %v119
  %v223 = vpop.f32.mrb[0].mxu0
  %v224 = vadd.f32 %v85, %v223
  %v225 = vpop.f32.mrb[0].mxu0
  %v226 = vadd.f32 %v89, %v225
  %227 = vmatprep.mubr.f32.mxu0 0.0
  %228 = vmatmul.mubr.f32.gmra.mrb[0].mxu0 %v122
  %v229 = vpop.f32.mrb[0].mxu0
  %v230 = vadd.f32 %v85, %v229
  %v231 = vpop.f32.mrb[0].mxu0
  %v232 = vadd.f32 %v89, %v231
  %233 = vmatprep.mubr.f32.mxu0 0.0
  %234 = vmatmul.mubr.f32.gmra.mrb[0].mxu0 %v125
  %v235 = vpop.f32.mrb[0].mxu0
  %v236 = vadd.f32 %v85, %v235
  %v237 = vpop.f32.mrb[0].mxu0
  %v238 = vadd.f32 %v89, %v237
  %239 = vdwg.mxu0
  %240 = vmatprep.subr.mxu0 %v67
  %241 = vmatpush1.msra.mxu0 %v66
  %242 = vmatprep.subr.mxu0 %v71
  %243 = vmatpush1.msra.mxu0 %v70
  %244 = vmatprep.subr.mxu0 %v75
  %245 = vmatpush1.msra.mxu0 %v74
  %246 = vmatprep.subr.mxu0 %v79
  %247 = vmatpush1.msra.mxu0 %v78
  %248 = vmatprep.subr.mxu0 0.0
  %249 = vmatpush1.msra.mxu0 0.0
  %250 = vmatprep.subr.mxu0 0.0
  %251 = vmatpush1.msra.mxu0 0.0
  %252 = vmatprep.subr.mxu0 0.0
  %253 = vmatpush1.msra.mxu0 0.0
  %254 = vmatprep.subr.mxu0 0.0
  %255 = vmatpush1.msra.mxu0 0.0
  %256 = vmatprep.subr.mxu0 0.0
  %257 = vmatpush1.msra.mxu0 0.0
  %258 = vmatprep.subr.mxu0 0.0
  %259 = vmatpush1.msra.mxu0 0.0
  %260 = vmatprep.subr.mxu0 0.0
  %261 = vmatpush1.msra.mxu0 0.0
  %262 = vmatprep.subr.mxu0 0.0
  %263 = vmatpush1.msra.mxu0 0.0
  %264 = vmatprep.subr.mxu0 0.0
  %265 = vmatpush1.msra.mxu0 0.0
  %266 = vmatprep.subr.mxu0 0.0
  %267 = vmatpush1.msra.mxu0 0.0
  %268 = vmatprep.subr.mxu0 0.0
  %269 = vmatpush1.msra.mxu0 0.0
  %270 = vmatprep.subr.mxu0 0.0
  %271 = vmatpush1.msra.mxu0 0.0
  %272 = vmatprep.subr.mxu0 0.0
  %273 = vmatpush1.msra.mxu0 0.0
  %274 = vmatprep.subr.mxu0 0.0
  %275 = vmatpush1.msra.mxu0 0.0
  %276 = vmatprep.subr.mxu0 0.0
  %277 = vmatpush1.msra.mxu0 0.0
  %278 = vmatprep.subr.mxu0 0.0
  %279 = vmatpush1.msra.mxu0 0.0
  %280 = vmatprep.subr.mxu0 0.0
  %281 = vmatpush1.msra.mxu0 0.0
  %282 = vmatprep.subr.mxu0 0.0
  %283 = vmatpush1.msra.mxu0 0.0
  %284 = vmatprep.subr.mxu0 0.0
  %285 = vmatpush1.msra.mxu0 0.0
  %286 = vmatprep.subr.mxu0 0.0
  %287 = vmatpush1.msra.mxu0 0.0
  %288 = vmatprep.subr.mxu0 0.0
  %289 = vmatpush1.msra.mxu0 0.0
  %290 = vmatprep.subr.mxu0 0.0
  %291 = vmatpush1.msra.mxu0 0.0
  %292 = vmatprep.subr.mxu0 0.0
  %293 = vmatpush1.msra.mxu0 0.0
  %294 = vmatprep.subr.mxu0 0.0
  %295 = vmatpush1.msra.mxu0 0.0
  %296 = vmatprep.subr.mxu0 0.0
  %297 = vmatpush1.msra.mxu0 0.0
  %298 = vmatprep.subr.mxu0 0.0
  %299 = vmatpush1.msra.mxu0 0.0
  %300 = vmatprep.subr.mxu0 0.0
  %301 = vmatpush1.msra.mxu0 0.0
  %302 = vmatprep.subr.mxu0 0.0
  %303 = vmatpush1.msra.mxu0 0.0
  %304 = vmatprep.mubr.f32.mxu0 0.0
  %305 = vmatmul.mubr.f32.gmra.mrb[0].mxu0 %v104
  %v306 = vpop.f32.mrb[0].mxu0
  %v307 = vadd.f32 %v93, %v306
  %v308 = vpop.f32.mrb[0].mxu0
  %v309 = vadd.f32 %v97, %v308
  %310 = vmatprep.mubr.f32.mxu0 0.0
  %311 = vmatmul.mubr.f32.gmra.mrb[0].mxu0 %v107
  %v312 = vpop.f32.mrb[0].mxu0
  %v313 = vadd.f32 %v93, %v312
  %v314 = vpop.f32.mrb[0].mxu0
  %v315 = vadd.f32 %v97, %v314
  %316 = vmatprep.mubr.f32.mxu0 0.0
  %317 = vmatmul.mubr.f32.gmra.mrb[0].mxu0 %v110
  %v318 = vpop.f32.mrb[0].mxu0
  %v319 = vadd.f32 %v93, %v318
  %v320 = vpop.f32.mrb[0].mxu0
  %v321 = vadd.f32 %v97, %v320
  %322 = vmatprep.mubr.f32.mxu0 0.0
  %323 = vmatmul.mubr.f32.gmra.mrb[0].mxu0 %v113
  %v324 = vpop.f32.mrb[0].mxu0
  %v325 = vadd.f32 %v93, %v324
  %v326 = vpop.f32.mrb[0].mxu0
  %v327 = vadd.f32 %v97, %v326
  %328 = vmatprep.mubr.f32.mxu0 0.0
  %329 = vmatmul.mubr.f32.gmra.mrb[0].mxu0 %v116
  %v330 = vpop.f32.mrb[0].mxu0
  %v331 = vadd.f32 %v93, %v330
  %v332 = vpop.f32.mrb[0].mxu0
  %v333 = vadd.f32 %v97, %v332
  %334 = vmatprep.mubr.f32.mxu0 0.0
  %335 = vmatmul.mubr.f32.gmra.mrb[0].mxu0 %v119
  %v336 = vpop.f32.mrb[0].mxu0
  %v337 = vadd.f32 %v93, %v336
  %v338 = vpop.f32.mrb[0].mxu0
  %v339 = vadd.f32 %v97, %v338
  %340 = vmatprep.mubr.f32.mxu0 0.0
  %341 = vmatmul.mubr.f32.gmra.mrb[0].mxu0 %v122
  %v342 = vpop.f32.mrb[0].mxu0
  %v343 = vadd.f32 %v93, %v342
  %v344 = vpop.f32.mrb[0].mxu0
  %v345 = vadd.f32 %v97, %v344
  %346 = vmatprep.mubr.f32.mxu0 0.0
  %347 = vmatmul.mubr.f32.gmra.mrb[0].mxu0 %v125
  %v348 = vpop.f32.mrb[0].mxu0
  %v349 = vadd.f32 %v93, %v348
  %v350 = vpop.f32.mrb[0].mxu0
  %v351 = vadd.f32 %v97, %v350
  %352 = vdwg.mxu0
  %353 = vst [vmem:[#allocation2] sm:$0xff] %v194
  %354 = vst [vmem:[#allocation2 + $0x8] sm:$0xff] %v196
  %355 = vst [vmem:[#allocation2 + $0x10] sm:$0xff] %v307
  %356 = vst [vmem:[#allocation2 + $0x18] sm:$0xff] %v309
  %357 = vst [vmem:[#allocation2 + $0x20] sm:$0xff] %v200
  %358 = vst [vmem:[#allocation2 + $0x28] sm:$0xff] %v202
  %359 = vst [vmem:[#allocation2 + $0x30] sm:$0xff] %v313
  %360 = vst [vmem:[#allocation2 + $0x38] sm:$0xff] %v315
  %361 = vst [vmem:[#allocation2 + $0x40] sm:$0xff] %v206
  %362 = vst [vmem:[#allocation2 + $0x48] sm:$0xff] %v208
  %363 = vst [vmem:[#allocation2 + $0x50] sm:$0xff] %v319
  %364 = vst [vmem:[#allocation2 + $0x58] sm:$0xff] %v321
  %365 = vst [vmem:[#allocation2 + $0x60] sm:$0xff] %v212
  %366 = vst [vmem:[#allocation2 + $0x68] sm:$0xff] %v214
  %367 = vst [vmem:[#allocation2 + $0x70] sm:$0xff] %v325
  %368 = vst [vmem:[#allocation2 + $0x78] sm:$0xff] %v327
  %369 = vst [vmem:[#allocation2 + $0x80] sm:$0xff] %v218
  %370 = vst [vmem:[#allocation2 + $0x88] sm:$0xff] %v220
  %371 = vst [vmem:[#allocation2 + $0x90] sm:$0xff] %v331
  %372 = vst [vmem:[#allocation2 + $0x98] sm:$0xff] %v333
  %373 = vst [vmem:[#allocation2 + $0xa0] sm:$0xff] %v224
  %374 = vst [vmem:[#allocation2 + $0xa8] sm:$0xff] %v226
  %375 = vst [vmem:[#allocation2 + $0xb0] sm:$0xff] %v337
  %376 = vst [vmem:[#allocation2 + $0xb8] sm:$0xff] %v339
  %377 = vst [vmem:[#allocation2 + $0xc0] sm:$0xff] %v230
  %378 = vst [vmem:[#allocation2 + $0xc8] sm:$0xff] %v232
  %379 = vst [vmem:[#allocation2 + $0xd0] sm:$0xff] %v343
  %380 = vst [vmem:[#allocation2 + $0xd8] sm:$0xff] %v345
  %381 = vst [vmem:[#allocation2 + $0xe0] sm:$0xff] %v236
  %382 = vst [vmem:[#allocation2 + $0xe8] sm:$0xff] %v238
  %383 = vst [vmem:[#allocation2 + $0xf0] sm:$0xff] %v349
  %384 = vst [vmem:[#allocation2 + $0xf8] sm:$0xff] %v351
  %v385 = vld [vmem:[%s5] sm:$0xff]
  %v386 = vld [vmem:[%s5 + $0x8] sm:$0xff]
  %v387 = vld [vmem:[%s5 + $0x10] sm:$0xff]
  %v388 = vld [vmem:[%s5 + $0x18] sm:$0xff]
  %v389 = vld [vmem:[%s5 + $0x20] sm:$0xff]
  %v390 = vld [vmem:[%s5 + $0x28] sm:$0xff]
  %v391 = vld [vmem:[%s5 + $0x30] sm:$0xff]
  %v392 = vld [vmem:[%s5 + $0x38] sm:$0xff]
  %v393 = vld [vmem:[%s5 + $0x40] sm:$0xff]
  %v394 = vld [vmem:[%s5 + $0x48] sm:$0xff]
  %v395 = vld [vmem:[%s5 + $0x50] sm:$0xff]
  %v396 = vld [vmem:[%s5 + $0x58] sm:$0xff]
  %v397 = vld [vmem:[%s5 + $0x60] sm:$0xff]
  %v398 = vld [vmem:[%s5 + $0x68] sm:$0xff]
  %v399 = vld [vmem:[%s5 + $0x70] sm:$0xff]
  %v400 = vld [vmem:[%s5 + $0x78] sm:$0xff]
  %v401 = vld [vmem:[%s5 + $0x80] sm:$0xff]
  %v402 = vld [vmem:[%s5 + $0x88] sm:$0xff]
  %v403 = vld [vmem:[%s5 + $0x90] sm:$0xff]
  %v404 = vld [vmem:[%s5 + $0x98] sm:$0xff]
  %v405 = vld [vmem:[%s5 + $0xa0] sm:$0xff]
  %v406 = vld [vmem:[%s5 + $0xa8] sm:$0xff]
  %v407 = vld [vmem:[%s5 + $0xb0] sm:$0xff]
  %v408 = vld [vmem:[%s5 + $0xb8] sm:$0xff]
  %v409 = vld [vmem:[%s5 + $0xc0] sm:$0xff]
  %v410 = vld [vmem:[%s5 + $0xc8] sm:$0xff]
  %v411 = vld [vmem:[%s5 + $0xd0] sm:$0xff]
  %v412 = vld [vmem:[%s5 + $0xd8] sm:$0xff]
  %v413 = vld [vmem:[%s5 + $0xe0] sm:$0xff]
  %v414 = vld [vmem:[%s5 + $0xe8] sm:$0xff]
  %v415 = vld [vmem:[%s5 + $0xf0] sm:$0xff]
  %v416 = vld [vmem:[%s5 + $0xf8] sm:$0xff]
  %v417 = vld [vmem:[%s5 + $0x100] sm:$0xff]
  %v418 = vld [vmem:[%s5 + $0x108] sm:$0xff]
  %v419 = vld [vmem:[%s5 + $0x110] sm:$0xff]
  %v420 = vld [vmem:[%s5 + $0x118] sm:$0xff]
  %v421 = vld [vmem:[%s5 + $0x120] sm:$0xff]
  %v422 = vld [vmem:[%s5 + $0x128] sm:$0xff]
  %v423 = vld [vmem:[%s5 + $0x130] sm:$0xff]
  %v424 = vld [vmem:[%s5 + $0x138] sm:$0xff]
  %v425 = vld [vmem:[%s5 + $0x140] sm:$0xff]
  %v426 = vld [vmem:[%s5 + $0x148] sm:$0xff]
  %v427 = vld [vmem:[%s5 + $0x150] sm:$0xff]
  %v428 = vld [vmem:[%s5 + $0x158] sm:$0xff]
  %v429 = vld [vmem:[%s5 + $0x160] sm:$0xff]
  %v430 = vld [vmem:[%s5 + $0x168] sm:$0xff]
  %v431 = vld [vmem:[%s5 + $0x170] sm:$0xff]
  %v432 = vld [vmem:[%s5 + $0x178] sm:$0xff]
  %v433 = vld [vmem:[%s5 + $0x180] sm:$0xff]
  %v434 = vld [vmem:[%s5 + $0x188] sm:$0xff]
  %v435 = vld [vmem:[%s5 + $0x190] sm:$0xff]
  %v436 = vld [vmem:[%s5 + $0x198] sm:$0xff]
  %v437 = vld [vmem:[%s5 + $0x1a0] sm:$0xff]
  %v438 = vld [vmem:[%s5 + $0x1a8] sm:$0xff]
  %v439 = vld [vmem:[%s5 + $0x1b0] sm:$0xff]
  %v440 = vld [vmem:[%s5 + $0x1b8] sm:$0xff]
  %v441 = vld [vmem:[%s5 + $0x1c0] sm:$0xff]
  %v442 = vld [vmem:[%s5 + $0x1c8] sm:$0xff]
  %v443 = vld [vmem:[%s5 + $0x1d0] sm:$0xff]
  %v444 = vld [vmem:[%s5 + $0x1d8] sm:$0xff]
  %v445 = vld [vmem:[%s5 + $0x1e0] sm:$0xff]
  %v446 = vld [vmem:[%s5 + $0x1e8] sm:$0xff]
  %v447 = vld [vmem:[%s5 + $0x1f0] sm:$0xff]
  %v448 = vld [vmem:[%s5 + $0x1f8] sm:$0xff]
  %v449 = vld [vmem:[%s6] sm:$0xff]
  %v450 = vld [vmem:[%s6 + $0x8] sm:$0xff]
  %v451 = vld [vmem:[%s6 + $0x10] sm:$0xff]
  %v452 = vld [vmem:[%s6 + $0x18] sm:$0xff]
  %v453 = vld [vmem:[%s6 + $0x20] sm:$0xff]
  %v454 = vld [vmem:[%s6 + $0x28] sm:$0xff]
  %v455 = vld [vmem:[%s6 + $0x30] sm:$0xff]
  %v456 = vld [vmem:[%s6 + $0x38] sm:$0xff]
  %v457 = vld [vmem:[%s6 + $0x40] sm:$0xff]
  %v458 = vld [vmem:[%s6 + $0x48] sm:$0xff]
  %v459 = vld [vmem:[%s6 + $0x50] sm:$0xff]
  %v460 = vld [vmem:[%s6 + $0x58] sm:$0xff]
  %v461 = vld [vmem:[%s6 + $0x60] sm:$0xff]
  %v462 = vld [vmem:[%s6 + $0x68] sm:$0xff]
  %v463 = vld [vmem:[%s6 + $0x70] sm:$0xff]
  %v464 = vld [vmem:[%s6 + $0x78] sm:$0xff]
  %v465 = vld [vmem:[%s6 + $0x80] sm:$0xff]
  %v466 = vld [vmem:[%s6 + $0x88] sm:$0xff]
  %v467 = vld [vmem:[%s6 + $0x90] sm:$0xff]
  %v468 = vld [vmem:[%s6 + $0x98] sm:$0xff]
  %v469 = vld [vmem:[%s6 + $0xa0] sm:$0xff]
  %v470 = vld [vmem:[%s6 + $0xa8] sm:$0xff]
  %v471 = vld [vmem:[%s6 + $0xb0] sm:$0xff]
  %v472 = vld [vmem:[%s6 + $0xb8] sm:$0xff]
  %v473 = vld [vmem:[%s6 + $0xc0] sm:$0xff]
  %v474 = vld [vmem:[%s6 + $0xc8] sm:$0xff]
  %v475 = vld [vmem:[%s6 + $0xd0] sm:$0xff]
  %v476 = vld [vmem:[%s6 + $0xd8] sm:$0xff]
  %v477 = vld [vmem:[%s6 + $0xe0] sm:$0xff]
  %v478 = vld [vmem:[%s6 + $0xe8] sm:$0xff]
  %v479 = vld [vmem:[%s6 + $0xf0] sm:$0xff]
  %v480 = vld [vmem:[%s6 + $0xf8] sm:$0xff]
  %v481 = vld [vmem:[%s6 + $0x100] sm:$0xff]
  %v482 = vld [vmem:[%s6 + $0x108] sm:$0xff]
  %v483 = vld [vmem:[%s6 + $0x110] sm:$0xff]
  %v484 = vld [vmem:[%s6 + $0x118] sm:$0xff]
  %v485 = vld [vmem:[%s6 + $0x120] sm:$0xff]
  %v486 = vld [vmem:[%s6 + $0x128] sm:$0xff]
  %v487 = vld [vmem:[%s6 + $0x130] sm:$0xff]
  %v488 = vld [vmem:[%s6 + $0x138] sm:$0xff]
  %v489 = vld [vmem:[%s6 + $0x140] sm:$0xff]
  %v490 = vld [vmem:[%s6 + $0x148] sm:$0xff]
  %v491 = vld [vmem:[%s6 + $0x150] sm:$0xff]
  %v492 = vld [vmem:[%s6 + $0x158] sm:$0xff]
  %v493 = vld [vmem:[%s6 + $0x160] sm:$0xff]
  %v494 = vld [vmem:[%s6 + $0x168] sm:$0xff]
  %v495 = vld [vmem:[%s6 + $0x170] sm:$0xff]
  %v496 = vld [vmem:[%s6 + $0x178] sm:$0xff]
  %v497 = vld [vmem:[%s6 + $0x180] sm:$0xff]
  %v498 = vld [vmem:[%s6 + $0x188] sm:$0xff]
  %v499 = vld [vmem:[%s6 + $0x190] sm:$0xff]
  %v500 = vld [vmem:[%s6 + $0x198] sm:$0xff]
  %v501 = vld [vmem:[%s6 + $0x1a0] sm:$0xff]
  %v502 = vld [vmem:[%s6 + $0x1a8] sm:$0xff]
  %v503 = vld [vmem:[%s6 + $0x1b0] sm:$0xff]
  %v504 = vld [vmem:[%s6 + $0x1b8] sm:$0xff]
  %v505 = vld [vmem:[%s6 + $0x1c0] sm:$0xff]
  %v506 = vld [vmem:[%s6 + $0x1c8] sm:$0xff]
  %v507 = vld [vmem:[%s6 + $0x1d0] sm:$0xff]
  %v508 = vld [vmem:[%s6 + $0x1d8] sm:$0xff]
  %v509 = vld [vmem:[%s6 + $0x1e0] sm:$0xff]
  %v510 = vld [vmem:[%s6 + $0x1e8] sm:$0xff]
  %v511 = vld [vmem:[%s6 + $0x1f0] sm:$0xff]
  %v512 = vld [vmem:[%s6 + $0x1f8] sm:$0xff]
  %v513 = vld [vmem:[%s6 + $0x200] sm:$0xff]
  %v514 = vld [vmem:[%s6 + $0x208] sm:$0xff]
  %v515 = vld [vmem:[%s6 + $0x210] sm:$0xff]
  %v516 = vld [vmem:[%s6 + $0x218] sm:$0xff]
  %v517 = vld [vmem:[%s6 + $0x220] sm:$0xff]
  %v518 = vld [vmem:[%s6 + $0x228] sm:$0xff]
  %v519 = vld [vmem:[%s6 + $0x230] sm:$0xff]
  %v520 = vld [vmem:[%s6 + $0x238] sm:$0xff]
  %v521 = vld [vmem:[%s6 + $0x240] sm:$0xff]
  %v522 = vld [vmem:[%s6 + $0x248] sm:$0xff]
  %v523 = vld [vmem:[%s6 + $0x250] sm:$0xff]
  %v524 = vld [vmem:[%s6 + $0x258] sm:$0xff]
  %v525 = vld [vmem:[%s6 + $0x260] sm:$0xff]
  %v526 = vld [vmem:[%s6 + $0x268] sm:$0xff]
  %v527 = vld [vmem:[%s6 + $0x270] sm:$0xff]
  %v528 = vld [vmem:[%s6 + $0x278] sm:$0xff]
  %v529 = vld [vmem:[%s6 + $0x280] sm:$0xff]
  %v530 = vld [vmem:[%s6 + $0x288] sm:$0xff]
  %v531 = vld [vmem:[%s6 + $0x290] sm:$0xff]
  %v532 = vld [vmem:[%s6 + $0x298] sm:$0xff]
  %v533 = vld [vmem:[%s6 + $0x2a0] sm:$0xff]
  %v534 = vld [vmem:[%s6 + $0x2a8] sm:$0xff]
  %v535 = vld [vmem:[%s6 + $0x2b0] sm:$0xff]
  %v536 = vld [vmem:[%s6 + $0x2b8] sm:$0xff]
  %v537 = vld [vmem:[%s6 + $0x2c0] sm:$0xff]
  %v538 = vld [vmem:[%s6 + $0x2c8] sm:$0xff]
  %v539 = vld [vmem:[%s6 + $0x2d0] sm:$0xff]
  %v540 = vld [vmem:[%s6 + $0x2d8] sm:$0xff]
  %v541 = vld [vmem:[%s6 + $0x2e0] sm:$0xff]
  %v542 = vld [vmem:[%s6 + $0x2e8] sm:$0xff]
  %v543 = vld [vmem:[%s6 + $0x2f0] sm:$0xff]
  %v544 = vld [vmem:[%s6 + $0x2f8] sm:$0xff]
  %v545 = vld [vmem:[%s6 + $0x300] sm:$0xff]
  %v546 = vld [vmem:[%s6 + $0x308] sm:$0xff]
  %v547 = vld [vmem:[%s6 + $0x310] sm:$0xff]
  %v548 = vld [vmem:[%s6 + $0x318] sm:$0xff]
  %v549 = vld [vmem:[%s6 + $0x320] sm:$0xff]
  %v550 = vld [vmem:[%s6 + $0x328] sm:$0xff]
  %v551 = vld [vmem:[%s6 + $0x330] sm:$0xff]
  %v552 = vld [vmem:[%s6 + $0x338] sm:$0xff]
  %v553 = vld [vmem:[%s6 + $0x340] sm:$0xff]
  %v554 = vld [vmem:[%s6 + $0x348] sm:$0xff]
  %v555 = vld [vmem:[%s6 + $0x350] sm:$0xff]
  %v556 = vld [vmem:[%s6 + $0x358] sm:$0xff]
  %v557 = vld [vmem:[%s6 + $0x360] sm:$0xff]
  %v558 = vld [vmem:[%s6 + $0x368] sm:$0xff]
  %v559 = vld [vmem:[%s6 + $0x370] sm:$0xff]
  %v560 = vld [vmem:[%s6 + $0x378] sm:$0xff]
  %v561 = vld [vmem:[%s6 + $0x380] sm:$0xff]
  %v562 = vld [vmem:[%s6 + $0x388] sm:$0xff]
  %v563 = vld [vmem:[%s6 + $0x390] sm:$0xff]
  %v564 = vld [vmem:[%s6 + $0x398] sm:$0xff]
  %v565 = vld [vmem:[%s6 + $0x3a0] sm:$0xff]
  %v566 = vld [vmem:[%s6 + $0x3a8] sm:$0xff]
  %v567 = vld [vmem:[%s6 + $0x3b0] sm:$0xff]
  %v568 = vld [vmem:[%s6 + $0x3b8] sm:$0xff]
  %v569 = vld [vmem:[%s6 + $0x3c0] sm:$0xff]
  %v570 = vld [vmem:[%s6 + $0x3c8] sm:$0xff]
  %v571 = vld [vmem:[%s6 + $0x3d0] sm:$0xff]
  %v572 = vld [vmem:[%s6 + $0x3d8] sm:$0xff]
  %v573 = vld [vmem:[%s6 + $0x3e0] sm:$0xff]
  %v574 = vld [vmem:[%s6 + $0x3e8] sm:$0xff]
  %v575 = vld [vmem:[%s6 + $0x3f0] sm:$0xff]
  %v576 = vld [vmem:[%s6 + $0x3f8] sm:$0xff]
  %v577 = vld [vmem:[%s7] sm:$0xf]
  %v579 = vlaneseq
  %v580 = vshrl.u32 %v579, 7
  %v581 = vsub.s32 0, %v580
  %v582 = vrot.slane %v577, %v581
  %v583 = vlaneseq
  %v584 = vshrl.u32 %v583, 7
  %v585 = vsub.s32 1, %v584
  %v586 = vrot.slane %v577, %v585
  %v587 = vlaneseq
  %v588 = vshrl.u32 %v587, 7
  %v589 = vsub.s32 2, %v588
  %v590 = vrot.slane %v577, %v589
  %v591 = vlaneseq
  %v592 = vshrl.u32 %v591, 7
  %v593 = vsub.s32 3, %v592
  %v594 = vrot.slane %v577, %v593
  %v599 = vld [vmem:[#allocation3] sm:$0xff]
  %v600 = vld [vmem:[#allocation4] sm:$0xff]
  %v601 = vld [vmem:[#allocation5] sm:$0xff]
  %v602 = vld [vmem:[#allocation6] sm:$0xff]
  %v603 = vld [vmem:[#allocation7] sm:$0xff]
  %v604 = vld [vmem:[#allocation8] sm:$0xff]
  %v605 = vld [vmem:[#allocation2] sm:$0xff]
  %v606 = vld [vmem:[#allocation2 + $0x8] sm:$0xff]
  %v607 = vld [vmem:[#allocation2 + $0x10] sm:$0xff]
  %v608 = vld [vmem:[#allocation2 + $0x18] sm:$0xff]
  %609 = vmatprep.subr.mxu0 %v386
  %610 = vmatpush1.msra.mxu0 %v385
  %611 = vmatprep.subr.mxu0 %v390
  %612 = vmatpush1.msra.mxu0 %v389
  %613 = vmatprep.subr.mxu0 %v394
  %614 = vmatpush1.msra.mxu0 %v393
  %615 = vmatprep.subr.mxu0 %v398
  %616 = vmatpush1.msra.mxu0 %v397
  %617 = vmatprep.subr.mxu0 %v402
  %618 = vmatpush1.msra.mxu0 %v401
  %619 = vmatprep.subr.mxu0 %v406
  %620 = vmatpush1.msra.mxu0 %v405
  %621 = vmatprep.subr.mxu0 %v410
  %622 = vmatpush1.msra.mxu0 %v409
  %623 = vmatprep.subr.mxu0 %v414
  %624 = vmatpush1.msra.mxu0 %v413
  %625 = vmatprep.subr.mxu0 %v418
  %626 = vmatpush1.msra.mxu0 %v417
  %627 = vmatprep.subr.mxu0 %v422
  %628 = vmatpush1.msra.mxu0 %v421
  %629 = vmatprep.subr.mxu0 %v426
  %630 = vmatpush1.msra.mxu0 %v425
  %631 = vmatprep.subr.mxu0 %v430
  %632 = vmatpush1.msra.mxu0 %v429
  %633 = vmatprep.subr.mxu0 %v434
  %634 = vmatpush1.msra.mxu0 %v433
  %635 = vmatprep.subr.mxu0 %v438
  %636 = vmatpush1.msra.mxu0 %v437
  %637 = vmatprep.subr.mxu0 %v442
  %638 = vmatpush1.msra.mxu0 %v441
  %639 = vmatprep.subr.mxu0 %v446
  %640 = vmatpush1.msra.mxu0 %v445
  %641 = vmatprep.subr.mxu0 0.0
  %642 = vmatpush1.msra.mxu0 0.0
  %643 = vmatprep.subr.mxu0 0.0
  %644 = vmatpush1.msra.mxu0 0.0
  %645 = vmatprep.subr.mxu0 0.0
  %646 = vmatpush1.msra.mxu0 0.0
  %647 = vmatprep.subr.mxu0 0.0
  %648 = vmatpush1.msra.mxu0 0.0
  %649 = vmatprep.subr.mxu0 0.0
  %650 = vmatpush1.msra.mxu0 0.0
  %651 = vmatprep.subr.mxu0 0.0
  %652 = vmatpush1.msra.mxu0 0.0
  %653 = vmatprep.subr.mxu0 0.0
  %654 = vmatpush1.msra.mxu0 0.0
  %655 = vmatprep.subr.mxu0 0.0
  %656 = vmatpush1.msra.mxu0 0.0
  %657 = vmatprep.subr.mxu0 0.0
  %658 = vmatpush1.msra.mxu0 0.0
  %659 = vmatprep.subr.mxu0 0.0
  %660 = vmatpush1.msra.mxu0 0.0
  %661 = vmatprep.subr.mxu0 0.0
  %662 = vmatpush1.msra.mxu0 0.0
  %663 = vmatprep.subr.mxu0 0.0
  %664 = vmatpush1.msra.mxu0 0.0
  %665 = vmatprep.subr.mxu0 0.0
  %666 = vmatpush1.msra.mxu0 0.0
  %667 = vmatprep.subr.mxu0 0.0
  %668 = vmatpush1.msra.mxu0 0.0
  %669 = vmatprep.subr.mxu0 0.0
  %670 = vmatpush1.msra.mxu0 0.0
  %671 = vmatprep.subr.mxu0 0.0
  %672 = vmatpush1.msra.mxu0 0.0
  %673 = vmatprep.mubr.f32.mxu0 0.0
  %674 = vmatmul.mubr.f32.gmra.mrb[0].mxu0 %v599
  %v675 = vpop.f32.mrb[0].mxu0
  %v676 = vadd.f32 0.0, %v675
  %v677 = vpop.f32.mrb[0].mxu0
  %v678 = vadd.f32 0.0, %v677
  %679 = vdwg.mxu0
  %680 = vmatprep.subr.mxu0 %v388
  %681 = vmatpush1.msra.mxu0 %v387
  %682 = vmatprep.subr.mxu0 %v392
  %683 = vmatpush1.msra.mxu0 %v391
  %684 = vmatprep.subr.mxu0 %v396
  %685 = vmatpush1.msra.mxu0 %v395
  %686 = vmatprep.subr.mxu0 %v400
  %687 = vmatpush1.msra.mxu0 %v399
  %688 = vmatprep.subr.mxu0 %v404
  %689 = vmatpush1.msra.mxu0 %v403
  %690 = vmatprep.subr.mxu0 %v408
  %691 = vmatpush1.msra.mxu0 %v407
  %692 = vmatprep.subr.mxu0 %v412
  %693 = vmatpush1.msra.mxu0 %v411
  %694 = vmatprep.subr.mxu0 %v416
  %695 = vmatpush1.msra.mxu0 %v415
  %696 = vmatprep.subr.mxu0 %v420
  %697 = vmatpush1.msra.mxu0 %v419
  %698 = vmatprep.subr.mxu0 %v424
  %699 = vmatpush1.msra.mxu0 %v423
  %700 = vmatprep.subr.mxu0 %v428
  %701 = vmatpush1.msra.mxu0 %v427
  %702 = vmatprep.subr.mxu0 %v432
  %703 = vmatpush1.msra.mxu0 %v431
  %704 = vmatprep.subr.mxu0 %v436
  %705 = vmatpush1.msra.mxu0 %v435
  %706 = vmatprep.subr.mxu0 %v440
  %707 = vmatpush1.msra.mxu0 %v439
  %708 = vmatprep.subr.mxu0 %v444
  %709 = vmatpush1.msra.mxu0 %v443
  %710 = vmatprep.subr.mxu0 %v448
  %711 = vmatpush1.msra.mxu0 %v447
  %712 = vmatprep.subr.mxu0 0.0
  %713 = vmatpush1.msra.mxu0 0.0
  %714 = vmatprep.subr.mxu0 0.0
  %715 = vmatpush1.msra.mxu0 0.0
  %716 = vmatprep.subr.mxu0 0.0
  %717 = vmatpush1.msra.mxu0 0.0
  %718 = vmatprep.subr.mxu0 0.0
  %719 = vmatpush1.msra.mxu0 0.0
  %720 = vmatprep.subr.mxu0 0.0
  %721 = vmatpush1.msra.mxu0 0.0
  %722 = vmatprep.subr.mxu0 0.0
  %723 = vmatpush1.msra.mxu0 0.0
  %724 = vmatprep.subr.mxu0 0.0
  %725 = vmatpush1.msra.mxu0 0.0
  %726 = vmatprep.subr.mxu0 0.0
  %727 = vmatpush1.msra.mxu0 0.0
  %728 = vmatprep.subr.mxu0 0.0
  %729 = vmatpush1.msra.mxu0 0.0
  %730 = vmatprep.subr.mxu0 0.0
  %731 = vmatpush1.msra.mxu0 0.0
  %732 = vmatprep.subr.mxu0 0.0
  %733 = vmatpush1.msra.mxu0 0.0
  %734 = vmatprep.subr.mxu0 0.0
  %735 = vmatpush1.msra.mxu0 0.0
  %736 = vmatprep.subr.mxu0 0.0
  %737 = vmatpush1.msra.mxu0 0.0
  %738 = vmatprep.subr.mxu0 0.0
  %739 = vmatpush1.msra.mxu0 0.0
  %740 = vmatprep.subr.mxu0 0.0
  %741 = vmatpush1.msra.mxu0 0.0
  %742 = vmatprep.subr.mxu0 0.0
  %743 = vmatpush1.msra.mxu0 0.0
  %744 = vmatprep.mubr.f32.mxu0 0.0
  %745 = vmatmul.mubr.f32.gmra.mrb[0].mxu0 %v599
  %v746 = vpop.f32.mrb[0].mxu0
  %v747 = vadd.f32 0.0, %v746
  %v748 = vpop.f32.mrb[0].mxu0
  %v749 = vadd.f32 0.0, %v748
  %750 = vdwg.mxu0
  %v751 = vadd.f32 %v605, %v676
  %v752 = vadd.f32 %v606, %v678
  %v753 = vadd.f32 %v607, %v747
  %v754 = vadd.f32 %v608, %v749
  %v755 = vxor.u32 %v751, 2147483648
  %v756 = vmul.f32 %v755, 1.442695
  %v757 = vpow.pop %v756
  %v758 = vadd.f32 %v757, 1.0
  %v759 = vrcp.pop %v758
  %v760 = vmul.f32 1.0, %v759
  %v761 = vxor.u32 %v752, 2147483648
  %v762 = vmul.f32 %v761, 1.442695
  %v763 = vpow.pop %v762
  %v764 = vadd.f32 %v763, 1.0
  %v765 = vrcp.pop %v764
  %v766 = vmul.f32 1.0, %v765
  %v767 = vtanh.pop %v753
  %v768 = vxor.u32 %v754, 2147483648
  %v769 = vmul.f32 %v768, 1.442695
  %v770 = vpow.pop %v769
  %v771 = vadd.f32 %v770, 1.0
  %v772 = vrcp.pop %v771
  %v773 = vmul.f32 1.0, %v772
  %v774 = vmul.f32 %v766, %v600
  %v775 = vmul.f32 %v760, %v767
  %v776 = vadd.f32 %v774, %v775
  %v777 = vtanh.pop %v776
  %v778 = vmul.f32 %v773, %v777
  %779 = vmatprep.subr.mxu0 %v450
  %780 = vmatpush1.msra.mxu0 %v449
  %781 = vmatprep.subr.mxu0 %v454
  %782 = vmatpush1.msra.mxu0 %v453
  %783 = vmatprep.subr.mxu0 %v458
  %784 = vmatpush1.msra.mxu0 %v457
  %785 = vmatprep.subr.mxu0 %v462
  %786 = vmatpush1.msra.mxu0 %v461
  %787 = vmatprep.subr.mxu0 %v466
  %788 = vmatpush1.msra.mxu0 %v465
  %789 = vmatprep.subr.mxu0 %v470
  %790 = vmatpush1.msra.mxu0 %v469
  %791 = vmatprep.subr.mxu0 %v474
  %792 = vmatpush1.msra.mxu0 %v473
  %793 = vmatprep.subr.mxu0 %v478
  %794 = vmatpush1.msra.mxu0 %v477
  %795 = vmatprep.subr.mxu0 %v482
  %796 = vmatpush1.msra.mxu0 %v481
  %797 = vmatprep.subr.mxu0 %v486
  %798 = vmatpush1.msra.mxu0 %v485
  %799 = vmatprep.subr.mxu0 %v490
  %800 = vmatpush1.msra.mxu0 %v489
  %801 = vmatprep.subr.mxu0 %v494
  %802 = vmatpush1.msra.mxu0 %v493
  %803 = vmatprep.subr.mxu0 %v498
  %804 = vmatpush1.msra.mxu0 %v497
  %805 = vmatprep.subr.mxu0 %v502
  %806 = vmatpush1.msra.mxu0 %v501
  %807 = vmatprep.subr.mxu0 %v506
  %808 = vmatpush1.msra.mxu0 %v505
  %809 = vmatprep.subr.mxu0 %v510
  %810 = vmatpush1.msra.mxu0 %v509
  %811 = vmatprep.subr.mxu0 %v514
  %812 = vmatpush1.msra.mxu0 %v513
  %813 = vmatprep.subr.mxu0 %v518
  %814 = vmatpush1.msra.mxu0 %v517
  %815 = vmatprep.subr.mxu0 %v522
  %816 = vmatpush1.msra.mxu0 %v521
  %817 = vmatprep.subr.mxu0 %v526
  %818 = vmatpush1.msra.mxu0 %v525
  %819 = vmatprep.subr.mxu0 %v530
  %820 = vmatpush1.msra.mxu0 %v529
  %821 = vmatprep.subr.mxu0 %v534
  %822 = vmatpush1.msra.mxu0 %v533
  %823 = vmatprep.subr.mxu0 %v538
  %824 = vmatpush1.msra.mxu0 %v537
  %825 = vmatprep.subr.mxu0 %v542
  %826 = vmatpush1.msra.mxu0 %v541
  %827 = vmatprep.subr.mxu0 %v546
  %828 = vmatpush1.msra.mxu0 %v545
  %829 = vmatprep.subr.mxu0 %v550
  %830 = vmatpush1.msra.mxu0 %v549
  %831 = vmatprep.subr.mxu0 %v554
  %832 = vmatpush1.msra.mxu0 %v553
  %833 = vmatprep.subr.mxu0 %v558
  %834 = vmatpush1.msra.mxu0 %v557
  %835 = vmatprep.subr.mxu0 %v562
  %836 = vmatpush1.msra.mxu0 %v561
  %837 = vmatprep.subr.mxu0 %v566
  %838 = vmatpush1.msra.mxu0 %v565
  %839 = vmatprep.subr.mxu0 %v570
  %840 = vmatpush1.msra.mxu0 %v569
  %841 = vmatprep.subr.mxu0 %v574
  %842 = vmatpush1.msra.mxu0 %v573
  %843 = vmatprep.mubr.f32.mxu0 %v601
  %844 = vmatmul.mubr.f32.gmra.mrb[0].mxu0 %v778
  %v845 = vpop.f32.mrb[0].mxu0
  %v846 = vadd.f32 %v582, %v845
  %v847 = vpop.f32.mrb[0].mxu0
  %v848 = vadd.f32 %v586, %v847
  %849 = vdwg.mxu0
  %850 = vmatprep.subr.mxu0 %v452
  %851 = vmatpush1.msra.mxu0 %v451
  %852 = vmatprep.subr.mxu0 %v456
  %853 = vmatpush1.msra.mxu0 %v455
  %854 = vmatprep.subr.mxu0 %v460
  %855 = vmatpush1.msra.mxu0 %v459
  %856 = vmatprep.subr.mxu0 %v464
  %857 = vmatpush1.msra.mxu0 %v463
  %858 = vmatprep.subr.mxu0 %v468
  %859 = vmatpush1.msra.mxu0 %v467
  %860 = vmatprep.subr.mxu0 %v472
  %861 = vmatpush1.msra.mxu0 %v471
  %862 = vmatprep.subr.mxu0 %v476
  %863 = vmatpush1.msra.mxu0 %v475
  %864 = vmatprep.subr.mxu0 %v480
  %865 = vmatpush1.msra.mxu0 %v479
  %866 = vmatprep.subr.mxu0 %v484
  %867 = vmatpush1.msra.mxu0 %v483
  %868 = vmatprep.subr.mxu0 %v488
  %869 = vmatpush1.msra.mxu0 %v487
  %870 = vmatprep.subr.mxu0 %v492
  %871 = vmatpush1.msra.mxu0 %v491
  %872 = vmatprep.subr.mxu0 %v496
  %873 = vmatpush1.msra.mxu0 %v495
  %874 = vmatprep.subr.mxu0 %v500
  %875 = vmatpush1.msra.mxu0 %v499
  %876 = vmatprep.subr.mxu0 %v504
  %877 = vmatpush1.msra.mxu0 %v503
  %878 = vmatprep.subr.mxu0 %v508
  %879 = vmatpush1.msra.mxu0 %v507
  %880 = vmatprep.subr.mxu0 %v512
  %881 = vmatpush1.msra.mxu0 %v511
  %882 = vmatprep.subr.mxu0 %v516
  %883 = vmatpush1.msra.mxu0 %v515
  %884 = vmatprep.subr.mxu0 %v520
  %885 = vmatpush1.msra.mxu0 %v519
  %886 = vmatprep.subr.mxu0 %v524
  %887 = vmatpush1.msra.mxu0 %v523
  %888 = vmatprep.subr.mxu0 %v528
  %889 = vmatpush1.msra.mxu0 %v527
  %890 = vmatprep.subr.mxu0 %v532
  %891 = vmatpush1.msra.mxu0 %v531
  %892 = vmatprep.subr.mxu0 %v536
  %893 = vmatpush1.msra.mxu0 %v535
  %894 = vmatprep.subr.mxu0 %v540
  %895 = vmatpush1.msra.mxu0 %v539
  %896 = vmatprep.subr.mxu0 %v544
  %897 = vmatpush1.msra.mxu0 %v543
  %898 = vmatprep.subr.mxu0 %v548
  %899 = vmatpush1.msra.mxu0 %v547
  %900 = vmatprep.subr.mxu0 %v552
  %901 = vmatpush1.msra.mxu0 %v551
  %902 = vmatprep.subr.mxu0 %v556
  %903 = vmatpush1.msra.mxu0 %v555
  %904 = vmatprep.subr.mxu0 %v560
  %905 = vmatpush1.msra.mxu0 %v559
  %906 = vmatprep.subr.mxu0 %v564
  %907 = vmatpush1.msra.mxu0 %v563
  %908 = vmatprep.subr.mxu0 %v568
  %909 = vmatpush1.msra.mxu0 %v567
  %910 = vmatprep.subr.mxu0 %v572
  %911 = vmatpush1.msra.mxu0 %v571
  %912 = vmatprep.subr.mxu0 %v576
  %913 = vmatpush1.msra.mxu0 %v575
  %914 = vmatprep.mubr.f32.mxu0 %v601
  %915 = vmatmul.mubr.f32.gmra.mrb[0].mxu0 %v778
  %v916 = vpop.f32.mrb[0].mxu0
  %v917 = vadd.f32 %v590, %v916
  %v918 = vpop.f32.mrb[0].mxu0
  %v919 = vadd.f32 %v594, %v918
  %920 = vdwg.mxu0
  %v921 = vxor.u32 %v846, 2147483648
  %v922 = vmul.f32 %v921, 1.442695
  %v923 = vpow.pop %v922
  %v924 = vadd.f32 %v923, 1.0
  %v925 = vrcp.pop %v924
  %v926 = vmul.f32 1.0, %v925
  %v927 = vxor.u32 %v848, 2147483648
  %v928 = vmul.f32 %v927, 1.442695
  %v929 = vpow.pop %v928
  %v930 = vadd.f32 %v929, 1.0
  %v931 = vrcp.pop %v930
  %v932 = vmul.f32 1.0, %v931
  %v933 = vtanh.pop %v917
  %v934 = vxor.u32 %v919, 2147483648
  %v935 = vmul.f32 %v934, 1.442695
  %v936 = vpow.pop %v935
  %v937 = vadd.f32 %v936, 1.0
  %v938 = vrcp.pop %v937
  %v939 = vmul.f32 1.0, %v938
  %v940 = vmul.f32 %v932, %v602
  %v941 = vmul.f32 %v926, %v933
  %v942 = vadd.f32 %v940, %v941
  %v943 = vtanh.pop %v942
  %v944 = vmul.f32 %v939, %v943
  %v945 = vmax.f32 %v603, %v944
  %v946 = vadd.f32 %v604, %v944
  %s947 = scalar_lea.vmem [#allocation2], 32
  %v948 = vld [vmem:[%s947] sm:$0xff]
  %v949 = vld [vmem:[%s947 + $0x8] sm:$0xff]
  %v950 = vld [vmem:[%s947 + $0x10] sm:$0xff]
  %v951 = vld [vmem:[%s947 + $0x18] sm:$0xff]
  %952 = vmatprep.subr.mxu0 %v386
  %953 = vmatpush1.msra.mxu0 %v385
  %954 = vmatprep.subr.mxu0 %v390
  %955 = vmatpush1.msra.mxu0 %v389
  %956 = vmatprep.subr.mxu0 %v394
  %957 = vmatpush1.msra.mxu0 %v393
  %958 = vmatprep.subr.mxu0 %v398
  %959 = vmatpush1.msra.mxu0 %v397
  %960 = vmatprep.subr.mxu0 %v402
  %961 = vmatpush1.msra.mxu0 %v401
  %962 = vmatprep.subr.mxu0 %v406
  %963 = vmatpush1.msra.mxu0 %v405
  %964 = vmatprep.subr.mxu0 %v410
  %965 = vmatpush1.msra.mxu0 %v409
  %966 = vmatprep.subr.mxu0 %v414
  %967 = vmatpush1.msra.mxu0 %v413
  %968 = vmatprep.subr.mxu0 %v418
  %969 = vmatpush1.msra.mxu0 %v417
  %970 = vmatprep.subr.mxu0 %v422
  %971 = vmatpush1.msra.mxu0 %v421
  %972 = vmatprep.subr.mxu0 %v426
  %973 = vmatpush1.msra.mxu0 %v425
  %974 = vmatprep.subr.mxu0 %v430
  %975 = vmatpush1.msra.mxu0 %v429
  %976 = vmatprep.subr.mxu0 %v434
  %977 = vmatpush1.msra.mxu0 %v433
  %978 = vmatprep.subr.mxu0 %v438
  %979 = vmatpush1.msra.mxu0 %v437
  %980 = vmatprep.subr.mxu0 %v442
  %981 = vmatpush1.msra.mxu0 %v441
  %982 = vmatprep.subr.mxu0 %v446
  %983 = vmatpush1.msra.mxu0 %v445
  %984 = vmatprep.subr.mxu0 0.0
  %985 = vmatpush1.msra.mxu0 0.0
  %986 = vmatprep.subr.mxu0 0.0
  %987 = vmatpush1.msra.mxu0 0.0
  %988 = vmatprep.subr.mxu0 0.0
  %989 = vmatpush1.msra.mxu0 0.0
  %990 = vmatprep.subr.mxu0 0.0
  %991 = vmatpush1.msra.mxu0 0.0
  %992 = vmatprep.subr.mxu0 0.0
  %993 = vmatpush1.msra.mxu0 0.0
  %994 = vmatprep.subr.mxu0 0.0
  %995 = vmatpush1.msra.mxu0 0.0
  %996 = vmatprep.subr.mxu0 0.0
  %997 = vmatpush1.msra.mxu0 0.0
  %998 = vmatprep.subr.mxu0 0.0
  %999 = vmatpush1.msra.mxu0 0.0
  %1000 = vmatprep.subr.mxu0 0.0
  %1001 = vmatpush1.msra.mxu0 0.0
  %1002 = vmatprep.subr.mxu0 0.0
  %1003 = vmatpush1.msra.mxu0 0.0
  %1004 = vmatprep.subr.mxu0 0.0
  %1005 = vmatpush1.msra.mxu0 0.0
  %1006 = vmatprep.subr.mxu0 0.0
  %1007 = vmatpush1.msra.mxu0 0.0
  %1008 = vmatprep.subr.mxu0 0.0
  %1009 = vmatpush1.msra.mxu0 0.0
  %1010 = vmatprep.subr.mxu0 0.0
  %1011 = vmatpush1.msra.mxu0 0.0
  %1012 = vmatprep.subr.mxu0 0.0
  %1013 = vmatpush1.msra.mxu0 0.0
  %1014 = vmatprep.subr.mxu0 0.0
  %1015 = vmatpush1.msra.mxu0 0.0
  %1016 = vmatprep.mubr.f32.mxu0 0.0
  %1017 = vmatmul.mubr.f32.gmra.mrb[0].mxu0 %v778
  %v1018 = vpop.f32.mrb[0].mxu0
  %v1019 = vadd.f32 0.0, %v1018
  %v1020 = vpop.f32.mrb[0].mxu0
  %v1021 = vadd.f32 0.0, %v1020
  %1022 = vdwg.mxu0
  %1023 = vmatprep.subr.mxu0 %v388
  %1024 = vmatpush1.msra.mxu0 %v387
  %1025 = vmatprep.subr.mxu0 %v392
  %1026 = vmatpush1.msra.mxu0 %v391
  %1027 = vmatprep.subr.mxu0 %v396
  %1028 = vmatpush1.msra.mxu0 %v395
  %1029 = vmatprep.subr.mxu0 %v400
  %1030 = vmatpush1.msra.mxu0 %v399
  %1031 = vmatprep.subr.mxu0 %v404
  %1032 = vmatpush1.msra.mxu0 %v403
  %1033 = vmatprep.subr.mxu0 %v408
  %1034 = vmatpush1.msra.mxu0 %v407
  %1035 = vmatprep.subr.mxu0 %v412
  %1036 = vmatpush1.msra.mxu0 %v411
  %1037 = vmatprep.subr.mxu0 %v416
  %1038 = vmatpush1.msra.mxu0 %v415
  %1039 = vmatprep.subr.mxu0 %v420
  %1040 = vmatpush1.msra.mxu0 %v419
  %1041 = vmatprep.subr.mxu0 %v424
  %1042 = vmatpush1.msra.mxu0 %v423
  %1043 = vmatprep.subr.mxu0 %v428
  %1044 = vmatpush1.msra.mxu0 %v427
  %1045 = vmatprep.subr.mxu0 %v432
  %1046 = vmatpush1.msra.mxu0 %v431
  %1047 = vmatprep.subr.mxu0 %v436
  %1048 = vmatpush1.msra.mxu0 %v435
  %1049 = vmatprep.subr.mxu0 %v440
  %1050 = vmatpush1.msra.mxu0 %v439
  %1051 = vmatprep.subr.mxu0 %v444
  %1052 = vmatpush1.msra.mxu0 %v443
  %1053 = vmatprep.subr.mxu0 %v448
  %1054 = vmatpush1.msra.mxu0 %v447
  %1055 = vmatprep.subr.mxu0 0.0
  %1056 = vmatpush1.msra.mxu0 0.0
  %1057 = vmatprep.subr.mxu0 0.0
  %1058 = vmatpush1.msra.mxu0 0.0
  %1059 = vmatprep.subr.mxu0 0.0
  %1060 = vmatpush1.msra.mxu0 0.0
  %1061 = vmatprep.subr.mxu0 0.0
  %1062 = vmatpush1.msra.mxu0 0.0
  %1063 = vmatprep.subr.mxu0 0.0
  %1064 = vmatpush1.msra.mxu0 0.0
  %1065 = vmatprep.subr.mxu0 0.0
  %1066 = vmatpush1.msra.mxu0 0.0
  %1067 = vmatprep.subr.mxu0 0.0
  %1068 = vmatpush1.msra.mxu0 0.0
  %1069 = vmatprep.subr.mxu0 0.0
  %1070 = vmatpush1.msra.mxu0 0.0
  %1071 = vmatprep.subr.mxu0 0.0
  %1072 = vmatpush1.msra.mxu0 0.0
  %1073 = vmatprep.subr.mxu0 0.0
  %1074 = vmatpush1.msra.mxu0 0.0
  %1075 = vmatprep.subr.mxu0 0.0
  %1076 = vmatpush1.msra.mxu0 0.0
  %1077 = vmatprep.subr.mxu0 0.0
  %1078 = vmatpush1.msra.mxu0 0.0
  %1079 = vmatprep.subr.mxu0 0.0
  %1080 = vmatpush1.msra.mxu0 0.0
  %1081 = vmatprep.subr.mxu0 0.0
  %1082 = vmatpush1.msra.mxu0 0.0
  %1083 = vmatprep.subr.mxu0 0.0
  %1084 = vmatpush1.msra.mxu0 0.0
  %1085 = vmatprep.subr.mxu0 0.0
  %1086 = vmatpush1.msra.mxu0 0.0
  %1087 = vmatprep.mubr.f32.mxu0 0.0
  %1088 = vmatmul.mubr.f32.gmra.mrb[0].mxu0 %v778
  %v1089 = vpop.f32.mrb[0].mxu0
  %v1090 = vadd.f32 0.0, %v1089
  %v1091 = vpop.f32.mrb[0].mxu0
  %v1092 = vadd.f32 0.0, %v1091
  %1093 = vdwg.mxu0
  %v1094 = vadd.f32 %v948, %v1019
  %v1095 = vadd.f32 %v949, %v1021
  %v1096 = vadd.f32 %v950, %v1090
  %v1097 = vadd.f32 %v951, %v1092
  %v1098 = vxor.u32 %v1094, 2147483648
  %v1099 = vmul.f32 %v1098, 1.442695
  %v1100 = vpow.pop %v1099
  %v1101 = vadd.f32 %v1100, 1.0
  %v1102 = vrcp.pop %v1101
  %v1103 = vmul.f32 1.0, %v1102
  %v1104 = vxor.u32 %v1095, 2147483648
  %v1105 = vmul.f32 %v1104, 1.442695
  %v1106 = vpow.pop %v1105
  %v1107 = vadd.f32 %v1106, 1.0
  %v1108 = vrcp.pop %v1107
  %v1109 = vmul.f32 1.0, %v1108
  %v1110 = vtanh.pop %v1096
  %v1111 = vxor.u32 %v1097, 2147483648
  %v1112 = vmul.f32 %v1111, 1.442695
  %v1113 = vpow.pop %v1112
  %v1114 = vadd.f32 %v1113, 1.0
  %v1115 = vrcp.pop %v1114
  %v1116 = vmul.f32 1.0, %v1115
  %v1117 = vmul.f32 %v1109, %v776
  %v1118 = vmul.f32 %v1103, %v1110
  %v1119 = vadd.f32 %v1117, %v1118
  %v1120 = vtanh.pop %v1119
  %v1121 = vmul.f32 %v1116, %v1120
  %1122 = vmatprep.subr.mxu0 %v450
  %1123 = vmatpush1.msra.mxu0 %v449
  %1124 = vmatprep.subr.mxu0 %v454
  %1125 = vmatpush1.msra.mxu0 %v453
  %1126 = vmatprep.subr.mxu0 %v458
  %1127 = vmatpush1.msra.mxu0 %v457
  %1128 = vmatprep.subr.mxu0 %v462
  %1129 = vmatpush1.msra.mxu0 %v461
  %1130 = vmatprep.subr.mxu0 %v466
  %1131 = vmatpush1.msra.mxu0 %v465
  %1132 = vmatprep.subr.mxu0 %v470
  %1133 = vmatpush1.msra.mxu0 %v469
  %1134 = vmatprep.subr.mxu0 %v474
  %1135 = vmatpush1.msra.mxu0 %v473
  %1136 = vmatprep.subr.mxu0 %v478
  %1137 = vmatpush1.msra.mxu0 %v477
  %1138 = vmatprep.subr.mxu0 %v482
  %1139 = vmatpush1.msra.mxu0 %v481
  %1140 = vmatprep.subr.mxu0 %v486
  %1141 = vmatpush1.msra.mxu0 %v485
  %1142 = vmatprep.subr.mxu0 %v490
  %1143 = vmatpush1.msra.mxu0 %v489
  %1144 = vmatprep.subr.mxu0 %v494
  %1145 = vmatpush1.msra.mxu0 %v493
  %1146 = vmatprep.subr.mxu0 %v498
  %1147 = vmatpush1.msra.mxu0 %v497
  %1148 = vmatprep.subr.mxu0 %v502
  %1149 = vmatpush1.msra.mxu0 %v501
  %1150 = vmatprep.subr.mxu0 %v506
  %1151 = vmatpush1.msra.mxu0 %v505
  %1152 = vmatprep.subr.mxu0 %v510
  %1153 = vmatpush1.msra.mxu0 %v509
  %1154 = vmatprep.subr.mxu0 %v514
  %1155 = vmatpush1.msra.mxu0 %v513
  %1156 = vmatprep.subr.mxu0 %v518
  %1157 = vmatpush1.msra.mxu0 %v517
  %1158 = vmatprep.subr.mxu0 %v522
  %1159 = vmatpush1.msra.mxu0 %v521
  %1160 = vmatprep.subr.mxu0 %v526
  %1161 = vmatpush1.msra.mxu0 %v525
  %1162 = vmatprep.subr.mxu0 %v530
  %1163 = vmatpush1.msra.mxu0 %v529
  %1164 = vmatprep.subr.mxu0 %v534
  %1165 = vmatpush1.msra.mxu0 %v533
  %1166 = vmatprep.subr.mxu0 %v538
  %1167 = vmatpush1.msra.mxu0 %v537
  %1168 = vmatprep.subr.mxu0 %v542
  %1169 = vmatpush1.msra.mxu0 %v541
  %1170 = vmatprep.subr.mxu0 %v546
  %1171 = vmatpush1.msra.mxu0 %v545
  %1172 = vmatprep.subr.mxu0 %v550
  %1173 = vmatpush1.msra.mxu0 %v549
  %1174 = vmatprep.subr.mxu0 %v554
  %1175 = vmatpush1.msra.mxu0 %v553
  %1176 = vmatprep.subr.mxu0 %v558
  %1177 = vmatpush1.msra.mxu0 %v557
  %1178 = vmatprep.subr.mxu0 %v562
  %1179 = vmatpush1.msra.mxu0 %v561
  %1180 = vmatprep.subr.mxu0 %v566
  %1181 = vmatpush1.msra.mxu0 %v565
  %1182 = vmatprep.subr.mxu0 %v570
  %1183 = vmatpush1.msra.mxu0 %v569
  %1184 = vmatprep.subr.mxu0 %v574
  %1185 = vmatpush1.msra.mxu0 %v573
  %1186 = vmatprep.mubr.f32.mxu0 %v944
  %1187 = vmatmul.mubr.f32.gmra.mrb[0].mxu0 %v1121
  %v1188 = vpop.f32.mrb[0].mxu0
  %v1189 = vadd.f32 %v582, %v1188
  %v1190 = vpop.f32.mrb[0].mxu0
  %v1191 = vadd.f32 %v586, %v1190
  %1192 = vdwg.mxu0
  %1193 = vmatprep.subr.mxu0 %v452
  %1194 = vmatpush1.msra.mxu0 %v451
  %1195 = vmatprep.subr.mxu0 %v456
  %1196 = vmatpush1.msra.mxu0 %v455
  %1197 = vmatprep.subr.mxu0 %v460
  %1198 = vmatpush1.msra.mxu0 %v459
  %1199 = vmatprep.subr.mxu0 %v464
  %1200 = vmatpush1.msra.mxu0 %v463
  %1201 = vmatprep.subr.mxu0 %v468
  %1202 = vmatpush1.msra.mxu0 %v467
  %1203 = vmatprep.subr.mxu0 %v472
  %1204 = vmatpush1.msra.mxu0 %v471
  %1205 = vmatprep.subr.mxu0 %v476
  %1206 = vmatpush1.msra.mxu0 %v475
  %1207 = vmatprep.subr.mxu0 %v480
  %1208 = vmatpush1.msra.mxu0 %v479
  %1209 = vmatprep.subr.mxu0 %v484
  %1210 = vmatpush1.msra.mxu0 %v483
  %1211 = vmatprep.subr.mxu0 %v488
  %1212 = vmatpush1.msra.mxu0 %v487
  %1213 = vmatprep.subr.mxu0 %v492
  %1214 = vmatpush1.msra.mxu0 %v491
  %1215 = vmatprep.subr.mxu0 %v496
  %1216 = vmatpush1.msra.mxu0 %v495
  %1217 = vmatprep.subr.mxu0 %v500
  %1218 = vmatpush1.msra.mxu0 %v499
  %1219 = vmatprep.subr.mxu0 %v504
  %1220 = vmatpush1.msra.mxu0 %v503
  %1221 = vmatprep.subr.mxu0 %v508
  %1222 = vmatpush1.msra.mxu0 %v507
  %1223 = vmatprep.subr.mxu0 %v512
  %1224 = vmatpush1.msra.mxu0 %v511
  %1225 = vmatprep.subr.mxu0 %v516
  %1226 = vmatpush1.msra.mxu0 %v515
  %1227 = vmatprep.subr.mxu0 %v520
  %1228 = vmatpush1.msra.mxu0 %v519
  %1229 = vmatprep.subr.mxu0 %v524
  %1230 = vmatpush1.msra.mxu0 %v523
  %1231 = vmatprep.subr.mxu0 %v528
  %1232 = vmatpush1.msra.mxu0 %v527
  %1233 = vmatprep.subr.mxu0 %v532
  %1234 = vmatpush1.msra.mxu0 %v531
  %1235 = vmatprep.subr.mxu0 %v536
  %1236 = vmatpush1.msra.mxu0 %v535
  %1237 = vmatprep.subr.mxu0 %v540
  %1238 = vmatpush1.msra.mxu0 %v539
  %1239 = vmatprep.subr.mxu0 %v544
  %1240 = vmatpush1.msra.mxu0 %v543
  %1241 = vmatprep.subr.mxu0 %v548
  %1242 = vmatpush1.msra.mxu0 %v547
  %1243 = vmatprep.subr.mxu0 %v552
  %1244 = vmatpush1.msra.mxu0 %v551
  %1245 = vmatprep.subr.mxu0 %v556
  %1246 = vmatpush1.msra.mxu0 %v555
  %1247 = vmatprep.subr.mxu0 %v560
  %1248 = vmatpush1.msra.mxu0 %v559
  %1249 = vmatprep.subr.mxu0 %v564
  %1250 = vmatpush1.msra.mxu0 %v563
  %1251 = vmatprep.subr.mxu0 %v568
  %1252 = vmatpush1.msra.mxu0 %v567
  %1253 = vmatprep.subr.mxu0 %v572
  %1254 = vmatpush1.msra.mxu0 %v571
  %1255 = vmatprep.subr.mxu0 %v576
  %1256 = vmatpush1.msra.mxu0 %v575
  %1257 = vmatprep.mubr.f32.mxu0 %v944
  %1258 = vmatmul.mubr.f32.gmra.mrb[0].mxu0 %v1121
  %v1259 = vpop.f32.mrb[0].mxu0
  %v1260 = vadd.f32 %v590, %v1259
  %v1261 = vpop.f32.mrb[0].mxu0
  %v1262 = vadd.f32 %v594, %v1261
  %1263 = vdwg.mxu0
  %v1264 = vxor.u32 %v1189, 2147483648
  %v1265 = vmul.f32 %v1264, 1.442695
  %v1266 = vpow.pop %v1265
  %v1267 = vadd.f32 %v1266, 1.0
  %v1268 = vrcp.pop %v1267
  %v1269 = vmul.f32 1.0, %v1268
  %v1270 = vxor.u32 %v1191, 2147483648
  %v1271 = vmul.f32 %v1270, 1.442695
  %v1272 = vpow.pop %v1271
  %v1273 = vadd.f32 %v1272, 1.0
  %v1274 = vrcp.pop %v1273
  %v1275 = vmul.f32 1.0, %v1274
  %v1276 = vtanh.pop %v1260
  %v1277 = vxor.u32 %v1262, 2147483648
  %v1278 = vmul.f32 %v1277, 1.442695
  %v1279 = vpow.pop %v1278
  %v1280 = vadd.f32 %v1279, 1.0
  %v1281 = vrcp.pop %v1280
  %v1282 = vmul.f32 1.0, %v1281
  %v1283 = vmul.f32 %v1275, %v942
  %v1284 = vmul.f32 %v1269, %v1276
  %v1285 = vadd.f32 %v1283, %v1284
  %v1286 = vtanh.pop %v1285
  %v1287 = vmul.f32 %v1282, %v1286
  %v1288 = vmax.f32 %v945, %v1287
  %v1289 = vadd.f32 %v946, %v1287
  %s1290 = scalar_lea.vmem [#allocation2], 64
  %v1291 = vld [vmem:[%s1290] sm:$0xff]
  %v1292 = vld [vmem:[%s1290 + $0x8] sm:$0xff]
  %v1293 = vld [vmem:[%s1290 + $0x10] sm:$0xff]
  %v1294 = vld [vmem:[%s1290 + $0x18] sm:$0xff]
  %1295 = vmatprep.subr.mxu0 %v386
  %1296 = vmatpush1.msra.mxu0 %v385
  %1297 = vmatprep.subr.mxu0 %v390
  %1298 = vmatpush1.msra.mxu0 %v389
  %1299 = vmatprep.subr.mxu0 %v394
  %1300 = vmatpush1.msra.mxu0 %v393
  %1301 = vmatprep.subr.mxu0 %v398
  %1302 = vmatpush1.msra.mxu0 %v397
  %1303 = vmatprep.subr.mxu0 %v402
  %1304 = vmatpush1.msra.mxu0 %v401
  %1305 = vmatprep.subr.mxu0 %v406
  %1306 = vmatpush1.msra.mxu0 %v405
  %1307 = vmatprep.subr.mxu0 %v410
  %1308 = vmatpush1.msra.mxu0 %v409
  %1309 = vmatprep.subr.mxu0 %v414
  %1310 = vmatpush1.msra.mxu0 %v413
  %1311 = vmatprep.subr.mxu0 %v418
  %1312 = vmatpush1.msra.mxu0 %v417
  %1313 = vmatprep.subr.mxu0 %v422
  %1314 = vmatpush1.msra.mxu0 %v421
  %1315 = vmatprep.subr.mxu0 %v426
  %1316 = vmatpush1.msra.mxu0 %v425
  %1317 = vmatprep.subr.mxu0 %v430
  %1318 = vmatpush1.msra.mxu0 %v429
  %1319 = vmatprep.subr.mxu0 %v434
  %1320 = vmatpush1.msra.mxu0 %v433
  %1321 = vmatprep.subr.mxu0 %v438
  %1322 = vmatpush1.msra.mxu0 %v437
  %1323 = vmatprep.subr.mxu0 %v442
  %1324 = vmatpush1.msra.mxu0 %v441
  %1325 = vmatprep.subr.mxu0 %v446
  %1326 = vmatpush1.msra.mxu0 %v445
  %1327 = vmatprep.subr.mxu0 0.0
  %1328 = vmatpush1.msra.mxu0 0.0
  %1329 = vmatprep.subr.mxu0 0.0
  %1330 = vmatpush1.msra.mxu0 0.0
  %1331 = vmatprep.subr.mxu0 0.0
  %1332 = vmatpush1.msra.mxu0 0.0
  %1333 = vmatprep.subr.mxu0 0.0
  %1334 = vmatpush1.msra.mxu0 0.0
  %1335 = vmatprep.subr.mxu0 0.0
  %1336 = vmatpush1.msra.mxu0 0.0
  %1337 = vmatprep.subr.mxu0 0.0
  %1338 = vmatpush1.msra.mxu0 0.0
  %1339 = vmatprep.subr.mxu0 0.0
  %1340 = vmatpush1.msra.mxu0 0.0
  %1341 = vmatprep.subr.mxu0 0.0
  %1342 = vmatpush1.msra.mxu0 0.0
  %1343 = vmatprep.subr.mxu0 0.0
  %1344 = vmatpush1.msra.mxu0 0.0
  %1345 = vmatprep.subr.mxu0 0.0
  %1346 = vmatpush1.msra.mxu0 0.0
  %1347 = vmatprep.subr.mxu0 0.0
  %1348 = vmatpush1.msra.mxu0 0.0
  %1349 = vmatprep.subr.mxu0 0.0
  %1350 = vmatpush1.msra.mxu0 0.0
  %1351 = vmatprep.subr.mxu0 0.0
  %1352 = vmatpush1.msra.mxu0 0.0
  %1353 = vmatprep.subr.mxu0 0.0
  %1354 = vmatpush1.msra.mxu0 0.0
  %1355 = vmatprep.subr.mxu0 0.0
  %1356 = vmatpush1.msra.mxu0 0.0
  %1357 = vmatprep.subr.mxu0 0.0
  %1358 = vmatpush1.msra.mxu0 0.0
  %1359 = vmatprep.mubr.f32.mxu0 0.0
  %1360 = vmatmul.mubr.f32.gmra.mrb[0].mxu0 %v1121
  %v1361 = vpop.f32.mrb[0].mxu0
  %v1362 = vadd.f32 0.0, %v1361
  %v1363 = vpop.f32.mrb[0].mxu0
  %v1364 = vadd.f32 0.0, %v1363
  %1365 = vdwg.mxu0
  %1366 = vmatprep.subr.mxu0 %v388
  %1367 = vmatpush1.msra.mxu0 %v387
  %1368 = vmatprep.subr.mxu0 %v392
  %1369 = vmatpush1.msra.mxu0 %v391
  %1370 = vmatprep.subr.mxu0 %v396
  %1371 = vmatpush1.msra.mxu0 %v395
  %1372 = vmatprep.subr.mxu0 %v400
  %1373 = vmatpush1.msra.mxu0 %v399
  %1374 = vmatprep.subr.mxu0 %v404
  %1375 = vmatpush1.msra.mxu0 %v403
  %1376 = vmatprep.subr.mxu0 %v408
  %1377 = vmatpush1.msra.mxu0 %v407
  %1378 = vmatprep.subr.mxu0 %v412
  %1379 = vmatpush1.msra.mxu0 %v411
  %1380 = vmatprep.subr.mxu0 %v416
  %1381 = vmatpush1.msra.mxu0 %v415
  %1382 = vmatprep.subr.mxu0 %v420
  %1383 = vmatpush1.msra.mxu0 %v419
  %1384 = vmatprep.subr.mxu0 %v424
  %1385 = vmatpush1.msra.mxu0 %v423
  %1386 = vmatprep.subr.mxu0 %v428
  %1387 = vmatpush1.msra.mxu0 %v427
  %1388 = vmatprep.subr.mxu0 %v432
  %1389 = vmatpush1.msra.mxu0 %v431
  %1390 = vmatprep.subr.mxu0 %v436
  %1391 = vmatpush1.msra.mxu0 %v435
  %1392 = vmatprep.subr.mxu0 %v440
  %1393 = vmatpush1.msra.mxu0 %v439
  %1394 = vmatprep.subr.mxu0 %v444
  %1395 = vmatpush1.msra.mxu0 %v443
  %1396 = vmatprep.subr.mxu0 %v448
  %1397 = vmatpush1.msra.mxu0 %v447
  %1398 = vmatprep.subr.mxu0 0.0
  %1399 = vmatpush1.msra.mxu0 0.0
  %1400 = vmatprep.subr.mxu0 0.0
  %1401 = vmatpush1.msra.mxu0 0.0
  %1402 = vmatprep.subr.mxu0 0.0
  %1403 = vmatpush1.msra.mxu0 0.0
  %1404 = vmatprep.subr.mxu0 0.0
  %1405 = vmatpush1.msra.mxu0 0.0
  %1406 = vmatprep.subr.mxu0 0.0
  %1407 = vmatpush1.msra.mxu0 0.0
  %1408 = vmatprep.subr.mxu0 0.0
  %1409 = vmatpush1.msra.mxu0 0.0
  %1410 = vmatprep.subr.mxu0 0.0
  %1411 = vmatpush1.msra.mxu0 0.0
  %1412 = vmatprep.subr.mxu0 0.0
  %1413 = vmatpush1.msra.mxu0 0.0
  %1414 = vmatprep.subr.mxu0 0.0
  %1415 = vmatpush1.msra.mxu0 0.0
  %1416 = vmatprep.subr.mxu0 0.0
  %1417 = vmatpush1.msra.mxu0 0.0
  %1418 = vmatprep.subr.mxu0 0.0
  %1419 = vmatpush1.msra.mxu0 0.0
  %1420 = vmatprep.subr.mxu0 0.0
  %1421 = vmatpush1.msra.mxu0 0.0
  %1422 = vmatprep.subr.mxu0 0.0
  %1423 = vmatpush1.msra.mxu0 0.0
  %1424 = vmatprep.subr.mxu0 0.0
  %1425 = vmatpush1.msra.mxu0 0.0
  %1426 = vmatprep.subr.mxu0 0.0
  %1427 = vmatpush1.msra.mxu0 0.0
  %1428 = vmatprep.subr.mxu0 0.0
  %1429 = vmatpush1.msra.mxu0 0.0
  %1430 = vmatprep.mubr.f32.mxu0 0.0
  %1431 = vmatmul.mubr.f32.gmra.mrb[0].mxu0 %v1121
  %v1432 = vpop.f32.mrb[0].mxu0
  %v1433 = vadd.f32 0.0, %v1432
  %v1434 = vpop.f32.mrb[0].mxu0
  %v1435 = vadd.f32 0.0, %v1434
  %1436 = vdwg.mxu0
  %v1437 = vadd.f32 %v1291, %v1362
  %v1438 = vadd.f32 %v1292, %v1364
  %v1439 = vadd.f32 %v1293, %v1433
  %v1440 = vadd.f32 %v1294, %v1435
  %v1441 = vxor.u32 %v1437, 2147483648
  %v1442 = vmul.f32 %v1441, 1.442695
  %v1443 = vpow.pop %v1442
  %v1444 = vadd.f32 %v1443, 1.0
  %v1445 = vrcp.pop %v1444
  %v1446 = vmul.f32 1.0, %v1445
  %v1447 = vxor.u32 %v1438, 2147483648
  %v1448 = vmul.f32 %v1447, 1.442695
  %v1449 = vpow.pop %v1448
  %v1450 = vadd.f32 %v1449, 1.0
  %v1451 = vrcp.pop %v1450
  %v1452 = vmul.f32 1.0, %v1451
  %v1453 = vtanh.pop %v1439
  %v1454 = vxor.u32 %v1440, 2147483648
  %v1455 = vmul.f32 %v1454, 1.442695
  %v1456 = vpow.pop %v1455
  %v1457 = vadd.f32 %v1456, 1.0
  %v1458 = vrcp.pop %v1457
  %v1459 = vmul.f32 1.0, %v1458
  %v1460 = vmul.f32 %v1452, %v1119
  %v1461 = vmul.f32 %v1446, %v1453
  %v1462 = vadd.f32 %v1460, %v1461
  %v1463 = vtanh.pop %v1462
  %v1464 = vmul.f32 %v1459, %v1463
  %1465 = vmatprep.subr.mxu0 %v450
  %1466 = vmatpush1.msra.mxu0 %v449
  %1467 = vmatprep.subr.mxu0 %v454
  %1468 = vmatpush1.msra.mxu0 %v453
  %1469 = vmatprep.subr.mxu0 %v458
  %1470 = vmatpush1.msra.mxu0 %v457
  %1471 = vmatprep.subr.mxu0 %v462
  %1472 = vmatpush1.msra.mxu0 %v461
  %1473 = vmatprep.subr.mxu0 %v466
  %1474 = vmatpush1.msra.mxu0 %v465
  %1475 = vmatprep.subr.mxu0 %v470
  %1476 = vmatpush1.msra.mxu0 %v469
  %1477 = vmatprep.subr.mxu0 %v474
  %1478 = vmatpush1.msra.mxu0 %v473
  %1479 = vmatprep.subr.mxu0 %v478
  %1480 = vmatpush1.msra.mxu0 %v477
  %1481 = vmatprep.subr.mxu0 %v482
  %1482 = vmatpush1.msra.mxu0 %v481
  %1483 = vmatprep.subr.mxu0 %v486
  %1484 = vmatpush1.msra.mxu0 %v485
  %1485 = vmatprep.subr.mxu0 %v490
  %1486 = vmatpush1.msra.mxu0 %v489
  %1487 = vmatprep.subr.mxu0 %v494
  %1488 = vmatpush1.msra.mxu0 %v493
  %1489 = vmatprep.subr.mxu0 %v498
  %1490 = vmatpush1.msra.mxu0 %v497
  %1491 = vmatprep.subr.mxu0 %v502
  %1492 = vmatpush1.msra.mxu0 %v501
  %1493 = vmatprep.subr.mxu0 %v506
  %1494 = vmatpush1.msra.mxu0 %v505
  %1495 = vmatprep.subr.mxu0 %v510
  %1496 = vmatpush1.msra.mxu0 %v509
  %1497 = vmatprep.subr.mxu0 %v514
  %1498 = vmatpush1.msra.mxu0 %v513
  %1499 = vmatprep.subr.mxu0 %v518
  %1500 = vmatpush1.msra.mxu0 %v517
  %1501 = vmatprep.subr.mxu0 %v522
  %1502 = vmatpush1.msra.mxu0 %v521
  %1503 = vmatprep.subr.mxu0 %v526
  %1504 = vmatpush1.msra.mxu0 %v525
  %1505 = vmatprep.subr.mxu0 %v530
  %1506 = vmatpush1.msra.mxu0 %v529
  %1507 = vmatprep.subr.mxu0 %v534
  %1508 = vmatpush1.msra.mxu0 %v533
  %1509 = vmatprep.subr.mxu0 %v538
  %1510 = vmatpush1.msra.mxu0 %v537
  %1511 = vmatprep.subr.mxu0 %v542
  %1512 = vmatpush1.msra.mxu0 %v541
  %1513 = vmatprep.subr.mxu0 %v546
  %1514 = vmatpush1.msra.mxu0 %v545
  %1515 = vmatprep.subr.mxu0 %v550
  %1516 = vmatpush1.msra.mxu0 %v549
  %1517 = vmatprep.subr.mxu0 %v554
  %1518 = vmatpush1.msra.mxu0 %v553
  %1519 = vmatprep.subr.mxu0 %v558
  %1520 = vmatpush1.msra.mxu0 %v557
  %1521 = vmatprep.subr.mxu0 %v562
  %1522 = vmatpush1.msra.mxu0 %v561
  %1523 = vmatprep.subr.mxu0 %v566
  %1524 = vmatpush1.msra.mxu0 %v565
  %1525 = vmatprep.subr.mxu0 %v570
  %1526 = vmatpush1.msra.mxu0 %v569
  %1527 = vmatprep.subr.mxu0 %v574
  %1528 = vmatpush1.msra.mxu0 %v573
  %1529 = vmatprep.mubr.f32.mxu0 %v1287
  %1530 = vmatmul.mubr.f32.gmra.mrb[0].mxu0 %v1464
  %v1531 = vpop.f32.mrb[0].mxu0
  %v1532 = vadd.f32 %v582, %v1531
  %v1533 = vpop.f32.mrb[0].mxu0
  %v1534 = vadd.f32 %v586, %v1533
  %1535 = vdwg.mxu0
  %1536 = vmatprep.subr.mxu0 %v452
  %1537 = vmatpush1.msra.mxu0 %v451
  %1538 = vmatprep.subr.mxu0 %v456
  %1539 = vmatpush1.msra.mxu0 %v455
  %1540 = vmatprep.subr.mxu0 %v460
  %1541 = vmatpush1.msra.mxu0 %v459
  %1542 = vmatprep.subr.mxu0 %v464
  %1543 = vmatpush1.msra.mxu0 %v463
  %1544 = vmatprep.subr.mxu0 %v468
  %1545 = vmatpush1.msra.mxu0 %v467
  %1546 = vmatprep.subr.mxu0 %v472
  %1547 = vmatpush1.msra.mxu0 %v471
  %1548 = vmatprep.subr.mxu0 %v476
  %1549 = vmatpush1.msra.mxu0 %v475
  %1550 = vmatprep.subr.mxu0 %v480
  %1551 = vmatpush1.msra.mxu0 %v479
  %1552 = vmatprep.subr.mxu0 %v484
  %1553 = vmatpush1.msra.mxu0 %v483
  %1554 = vmatprep.subr.mxu0 %v488
  %1555 = vmatpush1.msra.mxu0 %v487
  %1556 = vmatprep.subr.mxu0 %v492
  %1557 = vmatpush1.msra.mxu0 %v491
  %1558 = vmatprep.subr.mxu0 %v496
  %1559 = vmatpush1.msra.mxu0 %v495
  %1560 = vmatprep.subr.mxu0 %v500
  %1561 = vmatpush1.msra.mxu0 %v499
  %1562 = vmatprep.subr.mxu0 %v504
  %1563 = vmatpush1.msra.mxu0 %v503
  %1564 = vmatprep.subr.mxu0 %v508
  %1565 = vmatpush1.msra.mxu0 %v507
  %1566 = vmatprep.subr.mxu0 %v512
  %1567 = vmatpush1.msra.mxu0 %v511
  %1568 = vmatprep.subr.mxu0 %v516
  %1569 = vmatpush1.msra.mxu0 %v515
  %1570 = vmatprep.subr.mxu0 %v520
  %1571 = vmatpush1.msra.mxu0 %v519
  %1572 = vmatprep.subr.mxu0 %v524
  %1573 = vmatpush1.msra.mxu0 %v523
  %1574 = vmatprep.subr.mxu0 %v528
  %1575 = vmatpush1.msra.mxu0 %v527
  %1576 = vmatprep.subr.mxu0 %v532
  %1577 = vmatpush1.msra.mxu0 %v531
  %1578 = vmatprep.subr.mxu0 %v536
  %1579 = vmatpush1.msra.mxu0 %v535
  %1580 = vmatprep.subr.mxu0 %v540
  %1581 = vmatpush1.msra.mxu0 %v539
  %1582 = vmatprep.subr.mxu0 %v544
  %1583 = vmatpush1.msra.mxu0 %v543
  %1584 = vmatprep.subr.mxu0 %v548
  %1585 = vmatpush1.msra.mxu0 %v547
  %1586 = vmatprep.subr.mxu0 %v552
  %1587 = vmatpush1.msra.mxu0 %v551
  %1588 = vmatprep.subr.mxu0 %v556
  %1589 = vmatpush1.msra.mxu0 %v555
  %1590 = vmatprep.subr.mxu0 %v560
  %1591 = vmatpush1.msra.mxu0 %v559
  %1592 = vmatprep.subr.mxu0 %v564
  %1593 = vmatpush1.msra.mxu0 %v563
  %1594 = vmatprep.subr.mxu0 %v568
  %1595 = vmatpush1.msra.mxu0 %v567
  %1596 = vmatprep.subr.mxu0 %v572
  %1597 = vmatpush1.msra.mxu0 %v571
  %1598 = vmatprep.subr.mxu0 %v576
  %1599 = vmatpush1.msra.mxu0 %v575
  %1600 = vmatprep.mubr.f32.mxu0 %v1287
  %1601 = vmatmul.mubr.f32.gmra.mrb[0].mxu0 %v1464
  %v1602 = vpop.f32.mrb[0].mxu0
  %v1603 = vadd.f32 %v590, %v1602
  %v1604 = vpop.f32.mrb[0].mxu0
  %v1605 = vadd.f32 %v594, %v1604
  %1606 = vdwg.mxu0
  %v1607 = vxor.u32 %v1532, 2147483648
  %v1608 = vmul.f32 %v1607, 1.442695
  %v1609 = vpow.pop %v1608
  %v1610 = vadd.f32 %v1609, 1.0
  %v1611 = vrcp.pop %v1610
  %v1612 = vmul.f32 1.0, %v1611
  %v1613 = vxor.u32 %v1534, 2147483648
  %v1614 = vmul.f32 %v1613, 1.442695
  %v1615 = vpow.pop %v1614
  %v1616 = vadd.f32 %v1615, 1.0
  %v1617 = vrcp.pop %v1616
  %v1618 = vmul.f32 1.0, %v1617
  %v1619 = vtanh.pop %v1603
  %v1620 = vxor.u32 %v1605, 2147483648
  %v1621 = vmul.f32 %v1620, 1.442695
  %v1622 = vpow.pop %v1621
  %v1623 = vadd.f32 %v1622, 1.0
  %v1624 = vrcp.pop %v1623
  %v1625 = vmul.f32 1.0, %v1624
  %v1626 = vmul.f32 %v1618, %v1285
  %v1627 = vmul.f32 %v1612, %v1619
  %v1628 = vadd.f32 %v1626, %v1627
  %v1629 = vtanh.pop %v1628
  %v1630 = vmul.f32 %v1625, %v1629
  %v1631 = vmax.f32 %v1288, %v1630
  %v1632 = vadd.f32 %v1289, %v1630
  %s1633 = scalar_lea.vmem [#allocation2], 96
  %v1634 = vld [vmem:[%s1633] sm:$0xff]
  %v1635 = vld [vmem:[%s1633 + $0x8] sm:$0xff]
  %v1636 = vld [vmem:[%s1633 + $0x10] sm:$0xff]
  %v1637 = vld [vmem:[%s1633 + $0x18] sm:$0xff]
  %1638 = vmatprep.subr.mxu0 %v386
  %1639 = vmatpush1.msra.mxu0 %v385
  %1640 = vmatprep.subr.mxu0 %v390
  %1641 = vmatpush1.msra.mxu0 %v389
  %1642 = vmatprep.subr.mxu0 %v394
  %1643 = vmatpush1.msra.mxu0 %v393
  %1644 = vmatprep.subr.mxu0 %v398
  %1645 = vmatpush1.msra.mxu0 %v397
  %1646 = vmatprep.subr.mxu0 %v402
  %1647 = vmatpush1.msra.mxu0 %v401
  %1648 = vmatprep.subr.mxu0 %v406
  %1649 = vmatpush1.msra.mxu0 %v405
  %1650 = vmatprep.subr.mxu0 %v410
  %1651 = vmatpush1.msra.mxu0 %v409
  %1652 = vmatprep.subr.mxu0 %v414
  %1653 = vmatpush1.msra.mxu0 %v413
  %1654 = vmatprep.subr.mxu0 %v418
  %1655 = vmatpush1.msra.mxu0 %v417
  %1656 = vmatprep.subr.mxu0 %v422
  %1657 = vmatpush1.msra.mxu0 %v421
  %1658 = vmatprep.subr.mxu0 %v426
  %1659 = vmatpush1.msra.mxu0 %v425
  %1660 = vmatprep.subr.mxu0 %v430
  %1661 = vmatpush1.msra.mxu0 %v429
  %1662 = vmatprep.subr.mxu0 %v434
  %1663 = vmatpush1.msra.mxu0 %v433
  %1664 = vmatprep.subr.mxu0 %v438
  %1665 = vmatpush1.msra.mxu0 %v437
  %1666 = vmatprep.subr.mxu0 %v442
  %1667 = vmatpush1.msra.mxu0 %v441
  %1668 = vmatprep.subr.mxu0 %v446
  %1669 = vmatpush1.msra.mxu0 %v445
  %1670 = vmatprep.subr.mxu0 0.0
  %1671 = vmatpush1.msra.mxu0 0.0
  %1672 = vmatprep.subr.mxu0 0.0
  %1673 = vmatpush1.msra.mxu0 0.0
  %1674 = vmatprep.subr.mxu0 0.0
  %1675 = vmatpush1.msra.mxu0 0.0
  %1676 = vmatprep.subr.mxu0 0.0
  %1677 = vmatpush1.msra.mxu0 0.0
  %1678 = vmatprep.subr.mxu0 0.0
  %1679 = vmatpush1.msra.mxu0 0.0
  %1680 = vmatprep.subr.mxu0 0.0
  %1681 = vmatpush1.msra.mxu0 0.0
  %1682 = vmatprep.subr.mxu0 0.0
  %1683 = vmatpush1.msra.mxu0 0.0
  %1684 = vmatprep.subr.mxu0 0.0
  %1685 = vmatpush1.msra.mxu0 0.0
  %1686 = vmatprep.subr.mxu0 0.0
  %1687 = vmatpush1.msra.mxu0 0.0
  %1688 = vmatprep.subr.mxu0 0.0
  %1689 = vmatpush1.msra.mxu0 0.0
  %1690 = vmatprep.subr.mxu0 0.0
  %1691 = vmatpush1.msra.mxu0 0.0
  %1692 = vmatprep.subr.mxu0 0.0
  %1693 = vmatpush1.msra.mxu0 0.0
  %1694 = vmatprep.subr.mxu0 0.0
  %1695 = vmatpush1.msra.mxu0 0.0
  %1696 = vmatprep.subr.mxu0 0.0
  %1697 = vmatpush1.msra.mxu0 0.0
  %1698 = vmatprep.subr.mxu0 0.0
  %1699 = vmatpush1.msra.mxu0 0.0
  %1700 = vmatprep.subr.mxu0 0.0
  %1701 = vmatpush1.msra.mxu0 0.0
  %1702 = vmatprep.mubr.f32.mxu0 0.0
  %1703 = vmatmul.mubr.f32.gmra.mrb[0].mxu0 %v1464
  %v1704 = vpop.f32.mrb[0].mxu0
  %v1705 = vadd.f32 0.0, %v1704
  %v1706 = vpop.f32.mrb[0].mxu0
  %v1707 = vadd.f32 0.0, %v1706
  %1708 = vdwg.mxu0
  %1709 = vmatprep.subr.mxu0 %v388
  %1710 = vmatpush1.msra.mxu0 %v387
  %1711 = vmatprep.subr.mxu0 %v392
  %1712 = vmatpush1.msra.mxu0 %v391
  %1713 = vmatprep.subr.mxu0 %v396
  %1714 = vmatpush1.msra.mxu0 %v395
  %1715 = vmatprep.subr.mxu0 %v400
  %1716 = vmatpush1.msra.mxu0 %v399
  %1717 = vmatprep.subr.mxu0 %v404
  %1718 = vmatpush1.msra.mxu0 %v403
  %1719 = vmatprep.subr.mxu0 %v408
  %1720 = vmatpush1.msra.mxu0 %v407
  %1721 = vmatprep.subr.mxu0 %v412
  %1722 = vmatpush1.msra.mxu0 %v411
  %1723 = vmatprep.subr.mxu0 %v416
  %1724 = vmatpush1.msra.mxu0 %v415
  %1725 = vmatprep.subr.mxu0 %v420
  %1726 = vmatpush1.msra.mxu0 %v419
  %1727 = vmatprep.subr.mxu0 %v424
  %1728 = vmatpush1.msra.mxu0 %v423
  %1729 = vmatprep.subr.mxu0 %v428
  %1730 = vmatpush1.msra.mxu0 %v427
  %1731 = vmatprep.subr.mxu0 %v432
  %1732 = vmatpush1.msra.mxu0 %v431
  %1733 = vmatprep.subr.mxu0 %v436
  %1734 = vmatpush1.msra.mxu0 %v435
  %1735 = vmatprep.subr.mxu0 %v440
  %1736 = vmatpush1.msra.mxu0 %v439
  %1737 = vmatprep.subr.mxu0 %v444
  %1738 = vmatpush1.msra.mxu0 %v443
  %1739 = vmatprep.subr.mxu0 %v448
  %1740 = vmatpush1.msra.mxu0 %v447
  %1741 = vmatprep.subr.mxu0 0.0
  %1742 = vmatpush1.msra.mxu0 0.0
  %1743 = vmatprep.subr.mxu0 0.0
  %1744 = vmatpush1.msra.mxu0 0.0
  %1745 = vmatprep.subr.mxu0 0.0
  %1746 = vmatpush1.msra.mxu0 0.0
  %1747 = vmatprep.subr.mxu0 0.0
  %1748 = vmatpush1.msra.mxu0 0.0
  %1749 = vmatprep.subr.mxu0 0.0
  %1750 = vmatpush1.msra.mxu0 0.0
  %1751 = vmatprep.subr.mxu0 0.0
  %1752 = vmatpush1.msra.mxu0 0.0
  %1753 = vmatprep.subr.mxu0 0.0
  %1754 = vmatpush1.msra.mxu0 0.0
  %1755 = vmatprep.subr.mxu0 0.0
  %1756 = vmatpush1.msra.mxu0 0.0
  %1757 = vmatprep.subr.mxu0 0.0
  %1758 = vmatpush1.msra.mxu0 0.0
  %1759 = vmatprep.subr.mxu0 0.0
  %1760 = vmatpush1.msra.mxu0 0.0
  %1761 = vmatprep.subr.mxu0 0.0
  %1762 = vmatpush1.msra.mxu0 0.0
  %1763 = vmatprep.subr.mxu0 0.0
  %1764 = vmatpush1.msra.mxu0 0.0
  %1765 = vmatprep.subr.mxu0 0.0
  %1766 = vmatpush1.msra.mxu0 0.0
  %1767 = vmatprep.subr.mxu0 0.0
  %1768 = vmatpush1.msra.mxu0 0.0
  %1769 = vmatprep.subr.mxu0 0.0
  %1770 = vmatpush1.msra.mxu0 0.0
  %1771 = vmatprep.subr.mxu0 0.0
  %1772 = vmatpush1.msra.mxu0 0.0
  %1773 = vmatprep.mubr.f32.mxu0 0.0
  %1774 = vmatmul.mubr.f32.gmra.mrb[0].mxu0 %v1464
  %v1775 = vpop.f32.mrb[0].mxu0
  %v1776 = vadd.f32 0.0, %v1775
  %v1777 = vpop.f32.mrb[0].mxu0
  %v1778 = vadd.f32 0.0, %v1777
  %1779 = vdwg.mxu0
  %v1780 = vadd.f32 %v1634, %v1705
  %v1781 = vadd.f32 %v1635, %v1707
  %v1782 = vadd.f32 %v1636, %v1776
  %v1783 = vadd.f32 %v1637, %v1778
  %v1784 = vxor.u32 %v1780, 2147483648
  %v1785 = vmul.f32 %v1784, 1.442695
  %v1786 = vpow.pop %v1785
  %v1787 = vadd.f32 %v1786, 1.0
  %v1788 = vrcp.pop %v1787
  %v1789 = vmul.f32 1.0, %v1788
  %v1790 = vxor.u32 %v1781, 2147483648
  %v1791 = vmul.f32 %v1790, 1.442695
  %v1792 = vpow.pop %v1791
  %v1793 = vadd.f32 %v1792, 1.0
  %v1794 = vrcp.pop %v1793
  %v1795 = vmul.f32 1.0, %v1794
  %v1796 = vtanh.pop %v1782
  %v1797 = vxor.u32 %v1783, 2147483648
  %v1798 = vmul.f32 %v1797, 1.442695
  %v1799 = vpow.pop %v1798
  %v1800 = vadd.f32 %v1799, 1.0
  %v1801 = vrcp.pop %v1800
  %v1802 = vmul.f32 1.0, %v1801
  %v1803 = vmul.f32 %v1795, %v1462
  %v1804 = vmul.f32 %v1789, %v1796
  %v1805 = vadd.f32 %v1803, %v1804
  %v1806 = vtanh.pop %v1805
  %v1807 = vmul.f32 %v1802, %v1806
  %1808 = vmatprep.subr.mxu0 %v450
  %1809 = vmatpush1.msra.mxu0 %v449
  %1810 = vmatprep.subr.mxu0 %v454
  %1811 = vmatpush1.msra.mxu0 %v453
  %1812 = vmatprep.subr.mxu0 %v458
  %1813 = vmatpush1.msra.mxu0 %v457
  %1814 = vmatprep.subr.mxu0 %v462
  %1815 = vmatpush1.msra.mxu0 %v461
  %1816 = vmatprep.subr.mxu0 %v466
  %1817 = vmatpush1.msra.mxu0 %v465
  %1818 = vmatprep.subr.mxu0 %v470
  %1819 = vmatpush1.msra.mxu0 %v469
  %1820 = vmatprep.subr.mxu0 %v474
  %1821 = vmatpush1.msra.mxu0 %v473
  %1822 = vmatprep.subr.mxu0 %v478
  %1823 = vmatpush1.msra.mxu0 %v477
  %1824 = vmatprep.subr.mxu0 %v482
  %1825 = vmatpush1.msra.mxu0 %v481
  %1826 = vmatprep.subr.mxu0 %v486
  %1827 = vmatpush1.msra.mxu0 %v485
  %1828 = vmatprep.subr.mxu0 %v490
  %1829 = vmatpush1.msra.mxu0 %v489
  %1830 = vmatprep.subr.mxu0 %v494
  %1831 = vmatpush1.msra.mxu0 %v493
  %1832 = vmatprep.subr.mxu0 %v498
  %1833 = vmatpush1.msra.mxu0 %v497
  %1834 = vmatprep.subr.mxu0 %v502
  %1835 = vmatpush1.msra.mxu0 %v501
  %1836 = vmatprep.subr.mxu0 %v506
  %1837 = vmatpush1.msra.mxu0 %v505
  %1838 = vmatprep.subr.mxu0 %v510
  %1839 = vmatpush1.msra.mxu0 %v509
  %1840 = vmatprep.subr.mxu0 %v514
  %1841 = vmatpush1.msra.mxu0 %v513
  %1842 = vmatprep.subr.mxu0 %v518
  %1843 = vmatpush1.msra.mxu0 %v517
  %1844 = vmatprep.subr.mxu0 %v522
  %1845 = vmatpush1.msra.mxu0 %v521
  %1846 = vmatprep.subr.mxu0 %v526
  %1847 = vmatpush1.msra.mxu0 %v525
  %1848 = vmatprep.subr.mxu0 %v530
  %1849 = vmatpush1.msra.mxu0 %v529
  %1850 = vmatprep.subr.mxu0 %v534
  %1851 = vmatpush1.msra.mxu0 %v533
  %1852 = vmatprep.subr.mxu0 %v538
  %1853 = vmatpush1.msra.mxu0 %v537
  %1854 = vmatprep.subr.mxu0 %v542
  %1855 = vmatpush1.msra.mxu0 %v541
  %1856 = vmatprep.subr.mxu0 %v546
  %1857 = vmatpush1.msra.mxu0 %v545
  %1858 = vmatprep.subr.mxu0 %v550
  %1859 = vmatpush1.msra.mxu0 %v549
  %1860 = vmatprep.subr.mxu0 %v554
  %1861 = vmatpush1.msra.mxu0 %v553
  %1862 = vmatprep.subr.mxu0 %v558
  %1863 = vmatpush1.msra.mxu0 %v557
  %1864 = vmatprep.subr.mxu0 %v562
  %1865 = vmatpush1.msra.mxu0 %v561
  %1866 = vmatprep.subr.mxu0 %v566
  %1867 = vmatpush1.msra.mxu0 %v565
  %1868 = vmatprep.subr.mxu0 %v570
  %1869 = vmatpush1.msra.mxu0 %v569
  %1870 = vmatprep.subr.mxu0 %v574
  %1871 = vmatpush1.msra.mxu0 %v573
  %1872 = vmatprep.mubr.f32.mxu0 %v1630
  %1873 = vmatmul.mubr.f32.gmra.mrb[0].mxu0 %v1807
  %v1874 = vpop.f32.mrb[0].mxu0
  %v1875 = vadd.f32 %v582, %v1874
  %v1876 = vpop.f32.mrb[0].mxu0
  %v1877 = vadd.f32 %v586, %v1876
  %1878 = vdwg.mxu0
  %1879 = vmatprep.subr.mxu0 %v452
  %1880 = vmatpush1.msra.mxu0 %v451
  %1881 = vmatprep.subr.mxu0 %v456
  %1882 = vmatpush1.msra.mxu0 %v455
  %1883 = vmatprep.subr.mxu0 %v460
  %1884 = vmatpush1.msra.mxu0 %v459
  %1885 = vmatprep.subr.mxu0 %v464
  %1886 = vmatpush1.msra.mxu0 %v463
  %1887 = vmatprep.subr.mxu0 %v468
  %1888 = vmatpush1.msra.mxu0 %v467
  %1889 = vmatprep.subr.mxu0 %v472
  %1890 = vmatpush1.msra.mxu0 %v471
  %1891 = vmatprep.subr.mxu0 %v476
  %1892 = vmatpush1.msra.mxu0 %v475
  %1893 = vmatprep.subr.mxu0 %v480
  %1894 = vmatpush1.msra.mxu0 %v479
  %1895 = vmatprep.subr.mxu0 %v484
  %1896 = vmatpush1.msra.mxu0 %v483
  %1897 = vmatprep.subr.mxu0 %v488
  %1898 = vmatpush1.msra.mxu0 %v487
  %1899 = vmatprep.subr.mxu0 %v492
  %1900 = vmatpush1.msra.mxu0 %v491
  %1901 = vmatprep.subr.mxu0 %v496
  %1902 = vmatpush1.msra.mxu0 %v495
  %1903 = vmatprep.subr.mxu0 %v500
  %1904 = vmatpush1.msra.mxu0 %v499
  %1905 = vmatprep.subr.mxu0 %v504
  %1906 = vmatpush1.msra.mxu0 %v503
  %1907 = vmatprep.subr.mxu0 %v508
  %1908 = vmatpush1.msra.mxu0 %v507
  %1909 = vmatprep.subr.mxu0 %v512
  %1910 = vmatpush1.msra.mxu0 %v511
  %1911 = vmatprep.subr.mxu0 %v516
  %1912 = vmatpush1.msra.mxu0 %v515
  %1913 = vmatprep.subr.mxu0 %v520
  %1914 = vmatpush1.msra.mxu0 %v519
  %1915 = vmatprep.subr.mxu0 %v524
  %1916 = vmatpush1.msra.mxu0 %v523
  %1917 = vmatprep.subr.mxu0 %v528
  %1918 = vmatpush1.msra.mxu0 %v527
  %1919 = vmatprep.subr.mxu0 %v532
  %1920 = vmatpush1.msra.mxu0 %v531
  %1921 = vmatprep.subr.mxu0 %v536
  %1922 = vmatpush1.msra.mxu0 %v535
  %1923 = vmatprep.subr.mxu0 %v540
  %1924 = vmatpush1.msra.mxu0 %v539
  %1925 = vmatprep.subr.mxu0 %v544
  %1926 = vmatpush1.msra.mxu0 %v543
  %1927 = vmatprep.subr.mxu0 %v548
  %1928 = vmatpush1.msra.mxu0 %v547
  %1929 = vmatprep.subr.mxu0 %v552
  %1930 = vmatpush1.msra.mxu0 %v551
  %1931 = vmatprep.subr.mxu0 %v556
  %1932 = vmatpush1.msra.mxu0 %v555
  %1933 = vmatprep.subr.mxu0 %v560
  %1934 = vmatpush1.msra.mxu0 %v559
  %1935 = vmatprep.subr.mxu0 %v564
  %1936 = vmatpush1.msra.mxu0 %v563
  %1937 = vmatprep.subr.mxu0 %v568
  %1938 = vmatpush1.msra.mxu0 %v567
  %1939 = vmatprep.subr.mxu0 %v572
  %1940 = vmatpush1.msra.mxu0 %v571
  %1941 = vmatprep.subr.mxu0 %v576
  %1942 = vmatpush1.msra.mxu0 %v575
  %1943 = vmatprep.mubr.f32.mxu0 %v1630
  %1944 = vmatmul.mubr.f32.gmra.mrb[0].mxu0 %v1807
  %v1945 = vpop.f32.mrb[0].mxu0
  %v1946 = vadd.f32 %v590, %v1945
  %v1947 = vpop.f32.mrb[0].mxu0
  %v1948 = vadd.f32 %v594, %v1947
  %1949 = vdwg.mxu0
  %v1950 = vxor.u32 %v1875, 2147483648
  %v1951 = vmul.f32 %v1950, 1.442695
  %v1952 = vpow.pop %v1951
  %v1953 = vadd.f32 %v1952, 1.0
  %v1954 = vrcp.pop %v1953
  %v1955 = vmul.f32 1.0, %v1954
  %v1956 = vxor.u32 %v1877, 2147483648
  %v1957 = vmul.f32 %v1956, 1.442695
  %v1958 = vpow.pop %v1957
  %v1959 = vadd.f32 %v1958, 1.0
  %v1960 = vrcp.pop %v1959
  %v1961 = vmul.f32 1.0, %v1960
  %v1962 = vtanh.pop %v1946
  %v1963 = vxor.u32 %v1948, 2147483648
  %v1964 = vmul.f32 %v1963, 1.442695
  %v1965 = vpow.pop %v1964
  %v1966 = vadd.f32 %v1965, 1.0
  %v1967 = vrcp.pop %v1966
  %v1968 = vmul.f32 1.0, %v1967
  %v1969 = vmul.f32 %v1961, %v1628
  %v1970 = vmul.f32 %v1955, %v1962
  %v1971 = vadd.f32 %v1969, %v1970
  %v1972 = vtanh.pop %v1971
  %v1973 = vmul.f32 %v1968, %v1972
  %v1974 = vmax.f32 %v1631, %v1973
  %v1975 = vadd.f32 %v1632, %v1973
  %s1976 = scalar_lea.vmem [#allocation2], 128
  %v1977 = vld [vmem:[%s1976] sm:$0xff]
  %v1978 = vld [vmem:[%s1976 + $0x8] sm:$0xff]
  %v1979 = vld [vmem:[%s1976 + $0x10] sm:$0xff]
  %v1980 = vld [vmem:[%s1976 + $0x18] sm:$0xff]
  %1981 = vmatprep.subr.mxu0 %v386
  %1982 = vmatpush1.msra.mxu0 %v385
  %1983 = vmatprep.subr.mxu0 %v390
  %1984 = vmatpush1.msra.mxu0 %v389
  %1985 = vmatprep.subr.mxu0 %v394
  %1986 = vmatpush1.msra.mxu0 %v393
  %1987 = vmatprep.subr.mxu0 %v398
  %1988 = vmatpush1.msra.mxu0 %v397
  %1989 = vmatprep.subr.mxu0 %v402
  %1990 = vmatpush1.msra.mxu0 %v401
  %1991 = vmatprep.subr.mxu0 %v406
  %1992 = vmatpush1.msra.mxu0 %v405
  %1993 = vmatprep.subr.mxu0 %v410
  %1994 = vmatpush1.msra.mxu0 %v409
  %1995 = vmatprep.subr.mxu0 %v414
  %1996 = vmatpush1.msra.mxu0 %v413
  %1997 = vmatprep.subr.mxu0 %v418
  %1998 = vmatpush1.msra.mxu0 %v417
  %1999 = vmatprep.subr.mxu0 %v422
  %2000 = vmatpush1.msra.mxu0 %v421
  %2001 = vmatprep.subr.mxu0 %v426
  %2002 = vmatpush1.msra.mxu0 %v425
  %2003 = vmatprep.subr.mxu0 %v430
  %2004 = vmatpush1.msra.mxu0 %v429
  %2005 = vmatprep.subr.mxu0 %v434
  %2006 = vmatpush1.msra.mxu0 %v433
  %2007 = vmatprep.subr.mxu0 %v438
  %2008 = vmatpush1.msra.mxu0 %v437
  %2009 = vmatprep.subr.mxu0 %v442
  %2010 = vmatpush1.msra.mxu0 %v441
  %2011 = vmatprep.subr.mxu0 %v446
  %2012 = vmatpush1.msra.mxu0 %v445
  %2013 = vmatprep.subr.mxu0 0.0
  %2014 = vmatpush1.msra.mxu0 0.0
  %2015 = vmatprep.subr.mxu0 0.0
  %2016 = vmatpush1.msra.mxu0 0.0
  %2017 = vmatprep.subr.mxu0 0.0
  %2018 = vmatpush1.msra.mxu0 0.0
  %2019 = vmatprep.subr.mxu0 0.0
  %2020 = vmatpush1.msra.mxu0 0.0
  %2021 = vmatprep.subr.mxu0 0.0
  %2022 = vmatpush1.msra.mxu0 0.0
  %2023 = vmatprep.subr.mxu0 0.0
  %2024 = vmatpush1.msra.mxu0 0.0
  %2025 = vmatprep.subr.mxu0 0.0
  %2026 = vmatpush1.msra.mxu0 0.0
  %2027 = vmatprep.subr.mxu0 0.0
  %2028 = vmatpush1.msra.mxu0 0.0
  %2029 = vmatprep.subr.mxu0 0.0
  %2030 = vmatpush1.msra.mxu0 0.0
  %2031 = vmatprep.subr.mxu0 0.0
  %2032 = vmatpush1.msra.mxu0 0.0
  %2033 = vmatprep.subr.mxu0 0.0
  %2034 = vmatpush1.msra.mxu0 0.0
  %2035 = vmatprep.subr.mxu0 0.0
  %2036 = vmatpush1.msra.mxu0 0.0
  %2037 = vmatprep.subr.mxu0 0.0
  %2038 = vmatpush1.msra.mxu0 0.0
  %2039 = vmatprep.subr.mxu0 0.0
  %2040 = vmatpush1.msra.mxu0 0.0
  %2041 = vmatprep.subr.mxu0 0.0
  %2042 = vmatpush1.msra.mxu0 0.0
  %2043 = vmatprep.subr.mxu0 0.0
  %2044 = vmatpush1.msra.mxu0 0.0
  %2045 = vmatprep.mubr.f32.mxu0 0.0
  %2046 = vmatmul.mubr.f32.gmra.mrb[0].mxu0 %v1807
  %v2047 = vpop.f32.mrb[0].mxu0
  %v2048 = vadd.f32 0.0, %v2047
  %v2049 = vpop.f32.mrb[0].mxu0
  %v2050 = vadd.f32 0.0, %v2049
  %2051 = vdwg.mxu0
  %2052 = vmatprep.subr.mxu0 %v388
  %2053 = vmatpush1.msra.mxu0 %v387
  %2054 = vmatprep.subr.mxu0 %v392
  %2055 = vmatpush1.msra.mxu0 %v391
  %2056 = vmatprep.subr.mxu0 %v396
  %2057 = vmatpush1.msra.mxu0 %v395
  %2058 = vmatprep.subr.mxu0 %v400
  %2059 = vmatpush1.msra.mxu0 %v399
  %2060 = vmatprep.subr.mxu0 %v404
  %2061 = vmatpush1.msra.mxu0 %v403
  %2062 = vmatprep.subr.mxu0 %v408
  %2063 = vmatpush1.msra.mxu0 %v407
  %2064 = vmatprep.subr.mxu0 %v412
  %2065 = vmatpush1.msra.mxu0 %v411
  %2066 = vmatprep.subr.mxu0 %v416
  %2067 = vmatpush1.msra.mxu0 %v415
  %2068 = vmatprep.subr.mxu0 %v420
  %2069 = vmatpush1.msra.mxu0 %v419
  %2070 = vmatprep.subr.mxu0 %v424
  %2071 = vmatpush1.msra.mxu0 %v423
  %2072 = vmatprep.subr.mxu0 %v428
  %2073 = vmatpush1.msra.mxu0 %v427
  %2074 = vmatprep.subr.mxu0 %v432
  %2075 = vmatpush1.msra.mxu0 %v431
  %2076 = vmatprep.subr.mxu0 %v436
  %2077 = vmatpush1.msra.mxu0 %v435
  %2078 = vmatprep.subr.mxu0 %v440
  %2079 = vmatpush1.msra.mxu0 %v439
  %2080 = vmatprep.subr.mxu0 %v444
  %2081 = vmatpush1.msra.mxu0 %v443
  %2082 = vmatprep.subr.mxu0 %v448
  %2083 = vmatpush1.msra.mxu0 %v447
  %2084 = vmatprep.subr.mxu0 0.0
  %2085 = vmatpush1.msra.mxu0 0.0
  %2086 = vmatprep.subr.mxu0 0.0
  %2087 = vmatpush1.msra.mxu0 0.0
  %2088 = vmatprep.subr.mxu0 0.0
  %2089 = vmatpush1.msra.mxu0 0.0
  %2090 = vmatprep.subr.mxu0 0.0
  %2091 = vmatpush1.msra.mxu0 0.0
  %2092 = vmatprep.subr.mxu0 0.0
  %2093 = vmatpush1.msra.mxu0 0.0
  %2094 = vmatprep.subr.mxu0 0.0
  %2095 = vmatpush1.msra.mxu0 0.0
  %2096 = vmatprep.subr.mxu0 0.0
  %2097 = vmatpush1.msra.mxu0 0.0
  %2098 = vmatprep.subr.mxu0 0.0
  %2099 = vmatpush1.msra.mxu0 0.0
  %2100 = vmatprep.subr.mxu0 0.0
  %2101 = vmatpush1.msra.mxu0 0.0
  %2102 = vmatprep.subr.mxu0 0.0
  %2103 = vmatpush1.msra.mxu0 0.0
  %2104 = vmatprep.subr.mxu0 0.0
  %2105 = vmatpush1.msra.mxu0 0.0
  %2106 = vmatprep.subr.mxu0 0.0
  %2107 = vmatpush1.msra.mxu0 0.0
  %2108 = vmatprep.subr.mxu0 0.0
  %2109 = vmatpush1.msra.mxu0 0.0
  %2110 = vmatprep.subr.mxu0 0.0
  %2111 = vmatpush1.msra.mxu0 0.0
  %2112 = vmatprep.subr.mxu0 0.0
  %2113 = vmatpush1.msra.mxu0 0.0
  %2114 = vmatprep.subr.mxu0 0.0
  %2115 = vmatpush1.msra.mxu0 0.0
  %2116 = vmatprep.mubr.f32.mxu0 0.0
  %2117 = vmatmul.mubr.f32.gmra.mrb[0].mxu0 %v1807
  %v2118 = vpop.f32.mrb[0].mxu0
  %v2119 = vadd.f32 0.0, %v2118
  %v2120 = vpop.f32.mrb[0].mxu0
  %v2121 = vadd.f32 0.0, %v2120
  %2122 = vdwg.mxu0
  %v2123 = vadd.f32 %v1977, %v2048
  %v2124 = vadd.f32 %v1978, %v2050
  %v2125 = vadd.f32 %v1979, %v2119
  %v2126 = vadd.f32 %v1980, %v2121
  %v2127 = vxor.u32 %v2123, 2147483648
  %v2128 = vmul.f32 %v2127, 1.442695
  %v2129 = vpow.pop %v2128
  %v2130 = vadd.f32 %v2129, 1.0
  %v2131 = vrcp.pop %v2130
  %v2132 = vmul.f32 1.0, %v2131
  %v2133 = vxor.u32 %v2124, 2147483648
  %v2134 = vmul.f32 %v2133, 1.442695
  %v2135 = vpow.pop %v2134
  %v2136 = vadd.f32 %v2135, 1.0
  %v2137 = vrcp.pop %v2136
  %v2138 = vmul.f32 1.0, %v2137
  %v2139 = vtanh.pop %v2125
  %v2140 = vxor.u32 %v2126, 2147483648
  %v2141 = vmul.f32 %v2140, 1.442695
  %v2142 = vpow.pop %v2141
  %v2143 = vadd.f32 %v2142, 1.0
  %v2144 = vrcp.pop %v2143
  %v2145 = vmul.f32 1.0, %v2144
  %v2146 = vmul.f32 %v2138, %v1805
  %v2147 = vmul.f32 %v2132, %v2139
  %v2148 = vadd.f32 %v2146, %v2147
  %v2149 = vtanh.pop %v2148
  %v2150 = vmul.f32 %v2145, %v2149
  %2151 = vmatprep.subr.mxu0 %v450
  %2152 = vmatpush1.msra.mxu0 %v449
  %2153 = vmatprep.subr.mxu0 %v454
  %2154 = vmatpush1.msra.mxu0 %v453
  %2155 = vmatprep.subr.mxu0 %v458
  %2156 = vmatpush1.msra.mxu0 %v457
  %2157 = vmatprep.subr.mxu0 %v462
  %2158 = vmatpush1.msra.mxu0 %v461
  %2159 = vmatprep.subr.mxu0 %v466
  %2160 = vmatpush1.msra.mxu0 %v465
  %2161 = vmatprep.subr.mxu0 %v470
  %2162 = vmatpush1.msra.mxu0 %v469
  %2163 = vmatprep.subr.mxu0 %v474
  %2164 = vmatpush1.msra.mxu0 %v473
  %2165 = vmatprep.subr.mxu0 %v478
  %2166 = vmatpush1.msra.mxu0 %v477
  %2167 = vmatprep.subr.mxu0 %v482
  %2168 = vmatpush1.msra.mxu0 %v481
  %2169 = vmatprep.subr.mxu0 %v486
  %2170 = vmatpush1.msra.mxu0 %v485
  %2171 = vmatprep.subr.mxu0 %v490
  %2172 = vmatpush1.msra.mxu0 %v489
  %2173 = vmatprep.subr.mxu0 %v494
  %2174 = vmatpush1.msra.mxu0 %v493
  %2175 = vmatprep.subr.mxu0 %v498
  %2176 = vmatpush1.msra.mxu0 %v497
  %2177 = vmatprep.subr.mxu0 %v502
  %2178 = vmatpush1.msra.mxu0 %v501
  %2179 = vmatprep.subr.mxu0 %v506
  %2180 = vmatpush1.msra.mxu0 %v505
  %2181 = vmatprep.subr.mxu0 %v510
  %2182 = vmatpush1.msra.mxu0 %v509
  %2183 = vmatprep.subr.mxu0 %v514
  %2184 = vmatpush1.msra.mxu0 %v513
  %2185 = vmatprep.subr.mxu0 %v518
  %2186 = vmatpush1.msra.mxu0 %v517
  %2187 = vmatprep.subr.mxu0 %v522
  %2188 = vmatpush1.msra.mxu0 %v521
  %2189 = vmatprep.subr.mxu0 %v526
  %2190 = vmatpush1.msra.mxu0 %v525
  %2191 = vmatprep.subr.mxu0 %v530
  %2192 = vmatpush1.msra.mxu0 %v529
  %2193 = vmatprep.subr.mxu0 %v534
  %2194 = vmatpush1.msra.mxu0 %v533
  %2195 = vmatprep.subr.mxu0 %v538
  %2196 = vmatpush1.msra.mxu0 %v537
  %2197 = vmatprep.subr.mxu0 %v542
  %2198 = vmatpush1.msra.mxu0 %v541
  %2199 = vmatprep.subr.mxu0 %v546
  %2200 = vmatpush1.msra.mxu0 %v545
  %2201 = vmatprep.subr.mxu0 %v550
  %2202 = vmatpush1.msra.mxu0 %v549
  %2203 = vmatprep.subr.mxu0 %v554
  %2204 = vmatpush1.msra.mxu0 %v553
  %2205 = vmatprep.subr.mxu0 %v558
  %2206 = vmatpush1.msra.mxu0 %v557
  %2207 = vmatprep.subr.mxu0 %v562
  %2208 = vmatpush1.msra.mxu0 %v561
  %2209 = vmatprep.subr.mxu0 %v566
  %2210 = vmatpush1.msra.mxu0 %v565
  %2211 = vmatprep.subr.mxu0 %v570
  %2212 = vmatpush1.msra.mxu0 %v569
  %2213 = vmatprep.subr.mxu0 %v574
  %2214 = vmatpush1.msra.mxu0 %v573
  %2215 = vmatprep.mubr.f32.mxu0 %v1973
  %2216 = vmatmul.mubr.f32.gmra.mrb[0].mxu0 %v2150
  %v2217 = vpop.f32.mrb[0].mxu0
  %v2218 = vadd.f32 %v582, %v2217
  %v2219 = vpop.f32.mrb[0].mxu0
  %v2220 = vadd.f32 %v586, %v2219
  %2221 = vdwg.mxu0
  %2222 = vmatprep.subr.mxu0 %v452
  %2223 = vmatpush1.msra.mxu0 %v451
  %2224 = vmatprep.subr.mxu0 %v456
  %2225 = vmatpush1.msra.mxu0 %v455
  %2226 = vmatprep.subr.mxu0 %v460
  %2227 = vmatpush1.msra.mxu0 %v459
  %2228 = vmatprep.subr.mxu0 %v464
  %2229 = vmatpush1.msra.mxu0 %v463
  %2230 = vmatprep.subr.mxu0 %v468
  %2231 = vmatpush1.msra.mxu0 %v467
  %2232 = vmatprep.subr.mxu0 %v472
  %2233 = vmatpush1.msra.mxu0 %v471
  %2234 = vmatprep.subr.mxu0 %v476
  %2235 = vmatpush1.msra.mxu0 %v475
  %2236 = vmatprep.subr.mxu0 %v480
  %2237 = vmatpush1.msra.mxu0 %v479
  %2238 = vmatprep.subr.mxu0 %v484
  %2239 = vmatpush1.msra.mxu0 %v483
  %2240 = vmatprep.subr.mxu0 %v488
  %2241 = vmatpush1.msra.mxu0 %v487
  %2242 = vmatprep.subr.mxu0 %v492
  %2243 = vmatpush1.msra.mxu0 %v491
  %2244 = vmatprep.subr.mxu0 %v496
  %2245 = vmatpush1.msra.mxu0 %v495
  %2246 = vmatprep.subr.mxu0 %v500
  %2247 = vmatpush1.msra.mxu0 %v499
  %2248 = vmatprep.subr.mxu0 %v504
  %2249 = vmatpush1.msra.mxu0 %v503
  %2250 = vmatprep.subr.mxu0 %v508
  %2251 = vmatpush1.msra.mxu0 %v507
  %2252 = vmatprep.subr.mxu0 %v512
  %2253 = vmatpush1.msra.mxu0 %v511
  %2254 = vmatprep.subr.mxu0 %v516
  %2255 = vmatpush1.msra.mxu0 %v515
  %2256 = vmatprep.subr.mxu0 %v520
  %2257 = vmatpush1.msra.mxu0 %v519
  %2258 = vmatprep.subr.mxu0 %v524
  %2259 = vmatpush1.msra.mxu0 %v523
  %2260 = vmatprep.subr.mxu0 %v528
  %2261 = vmatpush1.msra.mxu0 %v527
  %2262 = vmatprep.subr.mxu0 %v532
  %2263 = vmatpush1.msra.mxu0 %v531
  %2264 = vmatprep.subr.mxu0 %v536
  %2265 = vmatpush1.msra.mxu0 %v535
  %2266 = vmatprep.subr.mxu0 %v540
  %2267 = vmatpush1.msra.mxu0 %v539
  %2268 = vmatprep.subr.mxu0 %v544
  %2269 = vmatpush1.msra.mxu0 %v543
  %2270 = vmatprep.subr.mxu0 %v548
  %2271 = vmatpush1.msra.mxu0 %v547
  %2272 = vmatprep.subr.mxu0 %v552
  %2273 = vmatpush1.msra.mxu0 %v551
  %2274 = vmatprep.subr.mxu0 %v556
  %2275 = vmatpush1.msra.mxu0 %v555
  %2276 = vmatprep.subr.mxu0 %v560
  %2277 = vmatpush1.msra.mxu0 %v559
  %2278 = vmatprep.subr.mxu0 %v564
  %2279 = vmatpush1.msra.mxu0 %v563
  %2280 = vmatprep.subr.mxu0 %v568
  %2281 = vmatpush1.msra.mxu0 %v567
  %2282 = vmatprep.subr.mxu0 %v572
  %2283 = vmatpush1.msra.mxu0 %v571
  %2284 = vmatprep.subr.mxu0 %v576
  %2285 = vmatpush1.msra.mxu0 %v575
  %2286 = vmatprep.mubr.f32.mxu0 %v1973
  %2287 = vmatmul.mubr.f32.gmra.mrb[0].mxu0 %v2150
  %v2288 = vpop.f32.mrb[0].mxu0
  %v2289 = vadd.f32 %v590, %v2288
  %v2290 = vpop.f32.mrb[0].mxu0
  %v2291 = vadd.f32 %v594, %v2290
  %2292 = vdwg.mxu0
  %v2293 = vxor.u32 %v2218, 2147483648
  %v2294 = vmul.f32 %v2293, 1.442695
  %v2295 = vpow.pop %v2294
  %v2296 = vadd.f32 %v2295, 1.0
  %v2297 = vrcp.pop %v2296
  %v2298 = vmul.f32 1.0, %v2297
  %v2299 = vxor.u32 %v2220, 2147483648
  %v2300 = vmul.f32 %v2299, 1.442695
  %v2301 = vpow.pop %v2300
  %v2302 = vadd.f32 %v2301, 1.0
  %v2303 = vrcp.pop %v2302
  %v2304 = vmul.f32 1.0, %v2303
  %v2305 = vtanh.pop %v2289
  %v2306 = vxor.u32 %v2291, 2147483648
  %v2307 = vmul.f32 %v2306, 1.442695
  %v2308 = vpow.pop %v2307
  %v2309 = vadd.f32 %v2308, 1.0
  %v2310 = vrcp.pop %v2309
  %v2311 = vmul.f32 1.0, %v2310
  %v2312 = vmul.f32 %v2304, %v1971
  %v2313 = vmul.f32 %v2298, %v2305
  %v2314 = vadd.f32 %v2312, %v2313
  %v2315 = vtanh.pop %v2314
  %v2316 = vmul.f32 %v2311, %v2315
  %v2317 = vmax.f32 %v1974, %v2316
  %v2318 = vadd.f32 %v1975, %v2316
  %s2319 = scalar_lea.vmem [#allocation2], 160
  %v2320 = vld [vmem:[%s2319] sm:$0xff]
  %v2321 = vld [vmem:[%s2319 + $0x8] sm:$0xff]
  %v2322 = vld [vmem:[%s2319 + $0x10] sm:$0xff]
  %v2323 = vld [vmem:[%s2319 + $0x18] sm:$0xff]
  %2324 = vmatprep.subr.mxu0 %v386
  %2325 = vmatpush1.msra.mxu0 %v385
  %2326 = vmatprep.subr.mxu0 %v390
  %2327 = vmatpush1.msra.mxu0 %v389
  %2328 = vmatprep.subr.mxu0 %v394
  %2329 = vmatpush1.msra.mxu0 %v393
  %2330 = vmatprep.subr.mxu0 %v398
  %2331 = vmatpush1.msra.mxu0 %v397
  %2332 = vmatprep.subr.mxu0 %v402
  %2333 = vmatpush1.msra.mxu0 %v401
  %2334 = vmatprep.subr.mxu0 %v406
  %2335 = vmatpush1.msra.mxu0 %v405
  %2336 = vmatprep.subr.mxu0 %v410
  %2337 = vmatpush1.msra.mxu0 %v409
  %2338 = vmatprep.subr.mxu0 %v414
  %2339 = vmatpush1.msra.mxu0 %v413
  %2340 = vmatprep.subr.mxu0 %v418
  %2341 = vmatpush1.msra.mxu0 %v417
  %2342 = vmatprep.subr.mxu0 %v422
  %2343 = vmatpush1.msra.mxu0 %v421
  %2344 = vmatprep.subr.mxu0 %v426
  %2345 = vmatpush1.msra.mxu0 %v425
  %2346 = vmatprep.subr.mxu0 %v430
  %2347 = vmatpush1.msra.mxu0 %v429
  %2348 = vmatprep.subr.mxu0 %v434
  %2349 = vmatpush1.msra.mxu0 %v433
  %2350 = vmatprep.subr.mxu0 %v438
  %2351 = vmatpush1.msra.mxu0 %v437
  %2352 = vmatprep.subr.mxu0 %v442
  %2353 = vmatpush1.msra.mxu0 %v441
  %2354 = vmatprep.subr.mxu0 %v446
  %2355 = vmatpush1.msra.mxu0 %v445
  %2356 = vmatprep.subr.mxu0 0.0
  %2357 = vmatpush1.msra.mxu0 0.0
  %2358 = vmatprep.subr.mxu0 0.0
  %2359 = vmatpush1.msra.mxu0 0.0
  %2360 = vmatprep.subr.mxu0 0.0
  %2361 = vmatpush1.msra.mxu0 0.0
  %2362 = vmatprep.subr.mxu0 0.0
  %2363 = vmatpush1.msra.mxu0 0.0
  %2364 = vmatprep.subr.mxu0 0.0
  %2365 = vmatpush1.msra.mxu0 0.0
  %2366 = vmatprep.subr.mxu0 0.0
  %2367 = vmatpush1.msra.mxu0 0.0
  %2368 = vmatprep.subr.mxu0 0.0
  %2369 = vmatpush1.msra.mxu0 0.0
  %2370 = vmatprep.subr.mxu0 0.0
  %2371 = vmatpush1.msra.mxu0 0.0
  %2372 = vmatprep.subr.mxu0 0.0
  %2373 = vmatpush1.msra.mxu0 0.0
  %2374 = vmatprep.subr.mxu0 0.0
  %2375 = vmatpush1.msra.mxu0 0.0
  %2376 = vmatprep.subr.mxu0 0.0
  %2377 = vmatpush1.msra.mxu0 0.0
  %2378 = vmatprep.subr.mxu0 0.0
  %2379 = vmatpush1.msra.mxu0 0.0
  %2380 = vmatprep.subr.mxu0 0.0
  %2381 = vmatpush1.msra.mxu0 0.0
  %2382 = vmatprep.subr.mxu0 0.0
  %2383 = vmatpush1.msra.mxu0 0.0
  %2384 = vmatprep.subr.mxu0 0.0
  %2385 = vmatpush1.msra.mxu0 0.0
  %2386 = vmatprep.subr.mxu0 0.0
  %2387 = vmatpush1.msra.mxu0 0.0
  %2388 = vmatprep.mubr.f32.mxu0 0.0
  %2389 = vmatmul.mubr.f32.gmra.mrb[0].mxu0 %v2150
  %v2390 = vpop.f32.mrb[0].mxu0
  %v2391 = vadd.f32 0.0, %v2390
  %v2392 = vpop.f32.mrb[0].mxu0
  %v2393 = vadd.f32 0.0, %v2392
  %2394 = vdwg.mxu0
  %2395 = vmatprep.subr.mxu0 %v388
  %2396 = vmatpush1.msra.mxu0 %v387
  %2397 = vmatprep.subr.mxu0 %v392
  %2398 = vmatpush1.msra.mxu0 %v391
  %2399 = vmatprep.subr.mxu0 %v396
  %2400 = vmatpush1.msra.mxu0 %v395
  %2401 = vmatprep.subr.mxu0 %v400
  %2402 = vmatpush1.msra.mxu0 %v399
  %2403 = vmatprep.subr.mxu0 %v404
  %2404 = vmatpush1.msra.mxu0 %v403
  %2405 = vmatprep.subr.mxu0 %v408
  %2406 = vmatpush1.msra.mxu0 %v407
  %2407 = vmatprep.subr.mxu0 %v412
  %2408 = vmatpush1.msra.mxu0 %v411
  %2409 = vmatprep.subr.mxu0 %v416
  %2410 = vmatpush1.msra.mxu0 %v415
  %2411 = vmatprep.subr.mxu0 %v420
  %2412 = vmatpush1.msra.mxu0 %v419
  %2413 = vmatprep.subr.mxu0 %v424
  %2414 = vmatpush1.msra.mxu0 %v423
  %2415 = vmatprep.subr.mxu0 %v428
  %2416 = vmatpush1.msra.mxu0 %v427
  %2417 = vmatprep.subr.mxu0 %v432
  %2418 = vmatpush1.msra.mxu0 %v431
  %2419 = vmatprep.subr.mxu0 %v436
  %2420 = vmatpush1.msra.mxu0 %v435
  %2421 = vmatprep.subr.mxu0 %v440
  %2422 = vmatpush1.msra.mxu0 %v439
  %2423 = vmatprep.subr.mxu0 %v444
  %2424 = vmatpush1.msra.mxu0 %v443
  %2425 = vmatprep.subr.mxu0 %v448
  %2426 = vmatpush1.msra.mxu0 %v447
  %2427 = vmatprep.subr.mxu0 0.0
  %2428 = vmatpush1.msra.mxu0 0.0
  %2429 = vmatprep.subr.mxu0 0.0
  %2430 = vmatpush1.msra.mxu0 0.0
  %2431 = vmatprep.subr.mxu0 0.0
  %2432 = vmatpush1.msra.mxu0 0.0
  %2433 = vmatprep.subr.mxu0 0.0
  %2434 = vmatpush1.msra.mxu0 0.0
  %2435 = vmatprep.subr.mxu0 0.0
  %2436 = vmatpush1.msra.mxu0 0.0
  %2437 = vmatprep.subr.mxu0 0.0
  %2438 = vmatpush1.msra.mxu0 0.0
  %2439 = vmatprep.subr.mxu0 0.0
  %2440 = vmatpush1.msra.mxu0 0.0
  %2441 = vmatprep.subr.mxu0 0.0
  %2442 = vmatpush1.msra.mxu0 0.0
  %2443 = vmatprep.subr.mxu0 0.0
  %2444 = vmatpush1.msra.mxu0 0.0
  %2445 = vmatprep.subr.mxu0 0.0
  %2446 = vmatpush1.msra.mxu0 0.0
  %2447 = vmatprep.subr.mxu0 0.0
  %2448 = vmatpush1.msra.mxu0 0.0
  %2449 = vmatprep.subr.mxu0 0.0
  %2450 = vmatpush1.msra.mxu0 0.0
  %2451 = vmatprep.subr.mxu0 0.0
  %2452 = vmatpush1.msra.mxu0 0.0
  %2453 = vmatprep.subr.mxu0 0.0
  %2454 = vmatpush1.msra.mxu0 0.0
  %2455 = vmatprep.subr.mxu0 0.0
  %2456 = vmatpush1.msra.mxu0 0.0
  %2457 = vmatprep.subr.mxu0 0.0
  %2458 = vmatpush1.msra.mxu0 0.0
  %2459 = vmatprep.mubr.f32.mxu0 0.0
  %2460 = vmatmul.mubr.f32.gmra.mrb[0].mxu0 %v2150
  %v2461 = vpop.f32.mrb[0].mxu0
  %v2462 = vadd.f32 0.0, %v2461
  %v2463 = vpop.f32.mrb[0].mxu0
  %v2464 = vadd.f32 0.0, %v2463
  %2465 = vdwg.mxu0
  %v2466 = vadd.f32 %v2320, %v2391
  %v2467 = vadd.f32 %v2321, %v2393
  %v2468 = vadd.f32 %v2322, %v2462
  %v2469 = vadd.f32 %v2323, %v2464
  %v2470 = vxor.u32 %v2466, 2147483648
  %v2471 = vmul.f32 %v2470, 1.442695
  %v2472 = vpow.pop %v2471
  %v2473 = vadd.f32 %v2472, 1.0
  %v2474 = vrcp.pop %v2473
  %v2475 = vmul.f32 1.0, %v2474
  %v2476 = vxor.u32 %v2467, 2147483648
  %v2477 = vmul.f32 %v2476, 1.442695
  %v2478 = vpow.pop %v2477
  %v2479 = vadd.f32 %v2478, 1.0
  %v2480 = vrcp.pop %v2479
  %v2481 = vmul.f32 1.0, %v2480
  %v2482 = vtanh.pop %v2468
  %v2483 = vxor.u32 %v2469, 2147483648
  %v2484 = vmul.f32 %v2483, 1.442695
  %v2485 = vpow.pop %v2484
  %v2486 = vadd.f32 %v2485, 1.0
  %v2487 = vrcp.pop %v2486
  %v2488 = vmul.f32 1.0, %v2487
  %v2489 = vmul.f32 %v2481, %v2148
  %v2490 = vmul.f32 %v2475, %v2482
  %v2491 = vadd.f32 %v2489, %v2490
  %v2492 = vtanh.pop %v2491
  %v2493 = vmul.f32 %v2488, %v2492
  %2494 = vmatprep.subr.mxu0 %v450
  %2495 = vmatpush1.msra.mxu0 %v449
  %2496 = vmatprep.subr.mxu0 %v454
  %2497 = vmatpush1.msra.mxu0 %v453
  %2498 = vmatprep.subr.mxu0 %v458
  %2499 = vmatpush1.msra.mxu0 %v457
  %2500 = vmatprep.subr.mxu0 %v462
  %2501 = vmatpush1.msra.mxu0 %v461
  %2502 = vmatprep.subr.mxu0 %v466
  %2503 = vmatpush1.msra.mxu0 %v465
  %2504 = vmatprep.subr.mxu0 %v470
  %2505 = vmatpush1.msra.mxu0 %v469
  %2506 = vmatprep.subr.mxu0 %v474
  %2507 = vmatpush1.msra.mxu0 %v473
  %2508 = vmatprep.subr.mxu0 %v478
  %2509 = vmatpush1.msra.mxu0 %v477
  %2510 = vmatprep.subr.mxu0 %v482
  %2511 = vmatpush1.msra.mxu0 %v481
  %2512 = vmatprep.subr.mxu0 %v486
  %2513 = vmatpush1.msra.mxu0 %v485
  %2514 = vmatprep.subr.mxu0 %v490
  %2515 = vmatpush1.msra.mxu0 %v489
  %2516 = vmatprep.subr.mxu0 %v494
  %2517 = vmatpush1.msra.mxu0 %v493
  %2518 = vmatprep.subr.mxu0 %v498
  %2519 = vmatpush1.msra.mxu0 %v497
  %2520 = vmatprep.subr.mxu0 %v502
  %2521 = vmatpush1.msra.mxu0 %v501
  %2522 = vmatprep.subr.mxu0 %v506
  %2523 = vmatpush1.msra.mxu0 %v505
  %2524 = vmatprep.subr.mxu0 %v510
  %2525 = vmatpush1.msra.mxu0 %v509
  %2526 = vmatprep.subr.mxu0 %v514
  %2527 = vmatpush1.msra.mxu0 %v513
  %2528 = vmatprep.subr.mxu0 %v518
  %2529 = vmatpush1.msra.mxu0 %v517
  %2530 = vmatprep.subr.mxu0 %v522
  %2531 = vmatpush1.msra.mxu0 %v521
  %2532 = vmatprep.subr.mxu0 %v526
  %2533 = vmatpush1.msra.mxu0 %v525
  %2534 = vmatprep.subr.mxu0 %v530
  %2535 = vmatpush1.msra.mxu0 %v529
  %2536 = vmatprep.subr.mxu0 %v534
  %2537 = vmatpush1.msra.mxu0 %v533
  %2538 = vmatprep.subr.mxu0 %v538
  %2539 = vmatpush1.msra.mxu0 %v537
  %2540 = vmatprep.subr.mxu0 %v542
  %2541 = vmatpush1.msra.mxu0 %v541
  %2542 = vmatprep.subr.mxu0 %v546
  %2543 = vmatpush1.msra.mxu0 %v545
  %2544 = vmatprep.subr.mxu0 %v550
  %2545 = vmatpush1.msra.mxu0 %v549
  %2546 = vmatprep.subr.mxu0 %v554
  %2547 = vmatpush1.msra.mxu0 %v553
  %2548 = vmatprep.subr.mxu0 %v558
  %2549 = vmatpush1.msra.mxu0 %v557
  %2550 = vmatprep.subr.mxu0 %v562
  %2551 = vmatpush1.msra.mxu0 %v561
  %2552 = vmatprep.subr.mxu0 %v566
  %2553 = vmatpush1.msra.mxu0 %v565
  %2554 = vmatprep.subr.mxu0 %v570
  %2555 = vmatpush1.msra.mxu0 %v569
  %2556 = vmatprep.subr.mxu0 %v574
  %2557 = vmatpush1.msra.mxu0 %v573
  %2558 = vmatprep.mubr.f32.mxu0 %v2316
  %2559 = vmatmul.mubr.f32.gmra.mrb[0].mxu0 %v2493
  %v2560 = vpop.f32.mrb[0].mxu0
  %v2561 = vadd.f32 %v582, %v2560
  %v2562 = vpop.f32.mrb[0].mxu0
  %v2563 = vadd.f32 %v586, %v2562
  %2564 = vdwg.mxu0
  %2565 = vmatprep.subr.mxu0 %v452
  %2566 = vmatpush1.msra.mxu0 %v451
  %2567 = vmatprep.subr.mxu0 %v456
  %2568 = vmatpush1.msra.mxu0 %v455
  %2569 = vmatprep.subr.mxu0 %v460
  %2570 = vmatpush1.msra.mxu0 %v459
  %2571 = vmatprep.subr.mxu0 %v464
  %2572 = vmatpush1.msra.mxu0 %v463
  %2573 = vmatprep.subr.mxu0 %v468
  %2574 = vmatpush1.msra.mxu0 %v467
  %2575 = vmatprep.subr.mxu0 %v472
  %2576 = vmatpush1.msra.mxu0 %v471
  %2577 = vmatprep.subr.mxu0 %v476
  %2578 = vmatpush1.msra.mxu0 %v475
  %2579 = vmatprep.subr.mxu0 %v480
  %2580 = vmatpush1.msra.mxu0 %v479
  %2581 = vmatprep.subr.mxu0 %v484
  %2582 = vmatpush1.msra.mxu0 %v483
  %2583 = vmatprep.subr.mxu0 %v488
  %2584 = vmatpush1.msra.mxu0 %v487
  %2585 = vmatprep.subr.mxu0 %v492
  %2586 = vmatpush1.msra.mxu0 %v491
  %2587 = vmatprep.subr.mxu0 %v496
  %2588 = vmatpush1.msra.mxu0 %v495
  %2589 = vmatprep.subr.mxu0 %v500
  %2590 = vmatpush1.msra.mxu0 %v499
  %2591 = vmatprep.subr.mxu0 %v504
  %2592 = vmatpush1.msra.mxu0 %v503
  %2593 = vmatprep.subr.mxu0 %v508
  %2594 = vmatpush1.msra.mxu0 %v507
  %2595 = vmatprep.subr.mxu0 %v512
  %2596 = vmatpush1.msra.mxu0 %v511
  %2597 = vmatprep.subr.mxu0 %v516
  %2598 = vmatpush1.msra.mxu0 %v515
  %2599 = vmatprep.subr.mxu0 %v520
  %2600 = vmatpush1.msra.mxu0 %v519
  %2601 = vmatprep.subr.mxu0 %v524
  %2602 = vmatpush1.msra.mxu0 %v523
  %2603 = vmatprep.subr.mxu0 %v528
  %2604 = vmatpush1.msra.mxu0 %v527
  %2605 = vmatprep.subr.mxu0 %v532
  %2606 = vmatpush1.msra.mxu0 %v531
  %2607 = vmatprep.subr.mxu0 %v536
  %2608 = vmatpush1.msra.mxu0 %v535
  %2609 = vmatprep.subr.mxu0 %v540
  %2610 = vmatpush1.msra.mxu0 %v539
  %2611 = vmatprep.subr.mxu0 %v544
  %2612 = vmatpush1.msra.mxu0 %v543
  %2613 = vmatprep.subr.mxu0 %v548
  %2614 = vmatpush1.msra.mxu0 %v547
  %2615 = vmatprep.subr.mxu0 %v552
  %2616 = vmatpush1.msra.mxu0 %v551
  %2617 = vmatprep.subr.mxu0 %v556
  %2618 = vmatpush1.msra.mxu0 %v555
  %2619 = vmatprep.subr.mxu0 %v560
  %2620 = vmatpush1.msra.mxu0 %v559
  %2621 = vmatprep.subr.mxu0 %v564
  %2622 = vmatpush1.msra.mxu0 %v563
  %2623 = vmatprep.subr.mxu0 %v568
  %2624 = vmatpush1.msra.mxu0 %v567
  %2625 = vmatprep.subr.mxu0 %v572
  %2626 = vmatpush1.msra.mxu0 %v571
  %2627 = vmatprep.subr.mxu0 %v576
  %2628 = vmatpush1.msra.mxu0 %v575
  %2629 = vmatprep.mubr.f32.mxu0 %v2316
  %2630 = vmatmul.mubr.f32.gmra.mrb[0].mxu0 %v2493
  %v2631 = vpop.f32.mrb[0].mxu0
  %v2632 = vadd.f32 %v590, %v2631
  %v2633 = vpop.f32.mrb[0].mxu0
  %v2634 = vadd.f32 %v594, %v2633
  %2635 = vdwg.mxu0
  %v2636 = vxor.u32 %v2561, 2147483648
  %v2637 = vmul.f32 %v2636, 1.442695
  %v2638 = vpow.pop %v2637
  %v2639 = vadd.f32 %v2638, 1.0
  %v2640 = vrcp.pop %v2639
  %v2641 = vmul.f32 1.0, %v2640
  %v2642 = vxor.u32 %v2563, 2147483648
  %v2643 = vmul.f32 %v2642, 1.442695
  %v2644 = vpow.pop %v2643
  %v2645 = vadd.f32 %v2644, 1.0
  %v2646 = vrcp.pop %v2645
  %v2647 = vmul.f32 1.0, %v2646
  %v2648 = vtanh.pop %v2632
  %v2649 = vxor.u32 %v2634, 2147483648
  %v2650 = vmul.f32 %v2649, 1.442695
  %v2651 = vpow.pop %v2650
  %v2652 = vadd.f32 %v2651, 1.0
  %v2653 = vrcp.pop %v2652
  %v2654 = vmul.f32 1.0, %v2653
  %v2655 = vmul.f32 %v2647, %v2314
  %v2656 = vmul.f32 %v2641, %v2648
  %v2657 = vadd.f32 %v2655, %v2656
  %v2658 = vtanh.pop %v2657
  %v2659 = vmul.f32 %v2654, %v2658
  %v2660 = vmax.f32 %v2317, %v2659
  %v2661 = vadd.f32 %v2318, %v2659
  %s2662 = scalar_lea.vmem [#allocation2], 192
  %v2663 = vld [vmem:[%s2662] sm:$0xff]
  %v2664 = vld [vmem:[%s2662 + $0x8] sm:$0xff]
  %v2665 = vld [vmem:[%s2662 + $0x10] sm:$0xff]
  %v2666 = vld [vmem:[%s2662 + $0x18] sm:$0xff]
  %2667 = vmatprep.subr.mxu0 %v386
  %2668 = vmatpush1.msra.mxu0 %v385
  %2669 = vmatprep.subr.mxu0 %v390
  %2670 = vmatpush1.msra.mxu0 %v389
  %2671 = vmatprep.subr.mxu0 %v394
  %2672 = vmatpush1.msra.mxu0 %v393
  %2673 = vmatprep.subr.mxu0 %v398
  %2674 = vmatpush1.msra.mxu0 %v397
  %2675 = vmatprep.subr.mxu0 %v402
  %2676 = vmatpush1.msra.mxu0 %v401
  %2677 = vmatprep.subr.mxu0 %v406
  %2678 = vmatpush1.msra.mxu0 %v405
  %2679 = vmatprep.subr.mxu0 %v410
  %2680 = vmatpush1.msra.mxu0 %v409
  %2681 = vmatprep.subr.mxu0 %v414
  %2682 = vmatpush1.msra.mxu0 %v413
  %2683 = vmatprep.subr.mxu0 %v418
  %2684 = vmatpush1.msra.mxu0 %v417
  %2685 = vmatprep.subr.mxu0 %v422
  %2686 = vmatpush1.msra.mxu0 %v421
  %2687 = vmatprep.subr.mxu0 %v426
  %2688 = vmatpush1.msra.mxu0 %v425
  %2689 = vmatprep.subr.mxu0 %v430
  %2690 = vmatpush1.msra.mxu0 %v429
  %2691 = vmatprep.subr.mxu0 %v434
  %2692 = vmatpush1.msra.mxu0 %v433
  %2693 = vmatprep.subr.mxu0 %v438
  %2694 = vmatpush1.msra.mxu0 %v437
  %2695 = vmatprep.subr.mxu0 %v442
  %2696 = vmatpush1.msra.mxu0 %v441
  %2697 = vmatprep.subr.mxu0 %v446
  %2698 = vmatpush1.msra.mxu0 %v445
  %2699 = vmatprep.subr.mxu0 0.0
  %2700 = vmatpush1.msra.mxu0 0.0
  %2701 = vmatprep.subr.mxu0 0.0
  %2702 = vmatpush1.msra.mxu0 0.0
  %2703 = vmatprep.subr.mxu0 0.0
  %2704 = vmatpush1.msra.mxu0 0.0
  %2705 = vmatprep.subr.mxu0 0.0
  %2706 = vmatpush1.msra.mxu0 0.0
  %2707 = vmatprep.subr.mxu0 0.0
  %2708 = vmatpush1.msra.mxu0 0.0
  %2709 = vmatprep.subr.mxu0 0.0
  %2710 = vmatpush1.msra.mxu0 0.0
  %2711 = vmatprep.subr.mxu0 0.0
  %2712 = vmatpush1.msra.mxu0 0.0
  %2713 = vmatprep.subr.mxu0 0.0
  %2714 = vmatpush1.msra.mxu0 0.0
  %2715 = vmatprep.subr.mxu0 0.0
  %2716 = vmatpush1.msra.mxu0 0.0
  %2717 = vmatprep.subr.mxu0 0.0
  %2718 = vmatpush1.msra.mxu0 0.0
  %2719 = vmatprep.subr.mxu0 0.0
  %2720 = vmatpush1.msra.mxu0 0.0
  %2721 = vmatprep.subr.mxu0 0.0
  %2722 = vmatpush1.msra.mxu0 0.0
  %2723 = vmatprep.subr.mxu0 0.0
  %2724 = vmatpush1.msra.mxu0 0.0
  %2725 = vmatprep.subr.mxu0 0.0
  %2726 = vmatpush1.msra.mxu0 0.0
  %2727 = vmatprep.subr.mxu0 0.0
  %2728 = vmatpush1.msra.mxu0 0.0
  %2729 = vmatprep.subr.mxu0 0.0
  %2730 = vmatpush1.msra.mxu0 0.0
  %2731 = vmatprep.mubr.f32.mxu0 0.0
  %2732 = vmatmul.mubr.f32.gmra.mrb[0].mxu0 %v2493
  %v2733 = vpop.f32.mrb[0].mxu0
  %v2734 = vadd.f32 0.0, %v2733
  %v2735 = vpop.f32.mrb[0].mxu0
  %v2736 = vadd.f32 0.0, %v2735
  %2737 = vdwg.mxu0
  %2738 = vmatprep.subr.mxu0 %v388
  %2739 = vmatpush1.msra.mxu0 %v387
  %2740 = vmatprep.subr.mxu0 %v392
  %2741 = vmatpush1.msra.mxu0 %v391
  %2742 = vmatprep.subr.mxu0 %v396
  %2743 = vmatpush1.msra.mxu0 %v395
  %2744 = vmatprep.subr.mxu0 %v400
  %2745 = vmatpush1.msra.mxu0 %v399
  %2746 = vmatprep.subr.mxu0 %v404
  %2747 = vmatpush1.msra.mxu0 %v403
  %2748 = vmatprep.subr.mxu0 %v408
  %2749 = vmatpush1.msra.mxu0 %v407
  %2750 = vmatprep.subr.mxu0 %v412
  %2751 = vmatpush1.msra.mxu0 %v411
  %2752 = vmatprep.subr.mxu0 %v416
  %2753 = vmatpush1.msra.mxu0 %v415
  %2754 = vmatprep.subr.mxu0 %v420
  %2755 = vmatpush1.msra.mxu0 %v419
  %2756 = vmatprep.subr.mxu0 %v424
  %2757 = vmatpush1.msra.mxu0 %v423
  %2758 = vmatprep.subr.mxu0 %v428
  %2759 = vmatpush1.msra.mxu0 %v427
  %2760 = vmatprep.subr.mxu0 %v432
  %2761 = vmatpush1.msra.mxu0 %v431
  %2762 = vmatprep.subr.mxu0 %v436
  %2763 = vmatpush1.msra.mxu0 %v435
  %2764 = vmatprep.subr.mxu0 %v440
  %2765 = vmatpush1.msra.mxu0 %v439
  %2766 = vmatprep.subr.mxu0 %v444
  %2767 = vmatpush1.msra.mxu0 %v443
  %2768 = vmatprep.subr.mxu0 %v448
  %2769 = vmatpush1.msra.mxu0 %v447
  %2770 = vmatprep.subr.mxu0 0.0
  %2771 = vmatpush1.msra.mxu0 0.0
  %2772 = vmatprep.subr.mxu0 0.0
  %2773 = vmatpush1.msra.mxu0 0.0
  %2774 = vmatprep.subr.mxu0 0.0
  %2775 = vmatpush1.msra.mxu0 0.0
  %2776 = vmatprep.subr.mxu0 0.0
  %2777 = vmatpush1.msra.mxu0 0.0
  %2778 = vmatprep.subr.mxu0 0.0
  %2779 = vmatpush1.msra.mxu0 0.0
  %2780 = vmatprep.subr.mxu0 0.0
  %2781 = vmatpush1.msra.mxu0 0.0
  %2782 = vmatprep.subr.mxu0 0.0
  %2783 = vmatpush1.msra.mxu0 0.0
  %2784 = vmatprep.subr.mxu0 0.0
  %2785 = vmatpush1.msra.mxu0 0.0
  %2786 = vmatprep.subr.mxu0 0.0
  %2787 = vmatpush1.msra.mxu0 0.0
  %2788 = vmatprep.subr.mxu0 0.0
  %2789 = vmatpush1.msra.mxu0 0.0
  %2790 = vmatprep.subr.mxu0 0.0
  %2791 = vmatpush1.msra.mxu0 0.0
  %2792 = vmatprep.subr.mxu0 0.0
  %2793 = vmatpush1.msra.mxu0 0.0
  %2794 = vmatprep.subr.mxu0 0.0
  %2795 = vmatpush1.msra.mxu0 0.0
  %2796 = vmatprep.subr.mxu0 0.0
  %2797 = vmatpush1.msra.mxu0 0.0
  %2798 = vmatprep.subr.mxu0 0.0
  %2799 = vmatpush1.msra.mxu0 0.0
  %2800 = vmatprep.subr.mxu0 0.0
  %2801 = vmatpush1.msra.mxu0 0.0
  %2802 = vmatprep.mubr.f32.mxu0 0.0
  %2803 = vmatmul.mubr.f32.gmra.mrb[0].mxu0 %v2493
  %v2804 = vpop.f32.mrb[0].mxu0
  %v2805 = vadd.f32 0.0, %v2804
  %v2806 = vpop.f32.mrb[0].mxu0
  %v2807 = vadd.f32 0.0, %v2806
  %2808 = vdwg.mxu0
  %v2809 = vadd.f32 %v2663, %v2734
  %v2810 = vadd.f32 %v2664, %v2736
  %v2811 = vadd.f32 %v2665, %v2805
  %v2812 = vadd.f32 %v2666, %v2807
  %v2813 = vxor.u32 %v2809, 2147483648
  %v2814 = vmul.f32 %v2813, 1.442695
  %v2815 = vpow.pop %v2814
  %v2816 = vadd.f32 %v2815, 1.0
  %v2817 = vrcp.pop %v2816
  %v2818 = vmul.f32 1.0, %v2817
  %v2819 = vxor.u32 %v2810, 2147483648
  %v2820 = vmul.f32 %v2819, 1.442695
  %v2821 = vpow.pop %v2820
  %v2822 = vadd.f32 %v2821, 1.0
  %v2823 = vrcp.pop %v2822
  %v2824 = vmul.f32 1.0, %v2823
  %v2825 = vtanh.pop %v2811
  %v2826 = vxor.u32 %v2812, 2147483648
  %v2827 = vmul.f32 %v2826, 1.442695
  %v2828 = vpow.pop %v2827
  %v2829 = vadd.f32 %v2828, 1.0
  %v2830 = vrcp.pop %v2829
  %v2831 = vmul.f32 1.0, %v2830
  %v2832 = vmul.f32 %v2824, %v2491
  %v2833 = vmul.f32 %v2818, %v2825
  %v2834 = vadd.f32 %v2832, %v2833
  %v2835 = vtanh.pop %v2834
  %v2836 = vmul.f32 %v2831, %v2835
  %2837 = vmatprep.subr.mxu0 %v450
  %2838 = vmatpush1.msra.mxu0 %v449
  %2839 = vmatprep.subr.mxu0 %v454
  %2840 = vmatpush1.msra.mxu0 %v453
  %2841 = vmatprep.subr.mxu0 %v458
  %2842 = vmatpush1.msra.mxu0 %v457
  %2843 = vmatprep.subr.mxu0 %v462
  %2844 = vmatpush1.msra.mxu0 %v461
  %2845 = vmatprep.subr.mxu0 %v466
  %2846 = vmatpush1.msra.mxu0 %v465
  %2847 = vmatprep.subr.mxu0 %v470
  %2848 = vmatpush1.msra.mxu0 %v469
  %2849 = vmatprep.subr.mxu0 %v474
  %2850 = vmatpush1.msra.mxu0 %v473
  %2851 = vmatprep.subr.mxu0 %v478
  %2852 = vmatpush1.msra.mxu0 %v477
  %2853 = vmatprep.subr.mxu0 %v482
  %2854 = vmatpush1.msra.mxu0 %v481
  %2855 = vmatprep.subr.mxu0 %v486
  %2856 = vmatpush1.msra.mxu0 %v485
  %2857 = vmatprep.subr.mxu0 %v490
  %2858 = vmatpush1.msra.mxu0 %v489
  %2859 = vmatprep.subr.mxu0 %v494
  %2860 = vmatpush1.msra.mxu0 %v493
  %2861 = vmatprep.subr.mxu0 %v498
  %2862 = vmatpush1.msra.mxu0 %v497
  %2863 = vmatprep.subr.mxu0 %v502
  %2864 = vmatpush1.msra.mxu0 %v501
  %2865 = vmatprep.subr.mxu0 %v506
  %2866 = vmatpush1.msra.mxu0 %v505
  %2867 = vmatprep.subr.mxu0 %v510
  %2868 = vmatpush1.msra.mxu0 %v509
  %2869 = vmatprep.subr.mxu0 %v514
  %2870 = vmatpush1.msra.mxu0 %v513
  %2871 = vmatprep.subr.mxu0 %v518
  %2872 = vmatpush1.msra.mxu0 %v517
  %2873 = vmatprep.subr.mxu0 %v522
  %2874 = vmatpush1.msra.mxu0 %v521
  %2875 = vmatprep.subr.mxu0 %v526
  %2876 = vmatpush1.msra.mxu0 %v525
  %2877 = vmatprep.subr.mxu0 %v530
  %2878 = vmatpush1.msra.mxu0 %v529
  %2879 = vmatprep.subr.mxu0 %v534
  %2880 = vmatpush1.msra.mxu0 %v533
  %2881 = vmatprep.subr.mxu0 %v538
  %2882 = vmatpush1.msra.mxu0 %v537
  %2883 = vmatprep.subr.mxu0 %v542
  %2884 = vmatpush1.msra.mxu0 %v541
  %2885 = vmatprep.subr.mxu0 %v546
  %2886 = vmatpush1.msra.mxu0 %v545
  %2887 = vmatprep.subr.mxu0 %v550
  %2888 = vmatpush1.msra.mxu0 %v549
  %2889 = vmatprep.subr.mxu0 %v554
  %2890 = vmatpush1.msra.mxu0 %v553
  %2891 = vmatprep.subr.mxu0 %v558
  %2892 = vmatpush1.msra.mxu0 %v557
  %2893 = vmatprep.subr.mxu0 %v562
  %2894 = vmatpush1.msra.mxu0 %v561
  %2895 = vmatprep.subr.mxu0 %v566
  %2896 = vmatpush1.msra.mxu0 %v565
  %2897 = vmatprep.subr.mxu0 %v570
  %2898 = vmatpush1.msra.mxu0 %v569
  %2899 = vmatprep.subr.mxu0 %v574
  %2900 = vmatpush1.msra.mxu0 %v573
  %2901 = vmatprep.mubr.f32.mxu0 %v2659
  %2902 = vmatmul.mubr.f32.gmra.mrb[0].mxu0 %v2836
  %v2903 = vpop.f32.mrb[0].mxu0
  %v2904 = vadd.f32 %v582, %v2903
  %v2905 = vpop.f32.mrb[0].mxu0
  %v2906 = vadd.f32 %v586, %v2905
  %2907 = vdwg.mxu0
  %2908 = vmatprep.subr.mxu0 %v452
  %2909 = vmatpush1.msra.mxu0 %v451
  %2910 = vmatprep.subr.mxu0 %v456
  %2911 = vmatpush1.msra.mxu0 %v455
  %2912 = vmatprep.subr.mxu0 %v460
  %2913 = vmatpush1.msra.mxu0 %v459
  %2914 = vmatprep.subr.mxu0 %v464
  %2915 = vmatpush1.msra.mxu0 %v463
  %2916 = vmatprep.subr.mxu0 %v468
  %2917 = vmatpush1.msra.mxu0 %v467
  %2918 = vmatprep.subr.mxu0 %v472
  %2919 = vmatpush1.msra.mxu0 %v471
  %2920 = vmatprep.subr.mxu0 %v476
  %2921 = vmatpush1.msra.mxu0 %v475
  %2922 = vmatprep.subr.mxu0 %v480
  %2923 = vmatpush1.msra.mxu0 %v479
  %2924 = vmatprep.subr.mxu0 %v484
  %2925 = vmatpush1.msra.mxu0 %v483
  %2926 = vmatprep.subr.mxu0 %v488
  %2927 = vmatpush1.msra.mxu0 %v487
  %2928 = vmatprep.subr.mxu0 %v492
  %2929 = vmatpush1.msra.mxu0 %v491
  %2930 = vmatprep.subr.mxu0 %v496
  %2931 = vmatpush1.msra.mxu0 %v495
  %2932 = vmatprep.subr.mxu0 %v500
  %2933 = vmatpush1.msra.mxu0 %v499
  %2934 = vmatprep.subr.mxu0 %v504
  %2935 = vmatpush1.msra.mxu0 %v503
  %2936 = vmatprep.subr.mxu0 %v508
  %2937 = vmatpush1.msra.mxu0 %v507
  %2938 = vmatprep.subr.mxu0 %v512
  %2939 = vmatpush1.msra.mxu0 %v511
  %2940 = vmatprep.subr.mxu0 %v516
  %2941 = vmatpush1.msra.mxu0 %v515
  %2942 = vmatprep.subr.mxu0 %v520
  %2943 = vmatpush1.msra.mxu0 %v519
  %2944 = vmatprep.subr.mxu0 %v524
  %2945 = vmatpush1.msra.mxu0 %v523
  %2946 = vmatprep.subr.mxu0 %v528
  %2947 = vmatpush1.msra.mxu0 %v527
  %2948 = vmatprep.subr.mxu0 %v532
  %2949 = vmatpush1.msra.mxu0 %v531
  %2950 = vmatprep.subr.mxu0 %v536
  %2951 = vmatpush1.msra.mxu0 %v535
  %2952 = vmatprep.subr.mxu0 %v540
  %2953 = vmatpush1.msra.mxu0 %v539
  %2954 = vmatprep.subr.mxu0 %v544
  %2955 = vmatpush1.msra.mxu0 %v543
  %2956 = vmatprep.subr.mxu0 %v548
  %2957 = vmatpush1.msra.mxu0 %v547
  %2958 = vmatprep.subr.mxu0 %v552
  %2959 = vmatpush1.msra.mxu0 %v551
  %2960 = vmatprep.subr.mxu0 %v556
  %2961 = vmatpush1.msra.mxu0 %v555
  %2962 = vmatprep.subr.mxu0 %v560
  %2963 = vmatpush1.msra.mxu0 %v559
  %2964 = vmatprep.subr.mxu0 %v564
  %2965 = vmatpush1.msra.mxu0 %v563
  %2966 = vmatprep.subr.mxu0 %v568
  %2967 = vmatpush1.msra.mxu0 %v567
  %2968 = vmatprep.subr.mxu0 %v572
  %2969 = vmatpush1.msra.mxu0 %v571
  %2970 = vmatprep.subr.mxu0 %v576
  %2971 = vmatpush1.msra.mxu0 %v575
  %2972 = vmatprep.mubr.f32.mxu0 %v2659
  %2973 = vmatmul.mubr.f32.gmra.mrb[0].mxu0 %v2836
  %v2974 = vpop.f32.mrb[0].mxu0
  %v2975 = vadd.f32 %v590, %v2974
  %v2976 = vpop.f32.mrb[0].mxu0
  %v2977 = vadd.f32 %v594, %v2976
  %2978 = vdwg.mxu0
  %v2979 = vxor.u32 %v2904, 2147483648
  %v2980 = vmul.f32 %v2979, 1.442695
  %v2981 = vpow.pop %v2980
  %v2982 = vadd.f32 %v2981, 1.0
  %v2983 = vrcp.pop %v2982
  %v2984 = vmul.f32 1.0, %v2983
  %v2985 = vxor.u32 %v2906, 2147483648
  %v2986 = vmul.f32 %v2985, 1.442695
  %v2987 = vpow.pop %v2986
  %v2988 = vadd.f32 %v2987, 1.0
  %v2989 = vrcp.pop %v2988
  %v2990 = vmul.f32 1.0, %v2989
  %v2991 = vtanh.pop %v2975
  %v2992 = vxor.u32 %v2977, 2147483648
  %v2993 = vmul.f32 %v2992, 1.442695
  %v2994 = vpow.pop %v2993
  %v2995 = vadd.f32 %v2994, 1.0
  %v2996 = vrcp.pop %v2995
  %v2997 = vmul.f32 1.0, %v2996
  %v2998 = vmul.f32 %v2990, %v2657
  %v2999 = vmul.f32 %v2984, %v2991
  %v3000 = vadd.f32 %v2998, %v2999
  %v3001 = vtanh.pop %v3000
  %v3002 = vmul.f32 %v2997, %v3001
  %v3003 = vmax.f32 %v2660, %v3002
  %v3004 = vadd.f32 %v2661, %v3002
  %s3005 = scalar_lea.vmem [#allocation2], 224
  %v3006 = vld [vmem:[%s3005] sm:$0xff]
  %v3007 = vld [vmem:[%s3005 + $0x8] sm:$0xff]
  %v3008 = vld [vmem:[%s3005 + $0x10] sm:$0xff]
  %v3009 = vld [vmem:[%s3005 + $0x18] sm:$0xff]
  %3010 = vmatprep.subr.mxu0 %v386
  %3011 = vmatpush1.msra.mxu0 %v385
  %3012 = vmatprep.subr.mxu0 %v390
  %3013 = vmatpush1.msra.mxu0 %v389
  %3014 = vmatprep.subr.mxu0 %v394
  %3015 = vmatpush1.msra.mxu0 %v393
  %3016 = vmatprep.subr.mxu0 %v398
  %3017 = vmatpush1.msra.mxu0 %v397
  %3018 = vmatprep.subr.mxu0 %v402
  %3019 = vmatpush1.msra.mxu0 %v401
  %3020 = vmatprep.subr.mxu0 %v406
  %3021 = vmatpush1.msra.mxu0 %v405
  %3022 = vmatprep.subr.mxu0 %v410
  %3023 = vmatpush1.msra.mxu0 %v409
  %3024 = vmatprep.subr.mxu0 %v414
  %3025 = vmatpush1.msra.mxu0 %v413
  %3026 = vmatprep.subr.mxu0 %v418
  %3027 = vmatpush1.msra.mxu0 %v417
  %3028 = vmatprep.subr.mxu0 %v422
  %3029 = vmatpush1.msra.mxu0 %v421
  %3030 = vmatprep.subr.mxu0 %v426
  %3031 = vmatpush1.msra.mxu0 %v425
  %3032 = vmatprep.subr.mxu0 %v430
  %3033 = vmatpush1.msra.mxu0 %v429
  %3034 = vmatprep.subr.mxu0 %v434
  %3035 = vmatpush1.msra.mxu0 %v433
  %3036 = vmatprep.subr.mxu0 %v438
  %3037 = vmatpush1.msra.mxu0 %v437
  %3038 = vmatprep.subr.mxu0 %v442
  %3039 = vmatpush1.msra.mxu0 %v441
  %3040 = vmatprep.subr.mxu0 %v446
  %3041 = vmatpush1.msra.mxu0 %v445
  %3042 = vmatprep.subr.mxu0 0.0
  %3043 = vmatpush1.msra.mxu0 0.0
  %3044 = vmatprep.subr.mxu0 0.0
  %3045 = vmatpush1.msra.mxu0 0.0
  %3046 = vmatprep.subr.mxu0 0.0
  %3047 = vmatpush1.msra.mxu0 0.0
  %3048 = vmatprep.subr.mxu0 0.0
  %3049 = vmatpush1.msra.mxu0 0.0
  %3050 = vmatprep.subr.mxu0 0.0
  %3051 = vmatpush1.msra.mxu0 0.0
  %3052 = vmatprep.subr.mxu0 0.0
  %3053 = vmatpush1.msra.mxu0 0.0
  %3054 = vmatprep.subr.mxu0 0.0
  %3055 = vmatpush1.msra.mxu0 0.0
  %3056 = vmatprep.subr.mxu0 0.0
  %3057 = vmatpush1.msra.mxu0 0.0
  %3058 = vmatprep.subr.mxu0 0.0
  %3059 = vmatpush1.msra.mxu0 0.0
  %3060 = vmatprep.subr.mxu0 0.0
  %3061 = vmatpush1.msra.mxu0 0.0
  %3062 = vmatprep.subr.mxu0 0.0
  %3063 = vmatpush1.msra.mxu0 0.0
  %3064 = vmatprep.subr.mxu0 0.0
  %3065 = vmatpush1.msra.mxu0 0.0
  %3066 = vmatprep.subr.mxu0 0.0
  %3067 = vmatpush1.msra.mxu0 0.0
  %3068 = vmatprep.subr.mxu0 0.0
  %3069 = vmatpush1.msra.mxu0 0.0
  %3070 = vmatprep.subr.mxu0 0.0
  %3071 = vmatpush1.msra.mxu0 0.0
  %3072 = vmatprep.subr.mxu0 0.0
  %3073 = vmatpush1.msra.mxu0 0.0
  %3074 = vmatprep.mubr.f32.mxu0 0.0
  %3075 = vmatmul.mubr.f32.gmra.mrb[0].mxu0 %v2836
  %v3076 = vpop.f32.mrb[0].mxu0
  %v3077 = vadd.f32 0.0, %v3076
  %v3078 = vpop.f32.mrb[0].mxu0
  %v3079 = vadd.f32 0.0, %v3078
  %3080 = vdwg.mxu0
  %3081 = vmatprep.subr.mxu0 %v388
  %3082 = vmatpush1.msra.mxu0 %v387
  %3083 = vmatprep.subr.mxu0 %v392
  %3084 = vmatpush1.msra.mxu0 %v391
  %3085 = vmatprep.subr.mxu0 %v396
  %3086 = vmatpush1.msra.mxu0 %v395
  %3087 = vmatprep.subr.mxu0 %v400
  %3088 = vmatpush1.msra.mxu0 %v399
  %3089 = vmatprep.subr.mxu0 %v404
  %3090 = vmatpush1.msra.mxu0 %v403
  %3091 = vmatprep.subr.mxu0 %v408
  %3092 = vmatpush1.msra.mxu0 %v407
  %3093 = vmatprep.subr.mxu0 %v412
  %3094 = vmatpush1.msra.mxu0 %v411
  %3095 = vmatprep.subr.mxu0 %v416
  %3096 = vmatpush1.msra.mxu0 %v415
  %3097 = vmatprep.subr.mxu0 %v420
  %3098 = vmatpush1.msra.mxu0 %v419
  %3099 = vmatprep.subr.mxu0 %v424
  %3100 = vmatpush1.msra.mxu0 %v423
  %3101 = vmatprep.subr.mxu0 %v428
  %3102 = vmatpush1.msra.mxu0 %v427
  %3103 = vmatprep.subr.mxu0 %v432
  %3104 = vmatpush1.msra.mxu0 %v431
  %3105 = vmatprep.subr.mxu0 %v436
  %3106 = vmatpush1.msra.mxu0 %v435
  %3107 = vmatprep.subr.mxu0 %v440
  %3108 = vmatpush1.msra.mxu0 %v439
  %3109 = vmatprep.subr.mxu0 %v444
  %3110 = vmatpush1.msra.mxu0 %v443
  %3111 = vmatprep.subr.mxu0 %v448
  %3112 = vmatpush1.msra.mxu0 %v447
  %3113 = vmatprep.subr.mxu0 0.0
  %3114 = vmatpush1.msra.mxu0 0.0
  %3115 = vmatprep.subr.mxu0 0.0
  %3116 = vmatpush1.msra.mxu0 0.0
  %3117 = vmatprep.subr.mxu0 0.0
  %3118 = vmatpush1.msra.mxu0 0.0
  %3119 = vmatprep.subr.mxu0 0.0
  %3120 = vmatpush1.msra.mxu0 0.0
  %3121 = vmatprep.subr.mxu0 0.0
  %3122 = vmatpush1.msra.mxu0 0.0
  %3123 = vmatprep.subr.mxu0 0.0
  %3124 = vmatpush1.msra.mxu0 0.0
  %3125 = vmatprep.subr.mxu0 0.0
  %3126 = vmatpush1.msra.mxu0 0.0
  %3127 = vmatprep.subr.mxu0 0.0
  %3128 = vmatpush1.msra.mxu0 0.0
  %3129 = vmatprep.subr.mxu0 0.0
  %3130 = vmatpush1.msra.mxu0 0.0
  %3131 = vmatprep.subr.mxu0 0.0
  %3132 = vmatpush1.msra.mxu0 0.0
  %3133 = vmatprep.subr.mxu0 0.0
  %3134 = vmatpush1.msra.mxu0 0.0
  %3135 = vmatprep.subr.mxu0 0.0
  %3136 = vmatpush1.msra.mxu0 0.0
  %3137 = vmatprep.subr.mxu0 0.0
  %3138 = vmatpush1.msra.mxu0 0.0
  %3139 = vmatprep.subr.mxu0 0.0
  %3140 = vmatpush1.msra.mxu0 0.0
  %3141 = vmatprep.subr.mxu0 0.0
  %3142 = vmatpush1.msra.mxu0 0.0
  %3143 = vmatprep.subr.mxu0 0.0
  %3144 = vmatpush1.msra.mxu0 0.0
  %3145 = vmatprep.mubr.f32.mxu0 0.0
  %3146 = vmatmul.mubr.f32.gmra.mrb[0].mxu0 %v2836
  %v3147 = vpop.f32.mrb[0].mxu0
  %v3148 = vadd.f32 0.0, %v3147
  %v3149 = vpop.f32.mrb[0].mxu0
  %v3150 = vadd.f32 0.0, %v3149
  %3151 = vdwg.mxu0
  %v3152 = vadd.f32 %v3006, %v3077
  %v3153 = vadd.f32 %v3007, %v3079
  %v3154 = vadd.f32 %v3008, %v3148
  %v3155 = vadd.f32 %v3009, %v3150
  %v3156 = vxor.u32 %v3152, 2147483648
  %v3157 = vmul.f32 %v3156, 1.442695
  %v3158 = vpow.pop %v3157
  %v3159 = vadd.f32 %v3158, 1.0
  %v3160 = vrcp.pop %v3159
  %v3161 = vmul.f32 1.0, %v3160
  %v3162 = vxor.u32 %v3153, 2147483648
  %v3163 = vmul.f32 %v3162, 1.442695
  %v3164 = vpow.pop %v3163
  %v3165 = vadd.f32 %v3164, 1.0
  %v3166 = vrcp.pop %v3165
  %v3167 = vmul.f32 1.0, %v3166
  %v3168 = vtanh.pop %v3154
  %v3169 = vxor.u32 %v3155, 2147483648
  %v3170 = vmul.f32 %v3169, 1.442695
  %v3171 = vpow.pop %v3170
  %v3172 = vadd.f32 %v3171, 1.0
  %v3173 = vrcp.pop %v3172
  %v3174 = vmul.f32 1.0, %v3173
  %v3175 = vmul.f32 %v3167, %v2834
  %v3176 = vmul.f32 %v3161, %v3168
  %v3177 = vadd.f32 %v3175, %v3176
  %v3178 = vtanh.pop %v3177
  %v3179 = vmul.f32 %v3174, %v3178
  %3180 = vmatprep.subr.mxu0 %v450
  %3181 = vmatpush1.msra.mxu0 %v449
  %3182 = vmatprep.subr.mxu0 %v454
  %3183 = vmatpush1.msra.mxu0 %v453
  %3184 = vmatprep.subr.mxu0 %v458
  %3185 = vmatpush1.msra.mxu0 %v457
  %3186 = vmatprep.subr.mxu0 %v462
  %3187 = vmatpush1.msra.mxu0 %v461
  %3188 = vmatprep.subr.mxu0 %v466
  %3189 = vmatpush1.msra.mxu0 %v465
  %3190 = vmatprep.subr.mxu0 %v470
  %3191 = vmatpush1.msra.mxu0 %v469
  %3192 = vmatprep.subr.mxu0 %v474
  %3193 = vmatpush1.msra.mxu0 %v473
  %3194 = vmatprep.subr.mxu0 %v478
  %3195 = vmatpush1.msra.mxu0 %v477
  %3196 = vmatprep.subr.mxu0 %v482
  %3197 = vmatpush1.msra.mxu0 %v481
  %3198 = vmatprep.subr.mxu0 %v486
  %3199 = vmatpush1.msra.mxu0 %v485
  %3200 = vmatprep.subr.mxu0 %v490
  %3201 = vmatpush1.msra.mxu0 %v489
  %3202 = vmatprep.subr.mxu0 %v494
  %3203 = vmatpush1.msra.mxu0 %v493
  %3204 = vmatprep.subr.mxu0 %v498
  %3205 = vmatpush1.msra.mxu0 %v497
  %3206 = vmatprep.subr.mxu0 %v502
  %3207 = vmatpush1.msra.mxu0 %v501
  %3208 = vmatprep.subr.mxu0 %v506
  %3209 = vmatpush1.msra.mxu0 %v505
  %3210 = vmatprep.subr.mxu0 %v510
  %3211 = vmatpush1.msra.mxu0 %v509
  %3212 = vmatprep.subr.mxu0 %v514
  %3213 = vmatpush1.msra.mxu0 %v513
  %3214 = vmatprep.subr.mxu0 %v518
  %3215 = vmatpush1.msra.mxu0 %v517
  %3216 = vmatprep.subr.mxu0 %v522
  %3217 = vmatpush1.msra.mxu0 %v521
  %3218 = vmatprep.subr.mxu0 %v526
  %3219 = vmatpush1.msra.mxu0 %v525
  %3220 = vmatprep.subr.mxu0 %v530
  %3221 = vmatpush1.msra.mxu0 %v529
  %3222 = vmatprep.subr.mxu0 %v534
  %3223 = vmatpush1.msra.mxu0 %v533
  %3224 = vmatprep.subr.mxu0 %v538
  %3225 = vmatpush1.msra.mxu0 %v537
  %3226 = vmatprep.subr.mxu0 %v542
  %3227 = vmatpush1.msra.mxu0 %v541
  %3228 = vmatprep.subr.mxu0 %v546
  %3229 = vmatpush1.msra.mxu0 %v545
  %3230 = vmatprep.subr.mxu0 %v550
  %3231 = vmatpush1.msra.mxu0 %v549
  %3232 = vmatprep.subr.mxu0 %v554
  %3233 = vmatpush1.msra.mxu0 %v553
  %3234 = vmatprep.subr.mxu0 %v558
  %3235 = vmatpush1.msra.mxu0 %v557
  %3236 = vmatprep.subr.mxu0 %v562
  %3237 = vmatpush1.msra.mxu0 %v561
  %3238 = vmatprep.subr.mxu0 %v566
  %3239 = vmatpush1.msra.mxu0 %v565
  %3240 = vmatprep.subr.mxu0 %v570
  %3241 = vmatpush1.msra.mxu0 %v569
  %3242 = vmatprep.subr.mxu0 %v574
  %3243 = vmatpush1.msra.mxu0 %v573
  %3244 = vmatprep.mubr.f32.mxu0 %v3002
  %3245 = vmatmul.mubr.f32.gmra.mrb[0].mxu0 %v3179
  %v3246 = vpop.f32.mrb[0].mxu0
  %v3247 = vadd.f32 %v582, %v3246
  %v3248 = vpop.f32.mrb[0].mxu0
  %v3249 = vadd.f32 %v586, %v3248
  %3250 = vdwg.mxu0
  %3251 = vmatprep.subr.mxu0 %v452
  %3252 = vmatpush1.msra.mxu0 %v451
  %3253 = vmatprep.subr.mxu0 %v456
  %3254 = vmatpush1.msra.mxu0 %v455
  %3255 = vmatprep.subr.mxu0 %v460
  %3256 = vmatpush1.msra.mxu0 %v459
  %3257 = vmatprep.subr.mxu0 %v464
  %3258 = vmatpush1.msra.mxu0 %v463
  %3259 = vmatprep.subr.mxu0 %v468
  %3260 = vmatpush1.msra.mxu0 %v467
  %3261 = vmatprep.subr.mxu0 %v472
  %3262 = vmatpush1.msra.mxu0 %v471
  %3263 = vmatprep.subr.mxu0 %v476
  %3264 = vmatpush1.msra.mxu0 %v475
  %3265 = vmatprep.subr.mxu0 %v480
  %3266 = vmatpush1.msra.mxu0 %v479
  %3267 = vmatprep.subr.mxu0 %v484
  %3268 = vmatpush1.msra.mxu0 %v483
  %3269 = vmatprep.subr.mxu0 %v488
  %3270 = vmatpush1.msra.mxu0 %v487
  %3271 = vmatprep.subr.mxu0 %v492
  %3272 = vmatpush1.msra.mxu0 %v491
  %3273 = vmatprep.subr.mxu0 %v496
  %3274 = vmatpush1.msra.mxu0 %v495
  %3275 = vmatprep.subr.mxu0 %v500
  %3276 = vmatpush1.msra.mxu0 %v499
  %3277 = vmatprep.subr.mxu0 %v504
  %3278 = vmatpush1.msra.mxu0 %v503
  %3279 = vmatprep.subr.mxu0 %v508
  %3280 = vmatpush1.msra.mxu0 %v507
  %3281 = vmatprep.subr.mxu0 %v512
  %3282 = vmatpush1.msra.mxu0 %v511
  %3283 = vmatprep.subr.mxu0 %v516
  %3284 = vmatpush1.msra.mxu0 %v515
  %3285 = vmatprep.subr.mxu0 %v520
  %3286 = vmatpush1.msra.mxu0 %v519
  %3287 = vmatprep.subr.mxu0 %v524
  %3288 = vmatpush1.msra.mxu0 %v523
  %3289 = vmatprep.subr.mxu0 %v528
  %3290 = vmatpush1.msra.mxu0 %v527
  %3291 = vmatprep.subr.mxu0 %v532
  %3292 = vmatpush1.msra.mxu0 %v531
  %3293 = vmatprep.subr.mxu0 %v536
  %3294 = vmatpush1.msra.mxu0 %v535
  %3295 = vmatprep.subr.mxu0 %v540
  %3296 = vmatpush1.msra.mxu0 %v539
  %3297 = vmatprep.subr.mxu0 %v544
  %3298 = vmatpush1.msra.mxu0 %v543
  %3299 = vmatprep.subr.mxu0 %v548
  %3300 = vmatpush1.msra.mxu0 %v547
  %3301 = vmatprep.subr.mxu0 %v552
  %3302 = vmatpush1.msra.mxu0 %v551
  %3303 = vmatprep.subr.mxu0 %v556
  %3304 = vmatpush1.msra.mxu0 %v555
  %3305 = vmatprep.subr.mxu0 %v560
  %3306 = vmatpush1.msra.mxu0 %v559
  %3307 = vmatprep.subr.mxu0 %v564
  %3308 = vmatpush1.msra.mxu0 %v563
  %3309 = vmatprep.subr.mxu0 %v568
  %3310 = vmatpush1.msra.mxu0 %v567
  %3311 = vmatprep.subr.mxu0 %v572
  %3312 = vmatpush1.msra.mxu0 %v571
  %3313 = vmatprep.subr.mxu0 %v576
  %3314 = vmatpush1.msra.mxu0 %v575
  %3315 = vmatprep.mubr.f32.mxu0 %v3002
  %3316 = vmatmul.mubr.f32.gmra.mrb[0].mxu0 %v3179
  %v3317 = vpop.f32.mrb[0].mxu0
  %v3318 = vadd.f32 %v590, %v3317
  %v3319 = vpop.f32.mrb[0].mxu0
  %v3320 = vadd.f32 %v594, %v3319
  %3321 = vdwg.mxu0
  %v3322 = vxor.u32 %v3247, 2147483648
  %v3323 = vmul.f32 %v3322, 1.442695
  %v3324 = vpow.pop %v3323
  %v3325 = vadd.f32 %v3324, 1.0
  %v3326 = vrcp.pop %v3325
  %v3327 = vmul.f32 1.0, %v3326
  %v3328 = vxor.u32 %v3249, 2147483648
  %v3329 = vmul.f32 %v3328, 1.442695
  %v3330 = vpow.pop %v3329
  %v3331 = vadd.f32 %v3330, 1.0
  %v3332 = vrcp.pop %v3331
  %v3333 = vmul.f32 1.0, %v3332
  %v3334 = vtanh.pop %v3318
  %v3335 = vxor.u32 %v3320, 2147483648
  %v3336 = vmul.f32 %v3335, 1.442695
  %v3337 = vpow.pop %v3336
  %v3338 = vadd.f32 %v3337, 1.0
  %v3339 = vrcp.pop %v3338
  %v3340 = vmul.f32 1.0, %v3339
  %v3341 = vmul.f32 %v3333, %v3000
  %v3342 = vmul.f32 %v3327, %v3334
  %v3343 = vadd.f32 %v3341, %v3342
  %v3344 = vtanh.pop %v3343
  %v3345 = vmul.f32 %v3340, %v3344
  %v3346 = vmax.f32 %v3003, %v3345
  %v3347 = vadd.f32 %v3004, %v3345
  %3348 = vst [vmem:[#allocation3] sm:$0xff] %v3179
  %3349 = vst [vmem:[#allocation4] sm:$0xff] %v3177
  %3350 = vst [vmem:[#allocation5] sm:$0xff] %v3345
  %3351 = vst [vmem:[#allocation6] sm:$0xff] %v3343
  %3352 = vst [vmem:[#allocation7] sm:$0xff] %v3346
  %3353 = vst [vmem:[#allocation8] sm:$0xff] %v3347
  // Predicated region
  $region46: #{sentiment_rnn_forward.1} parent=0 // pred_check
    %p3354 = pneg %p40
  $region47: #{sentiment_rnn_forward.1} parent=0 // pred_check_branch
    %3356 = sbr.rel (%p3354) target = $region49
  $region48: #{sentiment_rnn_forward.1} parent=0 // pred_region
    %3357 = vst [vmem:[%s11] sm:$0xff] %v3179
    %s3358 = scalar_lea.vmem %s11, 8
    %3359 = vst [vmem:[%s3358] sm:$0xff] %v3345
    %3360 = vst [vmem:[%s12] sm:$0xff] %v3177
    %s3361 = scalar_lea.vmem %s12, 8
    %3362 = vst [vmem:[%s3361] sm:$0xff] %v3343
    %v3363 = vmul.f32 %v3347, 0.125
    %v3364 = vld [vmem:[%s8] sm:$0xff]
    %v3365 = vld [vmem:[%s8 + $0x8] sm:$0xff]
    %v3366 = vld [vmem:[%s8 + $0x10] sm:$0xff]
    %v3367 = vld [vmem:[%s8 + $0x18] sm:$0xff]
    %v3368 = vld [vmem:[%s8 + $0x20] sm:$0xff]
    %v3369 = vld [vmem:[%s8 + $0x28] sm:$0xff]
    %v3370 = vld [vmem:[%s8 + $0x30] sm:$0xff]
    %v3371 = vld [vmem:[%s8 + $0x38] sm:$0xff]
    %v3372 = vld [vmem:[%s8 + $0x40] sm:$0xff]
    %v3373 = vld [vmem:[%s8 + $0x48] sm:$0xff]
    %v3374 = vld [vmem:[%s8 + $0x50] sm:$0xff]
    %v3375 = vld [vmem:[%s8 + $0x58] sm:$0xff]
    %v3376 = vld [vmem:[%s8 + $0x60] sm:$0xff]
    %v3377 = vld [vmem:[%s8 + $0x68] sm:$0xff]
    %v3378 = vld [vmem:[%s8 + $0x70] sm:$0xff]
    %v3379 = vld [vmem:[%s8 + $0x78] sm:$0xff]
    %v3380 = vld [vmem:[%s8 + $0x80] sm:$0xff]
    %v3381 = vld [vmem:[%s8 + $0x88] sm:$0xff]
    %v3382 = vld [vmem:[%s8 + $0x90] sm:$0xff]
    %v3383 = vld [vmem:[%s8 + $0x98] sm:$0xff]
    %v3384 = vld [vmem:[%s8 + $0xa0] sm:$0xff]
    %v3385 = vld [vmem:[%s8 + $0xa8] sm:$0xff]
    %v3386 = vld [vmem:[%s8 + $0xb0] sm:$0xff]
    %v3387 = vld [vmem:[%s8 + $0xb8] sm:$0xff]
    %v3388 = vld [vmem:[%s8 + $0xc0] sm:$0xff]
    %v3389 = vld [vmem:[%s8 + $0xc8] sm:$0xff]
    %v3390 = vld [vmem:[%s8 + $0xd0] sm:$0xff]
    %v3391 = vld [vmem:[%s8 + $0xd8] sm:$0xff]
    %v3392 = vld [vmem:[%s8 + $0xe0] sm:$0xff]
    %v3393 = vld [vmem:[%s8 + $0xe8] sm:$0xff]
    %v3394 = vld [vmem:[%s8 + $0xf0] sm:$0xff]
    %v3395 = vld [vmem:[%s8 + $0xf8] sm:$0xff]
    %v3396 = vld [vmem:[#allocation9] sm:$0x1]
    %v3398 = vlaneseq
    %v3399 = vshrl.u32 %v3398, 7
    %v3400 = vsub.s32 0, %v3399
    %v3401 = vrot.slane %v3396, %v3400
    %3403 = vmatprep.subr.mxu0 0.0
    %3404 = vmatpush1.msra.mxu0 %v3364
    %3405 = vmatprep.subr.mxu0 0.0
    %3406 = vmatpush1.msra.mxu0 %v3365
    %3407 = vmatprep.subr.mxu0 0.0
    %3408 = vmatpush1.msra.mxu0 %v3366
    %3409 = vmatprep.subr.mxu0 0.0
    %3410 = vmatpush1.msra.mxu0 %v3367
    %3411 = vmatprep.subr.mxu0 0.0
    %3412 = vmatpush1.msra.mxu0 %v3368
    %3413 = vmatprep.subr.mxu0 0.0
    %3414 = vmatpush1.msra.mxu0 %v3369
    %3415 = vmatprep.subr.mxu0 0.0
    %3416 = vmatpush1.msra.mxu0 %v3370
    %3417 = vmatprep.subr.mxu0 0.0
    %3418 = vmatpush1.msra.mxu0 %v3371
    %3419 = vmatprep.subr.mxu0 0.0
    %3420 = vmatpush1.msra.mxu0 %v3372
    %3421 = vmatprep.subr.mxu0 0.0
    %3422 = vmatpush1.msra.mxu0 %v3373
    %3423 = vmatprep.subr.mxu0 0.0
    %3424 = vmatpush1.msra.mxu0 %v3374
    %3425 = vmatprep.subr.mxu0 0.0
    %3426 = vmatpush1.msra.mxu0 %v3375
    %3427 = vmatprep.subr.mxu0 0.0
    %3428 = vmatpush1.msra.mxu0 %v3376
    %3429 = vmatprep.subr.mxu0 0.0
    %3430 = vmatpush1.msra.mxu0 %v3377
    %3431 = vmatprep.subr.mxu0 0.0
    %3432 = vmatpush1.msra.mxu0 %v3378
    %3433 = vmatprep.subr.mxu0 0.0
    %3434 = vmatpush1.msra.mxu0 %v3379
    %3435 = vmatprep.subr.mxu0 0.0
    %3436 = vmatpush1.msra.mxu0 %v3380
    %3437 = vmatprep.subr.mxu0 0.0
    %3438 = vmatpush1.msra.mxu0 %v3381
    %3439 = vmatprep.subr.mxu0 0.0
    %3440 = vmatpush1.msra.mxu0 %v3382
    %3441 = vmatprep.subr.mxu0 0.0
    %3442 = vmatpush1.msra.mxu0 %v3383
    %3443 = vmatprep.subr.mxu0 0.0
    %3444 = vmatpush1.msra.mxu0 %v3384
    %3445 = vmatprep.subr.mxu0 0.0
    %3446 = vmatpush1.msra.mxu0 %v3385
    %3447 = vmatprep.subr.mxu0 0.0
    %3448 = vmatpush1.msra.mxu0 %v3386
    %3449 = vmatprep.subr.mxu0 0.0
    %3450 = vmatpush1.msra.mxu0 %v3387
    %3451 = vmatprep.subr.mxu0 0.0
    %3452 = vmatpush1.msra.mxu0 %v3388
    %3453 = vmatprep.subr.mxu0 0.0
    %3454 = vmatpush1.msra.mxu0 %v3389
    %3455 = vmatprep.subr.mxu0 0.0
    %3456 = vmatpush1.msra.mxu0 %v3390
    %3457 = vmatprep.subr.mxu0 0.0
    %3458 = vmatpush1.msra.mxu0 %v3391
    %3459 = vmatprep.subr.mxu0 0.0
    %3460 = vmatpush1.msra.mxu0 %v3392
    %3461 = vmatprep.subr.mxu0 0.0
    %3462 = vmatpush1.msra.mxu0 %v3393
    %3463 = vmatprep.subr.mxu0 0.0
    %3464 = vmatpush1.msra.mxu0 %v3394
    %3465 = vmatprep.subr.mxu0 0.0
    %3466 = vmatpush1.msra.mxu0 %v3395
    %3467 = vmatprep.mubr.f32.mxu0 %v3363
    %3468 = vmatmul.mubr.f32.gmra.mrb[0].mxu0 %v3346
    %v3469 = vpop.f32.mrb[0].mxu0
    %v3470 = vadd.f32 %v3401, %v3469
    %v3471 = vpop.f32.mrb[0].mxu0
    %3472 = vdwg.mxu0
    %v3473 = vxor.u32 %v3470, 2147483648
    %v3474 = vmul.f32 %v3473, 1.442695
    %v3475 = vpow.pop %v3474
    %v3476 = vadd.f32 %v3475, 1.0
    %v3477 = vrcp.pop %v3476
    %v3478 = vmul.f32 1.0, %v3477
    %vm3479 = vcmask 7168
    %3480 = vst.msk [vmem:[%s10] sm:$0xff] %vm3479, %v3478
  $region49: #{sentiment_rnn_forward.1} parent=0 // pred_fallthru
    _
  // Predicated region
  $region50: #{sentiment_rnn_forward.1} parent=0 // pred_check
    _
  $region51: #{sentiment_rnn_forward.1} parent=0 // pred_check_branch
    %3482 = sbr.rel (0) target = $region53
  $region52: #{sentiment_rnn_forward.1} parent=0 // pred_region
    _
  $region53: #{sentiment_rnn_forward.1} parent=0 // pred_fallthru
    _
  // Predicated region
  $region54: #{sentiment_rnn_forward.1} parent=0 // pred_check
    _
  $region55: #{sentiment_rnn_forward.1} parent=0 // pred_check_branch
    %3484 = sbr.rel (0) target = $region57
  $region56: #{sentiment_rnn_forward.1} parent=0 // pred_region
    _
  $region57: #{sentiment_rnn_forward.1} parent=0 // pred_fallthru
    _
  // Predicated region
  $region58: #{sentiment_rnn_forward.1} parent=0 // pred_check
    _
  $region59: #{sentiment_rnn_forward.1} parent=0 // pred_check_branch
    %3486 = sbr.rel (0) target = $region61
  $region60: #{sentiment_rnn_forward.1} parent=0 // pred_region
    _
  $region61: #{sentiment_rnn_forward.1} parent=0 // pred_fallthru
    _
  // Predicated region
  $region62: #{sentiment_rnn_forward.1} parent=0 // pred_check
    _
  $region63: #{sentiment_rnn_forward.1} parent=0 // pred_check_branch
    %3488 = sbr.rel (0) target = $region65
  $region64: #{sentiment_rnn_forward.1} parent=0 // pred_region
    _
  $region65: #{sentiment_rnn_forward.1} parent=0 // pred_fallthru
    _
  // Predicated region
  $region66: #{sentiment_rnn_forward.1} parent=0 // pred_check
    _
  $region67: #{sentiment_rnn_forward.1} parent=0 // pred_check_branch
    %3490 = sbr.rel (0) target = $region69
  $region68: #{sentiment_rnn_forward.1} parent=0 // pred_region
    _
  $region69: #{sentiment_rnn_forward.1} parent=0 // pred_fallthru
    _
  // Predicated region
  $region70: #{sentiment_rnn_forward.1} parent=0 // pred_check
    _
  $region71: #{sentiment_rnn_forward.1} parent=0 // pred_check_branch
    %3492 = sbr.rel (0) target = $region73
  $region72: #{sentiment_rnn_forward.1} parent=0 // pred_region
    _
  $region73: #{sentiment_rnn_forward.1} parent=0 // pred_fallthru
    _

</llo_original>
